<compile_context>
chip_gen: v5e
topology: v5e:2x2
jax: 0.10.0
libtpu: 0.0.40
codegen_flags: <defaults>
</compile_context>

<pallas_src>
import numpy as np

import jax
import jax.numpy as jnp
from jax.experimental import pallas as pl
from jax.experimental.pallas import tpu as pltpu


# ----------------------------------------------------------------------------
# Architecture (mirrors D_arch in the PyTorch module)
# ----------------------------------------------------------------------------
def d_arch(ndf, img_dim):
    return {
        32: {'in_channels': [img_dim] + [ndf * m for m in [2, 4]],
             'out_channels': [ndf * m for m in [2, 4, 8]]},
        64: {'in_channels': [img_dim] + [ndf * m for m in [2, 4, 8]],
             'out_channels': [ndf * m for m in [2, 4, 8, 16]]},
        128: {'in_channels': [img_dim] + [ndf * m for m in [1, 2, 4, 8]],
              'out_channels': [ndf * m for m in [1, 2, 4, 8, 16]]},
    }


# ----------------------------------------------------------------------------
# Block-Toeplitz (along W) conv weights:  conv(a) = x_cat @ T
#   x_cat[(n*Ho+ho), kh*W*Cin + w*Cin + ci] = a[n, 2*ho+kh-1, w, ci] (0 if pad)
# ----------------------------------------------------------------------------
def _build_toeplitz(w_conv, W):
    Cout, Cin, KH, KW = w_conv.shape
    Wo = W // 2
    T = np.zeros((4, W * Cin, Wo * Cout), np.float32)
    for kh in range(KH):
        for wo in range(Wo):
            for kw in range(KW):
                w = 2 * wo + kw - 1            # padding = 1
                if 0 <= w < W:
                    T[kh, w * Cin:(w + 1) * Cin, wo * Cout:(wo + 1) * Cout] = \
                        w_conv[:, :, kh, kw].T
    return T.reshape(4 * W * Cin, Wo * Cout)


# ----------------------------------------------------------------------------
# The single fused kernel
# ----------------------------------------------------------------------------
def make_encoder_kernel(dims, N, O, L):
    def kernel(*refs):
        it = iter(refs)
        x_ref = next(it)
        t1_ref = next(it)
        gb_refs = [(next(it), next(it)) for _ in range(L)]
        wh_ref = next(it)
        bh_ref = next(it)
        eps_ref = next(it)
        thbm_refs = [next(it) for _ in range(L - 1)]
        o_ref = next(it)
        tbuf_refs = [next(it) for _ in range(L - 1)]
        sem = next(it)

        # Prefetch every later layer's Toeplitz weights (HBM -> VMEM); these
        # DMAs complete behind the earlier layers' compute.
        copies = []
        for i in range(L - 1):
            cp = pltpu.make_async_copy(thbm_refs[i], tbuf_refs[i], sem.at[i])
            cp.start()
            copies.append(cp)

        a = x_ref[...]                                      # (N*H0, W0*C0) f32
        for l in range(L):
            d = dims[l]
            H, W, Cin = d['H'], d['W'], d['Cin']
            Ho, Wo, Cout = d['Ho'], d['Wo'], d['Cout']
            M = N * Ho
            WC = W * Cin

            # ---- kh "im2col" as 4 lane-aligned column slabs (no matmuls) ----
            # Merging row pairs puts the h-parity into the lane dimension:
            #   a_r[m, 0:WC] = a[2m]   (h = 2*ho,   kernel row kh=1)
            #   a_r[m, WC: ] = a[2m+1] (h = 2*ho+1, kernel row kh=2)
            a_r = a.reshape(M, 2 * WC)
            a_even = a_r[:, :WC]
            a_odd = a_r[:, WC:]
            zrow = jnp.zeros((1, WC), jnp.float32)
            row = jax.lax.broadcasted_iota(jnp.int32, (M, 1), 0)
            first = (row % Ho) == 0                 # h = -1 -> zero padding
            last = (row % Ho) == (Ho - 1)           # h = H  -> zero padding
            # kh=0 wants h = 2*ho-1 -> a_odd shifted down one output row,
            # kh=3 wants h = 2*ho+2 -> a_even shifted up one output row.
            slab0 = jnp.where(first, 0.0,
                              jnp.concatenate([zrow, a_odd[:M - 1, :]], axis=0))
            slab3 = jnp.where(last, 0.0,
                              jnp.concatenate([a_even[1:, :], zrow], axis=0))
            x_cat = jnp.concatenate([slab0, a_even, a_odd, slab3],
                                    axis=1).astype(jnp.bfloat16)

            # ---- the whole conv: ONE bf16 MXU matmul, K = 4*W*Cin ----
            if l == 0:
                t = t1_ref[...]
            else:
                copies[l - 1].wait()
                t = tbuf_refs[l - 1][...]
            y = jnp.dot(x_cat, t, preferred_element_type=jnp.float32)
            # Conv bias omitted: the training-mode BN mean subtraction cancels
            # it exactly (an eval-mode/running-stats path would need it back).

            # ---- BatchNorm (training batch stats) + ReLU: VPU/XLU only ----
            g_ref, b_ref = gb_refs[l]
            cnt = float(N * Ho * Wo)
            s2 = jnp.concatenate(
                [jnp.sum(y, axis=0, keepdims=True),
                 jnp.sum(y * y, axis=0, keepdims=True)], axis=0)  # (2, Wo*Cout)
            if (Wo & (Wo - 1)) == 0:
                width = Wo * Cout
                while width > Cout:                 # log2(Wo) lane-fold adds
                    half = width // 2
                    s2 = s2[:, :half] + s2[:, half:width]
                    width = half
            else:
                s2 = jnp.sum(s2.reshape(2, Wo, Cout), axis=1)
            mean = s2[0:1, :] / cnt
            ex2 = s2[1:2, :] / cnt
            var = jnp.maximum(ex2 - mean * mean, 0.0)
            scale = g_ref[...] * jax.lax.rsqrt(var + 1e-5)
            shift = b_ref[...] - mean * scale
            scale_f = jnp.concatenate([scale] * Wo, axis=1)       # (1, Wo*Cout)
            shift_f = jnp.concatenate([shift] * Wo, axis=1)
            a = jnp.maximum(y * scale_f + shift_f, 0.0)           # ReLU

        # ---- head: spatial sum folded into the pre-tiled head weights ----
        d = dims[L - 1]
        a_n = a.reshape(N, d['Ho'] * d['Wo'] * d['Cout']).astype(jnp.bfloat16)
        z = jnp.dot(a_n, wh_ref[...],
                    preferred_element_type=jnp.float32) + bh_ref[...]   # (N, 2O)
        mu = z[:, :O]
        lv = z[:, O:2 * O]
        std = jnp.maximum(lv, 0.0) + jnp.log1p(jnp.exp(-jnp.abs(lv)))   # softplus
        o_ref[...] = mu + eps_ref[...] * std

    return kernel


# ----------------------------------------------------------------------------
# Builder: parameters + jitted forward
# ----------------------------------------------------------------------------
def build_encoder(key, ndf, img_dim, resolution, output_dim, batch, spatial):
    arch = d_arch(ndf, img_dim)[resolution]
    L = len(arch['in_channels'])
    keys = jax.random.split(key, L + 2)
    N = batch

    H = W = spatial
    dims, t_mats, gammas, betas, conv_ws = [], [], [], [], []
    for idx, (cin, cout) in enumerate(zip(arch['in_channels'],
                                          arch['out_channels'])):
        # Conv2d weight init 'N02': N(0, 0.02).
        w = 0.02 * np.asarray(
            jax.random.normal(keys[idx], (cout, cin, 4, 4), jnp.float32))
        conv_ws.append(w)                       # raw weights (for reference)
        if idx == 0 and cin % 4 != 0:
            # Pad image channels to a multiple of 4 so layer-1 is lane-dense;
            # the padded channels' weights (and inputs) are zero.
            cin_p = -(-cin // 4) * 4
            w = np.concatenate(
                [w, np.zeros((cout, cin_p - cin, 4, 4), np.float32)], axis=1)
            cin = cin_p
        t_mats.append(jnp.asarray(_build_toeplitz(w, W), dtype=jnp.bfloat16))
        gammas.append(jnp.ones((1, cout), jnp.float32))     # BN gamma
        betas.append(jnp.zeros((1, cout), jnp.float32))     # BN beta
        dims.append(dict(H=H, W=W, Cin=cin, Ho=H // 2, Wo=W // 2, Cout=cout))
        H, W = H // 2, W // 2

    c_last = arch['out_channels'][-1]
    w_mu = 0.02 * np.asarray(
        jax.random.normal(keys[-2], (output_dim, c_last), jnp.float32))
    w_lv = 0.02 * np.asarray(
        jax.random.normal(keys[-1], (output_dim, c_last), jnp.float32))
    # Fold the final spatial sum into the head weights (tile over Ho*Wo).
    w_head = np.concatenate([w_mu.T, w_lv.T], axis=1)            # (C_last, 2O)
    w_head_big = jnp.asarray(np.tile(w_head, (H * W, 1)), jnp.bfloat16)
    # TODO(synk): PyTorch leaves Linear biases at their default uniform init;
    # zeros are used here for deterministic synthetic weights.
    b_head = jnp.zeros((1, 2 * output_dim), jnp.float32)

    vmem_params = (t_mats[0],) \
        + tuple(p for gb in zip(gammas, betas) for p in gb) \
        + (w_head_big, b_head)
    hbm_params = tuple(t_mats[1:])
    params = dict(vmem=vmem_params, hbm=hbm_params)
    ref_params = dict(conv_w=conv_ws, w_mu=jnp.asarray(w_mu),
                      w_lv=jnp.asarray(w_lv))

    kernel = make_encoder_kernel(dims, N, output_dim, L)
    C0 = dims[0]['Cin']

    in_specs = ([pl.BlockSpec(memory_space=pltpu.MemorySpace.VMEM)]
                * (1 + len(vmem_params) + 1)
                + [pl.BlockSpec(memory_space=pl.ANY)] * len(hbm_params))
    scratch_shapes = [pltpu.VMEM(tuple(t.shape), jnp.bfloat16)
                      for t in t_mats[1:]]
    scratch_shapes.append(pltpu.SemaphoreType.DMA((L - 1,)))

    call = pl.pallas_call(
        kernel,
        out_shape=jax.ShapeDtypeStruct((N, output_dim), jnp.float32),
        in_specs=in_specs,
        scratch_shapes=scratch_shapes,
        compiler_params=pltpu.CompilerParams(
            vmem_limit_bytes=32 * 1024 * 1024),
    )

    @jax.jit
    def forward(params, x_nchw, eps):
        # Lay the input out once as a lane-dense (N*H, W*C) matrix (NHWC,
        # channels zero-padded to a multiple of 4); every activation inside
        # the single fused kernel keeps this layout.
        x = jnp.transpose(x_nchw, (0, 2, 3, 1))
        if C0 > img_dim:
            x = jnp.pad(x, ((0, 0), (0, 0), (0, 0), (0, C0 - img_dim)))
        x2d = x.reshape(N * spatial, spatial * C0)
        return call(x2d, *params['vmem'], eps, *params['hbm'])

    return forward, params, ref_params


# ----------------------------------------------------------------------------
# Pure-JAX reference (matches the PyTorch forward in training mode)
# ----------------------------------------------------------------------------
def encoder_reference(ref_params, x, eps):
    h = x
    for w in ref_params['conv_w']:
        y = jax.lax.conv_general_dilated(
            h, jnp.asarray(w), window_strides=(2, 2),
            padding=((1, 1), (1, 1)),
            dimension_numbers=('NCHW', 'OIHW', 'NCHW'))
        mean = jnp.mean(y, axis=(0, 2, 3), keepdims=True)
        var = jnp.mean((y - mean) ** 2, axis=(0, 2, 3), keepdims=True)
        h = jnp.maximum((y - mean) * jax.lax.rsqrt(var + 1e-5), 0.0)
    hs = jnp.sum(h, axis=(2, 3))
    mu = hs @ ref_params['w_mu'].T
    lv = hs @ ref_params['w_lv'].T
    return mu + eps * jax.nn.softplus(lv)


# ----------------------------------------------------------------------------
# Demo / smoke test
# ----------------------------------------------------------------------------
if __name__ == "__main__":
    # ndf=8, img_dim=3, resolution=64 -> 4 conv blocks; output_dim=32;
    # batch=2, spatial=32 -> 32 -> 16 -> 8 -> 4 -> 2.
    ndf, img_dim, resolution, output_dim = 8, 3, 64, 32
    batch, spatial = 2, 32

    key = jax.random.PRNGKey(0)
    k_param, k_x, k_eps = jax.random.split(key, 3)

    forward, params, ref_params = build_encoder(
        k_param, ndf, img_dim, resolution, output_dim, batch, spatial)
    x = jax.random.normal(k_x, (batch, img_dim, spatial, spatial), jnp.float32)
    eps = jax.random.normal(k_eps, (batch, output_dim), jnp.float32)

    out = jax.block_until_ready(forward(params, x, eps))
    assert out.shape == (batch, output_dim)
    assert bool(jnp.all(jnp.isfinite(out)))

    ref = encoder_reference(ref_params, x, eps)
    err = float(jnp.max(jnp.abs(out - ref)))
    assert err < 1e-1, f"max |pallas - reference| = {err}"
    print("KERNEL_OK")
</pallas_src>

<mosaic_0001>
module attributes {stable_mosaic.version = 11 : i64} {
  func.func @kernel(%arg0: memref<64x128xf32, #tpu.memory_space<vmem>>, %arg1: memref<512x256xbf16, #tpu.memory_space<vmem>>, %arg2: memref<1x16xf32, #tpu.memory_space<vmem>>, %arg3: memref<1x16xf32, #tpu.memory_space<vmem>>, %arg4: memref<1x32xf32, #tpu.memory_space<vmem>>, %arg5: memref<1x32xf32, #tpu.memory_space<vmem>>, %arg6: memref<1x64xf32, #tpu.memory_space<vmem>>, %arg7: memref<1x64xf32, #tpu.memory_space<vmem>>, %arg8: memref<1x128xf32, #tpu.memory_space<vmem>>, %arg9: memref<1x128xf32, #tpu.memory_space<vmem>>, %arg10: memref<512x64xbf16, #tpu.memory_space<vmem>>, %arg11: memref<1x64xf32, #tpu.memory_space<vmem>>, %arg12: memref<2x32xf32, #tpu.memory_space<vmem>>, %arg13: memref<1024x256xbf16, #tpu.memory_space<any>>, %arg14: memref<1024x256xbf16, #tpu.memory_space<any>>, %arg15: memref<1024x256xbf16, #tpu.memory_space<any>>, %arg16: memref<2x32xf32, #tpu.memory_space<vmem>>, %arg17: memref<1024x256xbf16, #tpu.memory_space<vmem>>, %arg18: memref<1024x256xbf16, #tpu.memory_space<vmem>>, %arg19: memref<1024x256xbf16, #tpu.memory_space<vmem>>, %arg20: memref<3x!tpu.dma_semaphore, #tpu.memory_space<semaphore_mem>>) attributes {dimension_semantics = [], scalar_prefetch = 0 : i64, scratch_operands = 4 : i64, tpu.core_type = #tpu.core_type<tc>} {
    %c0_i32 = arith.constant 0 : i32
    %0 = tpu.memref_slice %arg20[%c0_i32] : memref<3x!tpu.dma_semaphore, #tpu.memory_space<semaphore_mem>> -> memref<1x!tpu.dma_semaphore, #tpu.memory_space<semaphore_mem>>
    %1 = tpu.memref_squeeze %0 : memref<1x!tpu.dma_semaphore, #tpu.memory_space<semaphore_mem>> -> memref<!tpu.dma_semaphore, #tpu.memory_space<semaphore_mem>>
    tpu.enqueue_dma source(%arg13 : memref<1024x256xbf16, #tpu.memory_space<any>>) target(%arg17 : memref<1024x256xbf16, #tpu.memory_space<vmem>>) target_semaphore(%1 : memref<!tpu.dma_semaphore, #tpu.memory_space<semaphore_mem>>)
    %c1_i32 = arith.constant 1 : i32
    %2 = tpu.memref_slice %arg20[%c1_i32] : memref<3x!tpu.dma_semaphore, #tpu.memory_space<semaphore_mem>> -> memref<1x!tpu.dma_semaphore, #tpu.memory_space<semaphore_mem>>
    %3 = tpu.memref_squeeze %2 : memref<1x!tpu.dma_semaphore, #tpu.memory_space<semaphore_mem>> -> memref<!tpu.dma_semaphore, #tpu.memory_space<semaphore_mem>>
    tpu.enqueue_dma source(%arg14 : memref<1024x256xbf16, #tpu.memory_space<any>>) target(%arg18 : memref<1024x256xbf16, #tpu.memory_space<vmem>>) target_semaphore(%3 : memref<!tpu.dma_semaphore, #tpu.memory_space<semaphore_mem>>)
    %c2_i32 = arith.constant 2 : i32
    %4 = tpu.memref_slice %arg20[%c2_i32] : memref<3x!tpu.dma_semaphore, #tpu.memory_space<semaphore_mem>> -> memref<1x!tpu.dma_semaphore, #tpu.memory_space<semaphore_mem>>
    %5 = tpu.memref_squeeze %4 : memref<1x!tpu.dma_semaphore, #tpu.memory_space<semaphore_mem>> -> memref<!tpu.dma_semaphore, #tpu.memory_space<semaphore_mem>>
    tpu.enqueue_dma source(%arg15 : memref<1024x256xbf16, #tpu.memory_space<any>>) target(%arg19 : memref<1024x256xbf16, #tpu.memory_space<vmem>>) target_semaphore(%5 : memref<!tpu.dma_semaphore, #tpu.memory_space<semaphore_mem>>)
    %c0 = arith.constant 0 : index
    %c0_0 = arith.constant 0 : index
    %6 = vector.load %arg0[%c0, %c0_0] : memref<64x128xf32, #tpu.memory_space<vmem>>, vector<64x128xf32>
    %7 = vector.shape_cast %6 : vector<64x128xf32> to vector<32x256xf32>
    %8 = vector.extract_strided_slice %7 {offsets = [0, 0], sizes = [32, 128], strides = [1, 1]} : vector<32x256xf32> to vector<32x128xf32>
    %9 = vector.extract_strided_slice %7 {offsets = [0, 128], sizes = [32, 128], strides = [1, 1]} : vector<32x256xf32> to vector<32x128xf32>
    %cst = arith.constant 0.000000e+00 : f32
    %10 = vector.broadcast %cst : f32 to vector<1x128xf32>
    %11 = tpu.iota {dimensions = array<i32: 0>} : vector<32x1xi32>
    %c16_i32 = arith.constant 16 : i32
    %c0_i32_1 = arith.constant 0 : i32
    %12 = arith.cmpi eq, %c16_i32, %c0_i32_1 : i32
    %c1_i32_2 = arith.constant 1 : i32
    %13 = arith.select %12, %c1_i32_2, %c16_i32 : i32
    %14 = vector.broadcast %13 : i32 to vector<32x1xi32>
    %15 = arith.remsi %11, %14 : vector<32x1xi32>
    %c0_i32_3 = arith.constant 0 : i32
    %16 = vector.broadcast %c0_i32_3 : i32 to vector<32x1xi32>
    %17 = arith.cmpi ne, %15, %16 : vector<32x1xi32>
    %c0_i32_4 = arith.constant 0 : i32
    %18 = vector.broadcast %c0_i32_4 : i32 to vector<32x1xi32>
    %19 = arith.cmpi slt, %15, %18 : vector<32x1xi32>
    %c0_i32_5 = arith.constant 0 : i32
    %20 = arith.cmpi slt, %13, %c0_i32_5 : i32
    %21 = vector.broadcast %20 : i1 to vector<32x1xi1>
    %22 = vector.broadcast %21 : vector<32x1xi1> to vector<32x1xi1>
    %23 = arith.xori %19, %22 : vector<32x1xi1>
    %24 = arith.andi %23, %17 : vector<32x1xi1>
    %25 = vector.broadcast %13 : i32 to vector<32x1xi32>
    %26 = arith.addi %15, %25 : vector<32x1xi32>
    %27 = arith.select %24, %26, %15 : vector<32x1xi1>, vector<32x1xi32>
    %c0_i32_6 = arith.constant 0 : i32
    %28 = vector.broadcast %c0_i32_6 : i32 to vector<32x1xi32>
    %29 = arith.cmpi eq, %27, %28 : vector<32x1xi32>
    %c16_i32_7 = arith.constant 16 : i32
    %c0_i32_8 = arith.constant 0 : i32
    %30 = arith.cmpi eq, %c16_i32_7, %c0_i32_8 : i32
    %c1_i32_9 = arith.constant 1 : i32
    %31 = arith.select %30, %c1_i32_9, %c16_i32_7 : i32
    %32 = vector.broadcast %31 : i32 to vector<32x1xi32>
    %33 = arith.remsi %11, %32 : vector<32x1xi32>
    %c0_i32_10 = arith.constant 0 : i32
    %34 = vector.broadcast %c0_i32_10 : i32 to vector<32x1xi32>
    %35 = arith.cmpi ne, %33, %34 : vector<32x1xi32>
    %c0_i32_11 = arith.constant 0 : i32
    %36 = vector.broadcast %c0_i32_11 : i32 to vector<32x1xi32>
    %37 = arith.cmpi slt, %33, %36 : vector<32x1xi32>
    %c0_i32_12 = arith.constant 0 : i32
    %38 = arith.cmpi slt, %31, %c0_i32_12 : i32
    %39 = vector.broadcast %38 : i1 to vector<32x1xi1>
    %40 = vector.broadcast %39 : vector<32x1xi1> to vector<32x1xi1>
    %41 = arith.xori %37, %40 : vector<32x1xi1>
    %42 = arith.andi %41, %35 : vector<32x1xi1>
    %43 = vector.broadcast %31 : i32 to vector<32x1xi32>
    %44 = arith.addi %33, %43 : vector<32x1xi32>
    %45 = arith.select %42, %44, %33 : vector<32x1xi1>, vector<32x1xi32>
    %c15_i32 = arith.constant 15 : i32
    %46 = vector.broadcast %c15_i32 : i32 to vector<32x1xi32>
    %47 = arith.cmpi eq, %45, %46 : vector<32x1xi32>
    %48 = vector.extract_strided_slice %9 {offsets = [0, 0], sizes = [31, 128], strides = [1, 1]} : vector<32x128xf32> to vector<31x128xf32>
    %49 = tpu.concatenate %10, %48 in 0 : vector<1x128xf32>, vector<31x128xf32> -> vector<32x128xf32>
    %cst_13 = arith.constant 0.000000e+00 : f32
    %50 = vector.shape_cast %29 : vector<32x1xi1> to vector<32x1xi1>
    %51 = vector.broadcast %50 : vector<32x1xi1> to vector<32x128xi1>
    %52 = vector.broadcast %cst_13 : f32 to vector<32x128xf32>
    %53 = arith.select %51, %52, %49 : vector<32x128xi1>, vector<32x128xf32>
    %54 = vector.extract_strided_slice %8 {offsets = [1, 0], sizes = [31, 128], strides = [1, 1]} : vector<32x128xf32> to vector<31x128xf32>
    %55 = tpu.concatenate %54, %10 in 0 : vector<31x128xf32>, vector<1x128xf32> -> vector<32x128xf32>
    %cst_14 = arith.constant 0.000000e+00 : f32
    %56 = vector.shape_cast %47 : vector<32x1xi1> to vector<32x1xi1>
    %57 = vector.broadcast %56 : vector<32x1xi1> to vector<32x128xi1>
    %58 = vector.broadcast %cst_14 : f32 to vector<32x128xf32>
    %59 = arith.select %57, %58, %55 : vector<32x128xi1>, vector<32x128xf32>
    %60 = tpu.concatenate %53, %8, %9, %59 in 1 : vector<32x128xf32>, vector<32x128xf32>, vector<32x128xf32>, vector<32x128xf32> -> vector<32x512xf32>
    %61 = arith.truncf %60 : vector<32x512xf32> to vector<32x512xbf16>
    %c0_15 = arith.constant 0 : index
    %c0_16 = arith.constant 0 : index
    %62 = vector.load %arg1[%c0_15, %c0_16] : memref<512x256xbf16, #tpu.memory_space<vmem>>, vector<512x256xbf16>
    %cst_17 = arith.constant dense<0.000000e+00> : vector<32x256xf32>
    %63 = tpu.matmul %61, %62, %cst_17 {dimension_numbers = #tpu.dot_dimension_numbers<[1], [0], [0], [1], [0, 0, 1, 1], [], []>} : vector<32x512xbf16>, vector<512x256xbf16>, vector<32x256xf32> -> vector<32x256xf32>
    %cst_18 = arith.constant dense<0.000000e+00> : vector<256xf32>
    %64 = vector.multi_reduction <add>, %63, %cst_18 [0] : vector<32x256xf32> to vector<256xf32>
    %65 = vector.shape_cast %64 : vector<256xf32> to vector<1x256xf32>
    %66 = arith.mulf %63, %63 : vector<32x256xf32>
    %cst_19 = arith.constant dense<0.000000e+00> : vector<256xf32>
    %67 = vector.multi_reduction <add>, %66, %cst_19 [0] : vector<32x256xf32> to vector<256xf32>
    %68 = vector.shape_cast %67 : vector<256xf32> to vector<1x256xf32>
    %69 = tpu.concatenate %65, %68 in 0 : vector<1x256xf32>, vector<1x256xf32> -> vector<2x256xf32>
    %70 = vector.extract_strided_slice %69 {offsets = [0, 0], sizes = [2, 128], strides = [1, 1]} : vector<2x256xf32> to vector<2x128xf32>
    %71 = vector.extract_strided_slice %69 {offsets = [0, 128], sizes = [2, 128], strides = [1, 1]} : vector<2x256xf32> to vector<2x128xf32>
    %72 = arith.addf %70, %71 : vector<2x128xf32>
    %73 = vector.extract_strided_slice %72 {offsets = [0, 0], sizes = [2, 64], strides = [1, 1]} : vector<2x128xf32> to vector<2x64xf32>
    %74 = vector.extract_strided_slice %72 {offsets = [0, 64], sizes = [2, 64], strides = [1, 1]} : vector<2x128xf32> to vector<2x64xf32>
    %75 = arith.addf %73, %74 : vector<2x64xf32>
    %76 = vector.extract_strided_slice %75 {offsets = [0, 0], sizes = [2, 32], strides = [1, 1]} : vector<2x64xf32> to vector<2x32xf32>
    %77 = vector.extract_strided_slice %75 {offsets = [0, 32], sizes = [2, 32], strides = [1, 1]} : vector<2x64xf32> to vector<2x32xf32>
    %78 = arith.addf %76, %77 : vector<2x32xf32>
    %79 = vector.extract_strided_slice %78 {offsets = [0, 0], sizes = [2, 16], strides = [1, 1]} : vector<2x32xf32> to vector<2x16xf32>
    %80 = vector.extract_strided_slice %78 {offsets = [0, 16], sizes = [2, 16], strides = [1, 1]} : vector<2x32xf32> to vector<2x16xf32>
    %81 = arith.addf %79, %80 : vector<2x16xf32>
    %82 = vector.extract_strided_slice %81 {offsets = [0, 0], sizes = [1, 16], strides = [1, 1]} : vector<2x16xf32> to vector<1x16xf32>
    %cst_20 = arith.constant 5.120000e+02 : f32
    %83 = vector.broadcast %cst_20 : f32 to vector<1x16xf32>
    %84 = arith.divf %82, %83 : vector<1x16xf32>
    %85 = vector.extract_strided_slice %81 {offsets = [1, 0], sizes = [1, 16], strides = [1, 1]} : vector<2x16xf32> to vector<1x16xf32>
    %cst_21 = arith.constant 5.120000e+02 : f32
    %86 = vector.broadcast %cst_21 : f32 to vector<1x16xf32>
    %87 = arith.divf %85, %86 : vector<1x16xf32>
    %88 = arith.mulf %84, %84 : vector<1x16xf32>
    %89 = arith.subf %87, %88 : vector<1x16xf32>
    %cst_22 = arith.constant 0.000000e+00 : f32
    %90 = vector.broadcast %cst_22 : f32 to vector<1x16xf32>
    %91 = arith.maximumf %89, %90 : vector<1x16xf32>
    %c0_23 = arith.constant 0 : index
    %c0_24 = arith.constant 0 : index
    %92 = vector.load %arg2[%c0_23, %c0_24] : memref<1x16xf32, #tpu.memory_space<vmem>>, vector<1x16xf32>
    %cst_25 = arith.constant 9.99999974E-6 : f32
    %93 = vector.broadcast %cst_25 : f32 to vector<1x16xf32>
    %94 = arith.addf %91, %93 : vector<1x16xf32>
    %95 = math.rsqrt %94 : vector<1x16xf32>
    %96 = arith.mulf %92, %95 : vector<1x16xf32>
    %c0_26 = arith.constant 0 : index
    %c0_27 = arith.constant 0 : index
    %97 = vector.load %arg3[%c0_26, %c0_27] : memref<1x16xf32, #tpu.memory_space<vmem>>, vector<1x16xf32>
    %98 = arith.mulf %84, %96 : vector<1x16xf32>
    %99 = arith.subf %97, %98 : vector<1x16xf32>
    %100 = tpu.concatenate %96, %96, %96, %96, %96, %96, %96, %96, %96, %96, %96, %96, %96, %96, %96, %96 in 1 : vector<1x16xf32>, vector<1x16xf32>, vector<1x16xf32>, vector<1x16xf32>, vector<1x16xf32>, vector<1x16xf32>, vector<1x16xf32>, vector<1x16xf32>, vector<1x16xf32>, vector<1x16xf32>, vector<1x16xf32>, vector<1x16xf32>, vector<1x16xf32>, vector<1x16xf32>, vector<1x16xf32>, vector<1x16xf32> -> vector<1x256xf32>
    %101 = tpu.concatenate %99, %99, %99, %99, %99, %99, %99, %99, %99, %99, %99, %99, %99, %99, %99, %99 in 1 : vector<1x16xf32>, vector<1x16xf32>, vector<1x16xf32>, vector<1x16xf32>, vector<1x16xf32>, vector<1x16xf32>, vector<1x16xf32>, vector<1x16xf32>, vector<1x16xf32>, vector<1x16xf32>, vector<1x16xf32>, vector<1x16xf32>, vector<1x16xf32>, vector<1x16xf32>, vector<1x16xf32>, vector<1x16xf32> -> vector<1x256xf32>
    %102 = vector.broadcast %100 : vector<1x256xf32> to vector<32x256xf32>
    %103 = arith.mulf %63, %102 : vector<32x256xf32>
    %104 = vector.broadcast %101 : vector<1x256xf32> to vector<32x256xf32>
    %105 = arith.addf %103, %104 : vector<32x256xf32>
    %cst_28 = arith.constant 0.000000e+00 : f32
    %106 = vector.broadcast %cst_28 : f32 to vector<32x256xf32>
    %107 = arith.maximumf %105, %106 : vector<32x256xf32>
    %108 = vector.shape_cast %107 : vector<32x256xf32> to vector<16x512xf32>
    %109 = vector.extract_strided_slice %108 {offsets = [0, 0], sizes = [16, 256], strides = [1, 1]} : vector<16x512xf32> to vector<16x256xf32>
    %110 = vector.extract_strided_slice %108 {offsets = [0, 256], sizes = [16, 256], strides = [1, 1]} : vector<16x512xf32> to vector<16x256xf32>
    %cst_29 = arith.constant 0.000000e+00 : f32
    %111 = vector.broadcast %cst_29 : f32 to vector<1x256xf32>
    %112 = tpu.iota {dimensions = array<i32: 0>} : vector<16x1xi32>
    %c8_i32 = arith.constant 8 : i32
    %c0_i32_30 = arith.constant 0 : i32
    %113 = arith.cmpi eq, %c8_i32, %c0_i32_30 : i32
    %c1_i32_31 = arith.constant 1 : i32
    %114 = arith.select %113, %c1_i32_31, %c8_i32 : i32
    %115 = vector.broadcast %114 : i32 to vector<16x1xi32>
    %116 = arith.remsi %112, %115 : vector<16x1xi32>
    %c0_i32_32 = arith.constant 0 : i32
    %117 = vector.broadcast %c0_i32_32 : i32 to vector<16x1xi32>
    %118 = arith.cmpi ne, %116, %117 : vector<16x1xi32>
    %c0_i32_33 = arith.constant 0 : i32
    %119 = vector.broadcast %c0_i32_33 : i32 to vector<16x1xi32>
    %120 = arith.cmpi slt, %116, %119 : vector<16x1xi32>
    %c0_i32_34 = arith.constant 0 : i32
    %121 = arith.cmpi slt, %114, %c0_i32_34 : i32
    %122 = vector.broadcast %121 : i1 to vector<16x1xi1>
    %123 = vector.broadcast %122 : vector<16x1xi1> to vector<16x1xi1>
    %124 = arith.xori %120, %123 : vector<16x1xi1>
    %125 = arith.andi %124, %118 : vector<16x1xi1>
    %126 = vector.broadcast %114 : i32 to vector<16x1xi32>
    %127 = arith.addi %116, %126 : vector<16x1xi32>
    %128 = arith.select %125, %127, %116 : vector<16x1xi1>, vector<16x1xi32>
    %c0_i32_35 = arith.constant 0 : i32
    %129 = vector.broadcast %c0_i32_35 : i32 to vector<16x1xi32>
    %130 = arith.cmpi eq, %128, %129 : vector<16x1xi32>
    %c8_i32_36 = arith.constant 8 : i32
    %c0_i32_37 = arith.constant 0 : i32
    %131 = arith.cmpi eq, %c8_i32_36, %c0_i32_37 : i32
    %c1_i32_38 = arith.constant 1 : i32
    %132 = arith.select %131, %c1_i32_38, %c8_i32_36 : i32
    %133 = vector.broadcast %132 : i32 to vector<16x1xi32>
    %134 = arith.remsi %112, %133 : vector<16x1xi32>
    %c0_i32_39 = arith.constant 0 : i32
    %135 = vector.broadcast %c0_i32_39 : i32 to vector<16x1xi32>
    %136 = arith.cmpi ne, %134, %135 : vector<16x1xi32>
    %c0_i32_40 = arith.constant 0 : i32
    %137 = vector.broadcast %c0_i32_40 : i32 to vector<16x1xi32>
    %138 = arith.cmpi slt, %134, %137 : vector<16x1xi32>
    %c0_i32_41 = arith.constant 0 : i32
    %139 = arith.cmpi slt, %132, %c0_i32_41 : i32
    %140 = vector.broadcast %139 : i1 to vector<16x1xi1>
    %141 = vector.broadcast %140 : vector<16x1xi1> to vector<16x1xi1>
    %142 = arith.xori %138, %141 : vector<16x1xi1>
    %143 = arith.andi %142, %136 : vector<16x1xi1>
    %144 = vector.broadcast %132 : i32 to vector<16x1xi32>
    %145 = arith.addi %134, %144 : vector<16x1xi32>
    %146 = arith.select %143, %145, %134 : vector<16x1xi1>, vector<16x1xi32>
    %c7_i32 = arith.constant 7 : i32
    %147 = vector.broadcast %c7_i32 : i32 to vector<16x1xi32>
    %148 = arith.cmpi eq, %146, %147 : vector<16x1xi32>
    %149 = vector.extract_strided_slice %110 {offsets = [0, 0], sizes = [15, 256], strides = [1, 1]} : vector<16x256xf32> to vector<15x256xf32>
    %150 = tpu.concatenate %111, %149 in 0 : vector<1x256xf32>, vector<15x256xf32> -> vector<16x256xf32>
    %cst_42 = arith.constant 0.000000e+00 : f32
    %151 = vector.shape_cast %130 : vector<16x1xi1> to vector<16x1xi1>
    %152 = vector.broadcast %151 : vector<16x1xi1> to vector<16x256xi1>
    %153 = vector.broadcast %cst_42 : f32 to vector<16x256xf32>
    %154 = arith.select %152, %153, %150 : vector<16x256xi1>, vector<16x256xf32>
    %155 = vector.extract_strided_slice %109 {offsets = [1, 0], sizes = [15, 256], strides = [1, 1]} : vector<16x256xf32> to vector<15x256xf32>
    %156 = tpu.concatenate %155, %111 in 0 : vector<15x256xf32>, vector<1x256xf32> -> vector<16x256xf32>
    %cst_43 = arith.constant 0.000000e+00 : f32
    %157 = vector.shape_cast %148 : vector<16x1xi1> to vector<16x1xi1>
    %158 = vector.broadcast %157 : vector<16x1xi1> to vector<16x256xi1>
    %159 = vector.broadcast %cst_43 : f32 to vector<16x256xf32>
    %160 = arith.select %158, %159, %156 : vector<16x256xi1>, vector<16x256xf32>
    %161 = tpu.concatenate %154, %109, %110, %160 in 1 : vector<16x256xf32>, vector<16x256xf32>, vector<16x256xf32>, vector<16x256xf32> -> vector<16x1024xf32>
    %162 = arith.truncf %161 : vector<16x1024xf32> to vector<16x1024xbf16>
    %c0_i32_44 = arith.constant 0 : i32
    %163 = tpu.memref_slice %arg20[%c0_i32_44] : memref<3x!tpu.dma_semaphore, #tpu.memory_space<semaphore_mem>> -> memref<1x!tpu.dma_semaphore, #tpu.memory_space<semaphore_mem>>
    %164 = tpu.memref_squeeze %163 : memref<1x!tpu.dma_semaphore, #tpu.memory_space<semaphore_mem>> -> memref<!tpu.dma_semaphore, #tpu.memory_space<semaphore_mem>>
    tpu.wait_dma2 semaphore(%164 : memref<!tpu.dma_semaphore, #tpu.memory_space<semaphore_mem>>) src(%arg13 : memref<1024x256xbf16, #tpu.memory_space<any>>) dst(%arg17 : memref<1024x256xbf16, #tpu.memory_space<vmem>>)
    %c0_45 = arith.constant 0 : index
    %c0_46 = arith.constant 0 : index
    %165 = vector.load %arg17[%c0_45, %c0_46] : memref<1024x256xbf16, #tpu.memory_space<vmem>>, vector<1024x256xbf16>
    %cst_47 = arith.constant dense<0.000000e+00> : vector<16x256xf32>
    %166 = tpu.matmul %162, %165, %cst_47 {dimension_numbers = #tpu.dot_dimension_numbers<[1], [0], [0], [1], [0, 0, 1, 1], [], []>} : vector<16x1024xbf16>, vector<1024x256xbf16>, vector<16x256xf32> -> vector<16x256xf32>
    %cst_48 = arith.constant dense<0.000000e+00> : vector<256xf32>
    %167 = vector.multi_reduction <add>, %166, %cst_48 [0] : vector<16x256xf32> to vector<256xf32>
    %168 = vector.shape_cast %167 : vector<256xf32> to vector<1x256xf32>
    %169 = arith.mulf %166, %166 : vector<16x256xf32>
    %cst_49 = arith.constant dense<0.000000e+00> : vector<256xf32>
    %170 = vector.multi_reduction <add>, %169, %cst_49 [0] : vector<16x256xf32> to vector<256xf32>
    %171 = vector.shape_cast %170 : vector<256xf32> to vector<1x256xf32>
    %172 = tpu.concatenate %168, %171 in 0 : vector<1x256xf32>, vector<1x256xf32> -> vector<2x256xf32>
    %173 = vector.extract_strided_slice %172 {offsets = [0, 0], sizes = [2, 128], strides = [1, 1]} : vector<2x256xf32> to vector<2x128xf32>
    %174 = vector.extract_strided_slice %172 {offsets = [0, 128], sizes = [2, 128], strides = [1, 1]} : vector<2x256xf32> to vector<2x128xf32>
    %175 = arith.addf %173, %174 : vector<2x128xf32>
    %176 = vector.extract_strided_slice %175 {offsets = [0, 0], sizes = [2, 64], strides = [1, 1]} : vector<2x128xf32> to vector<2x64xf32>
    %177 = vector.extract_strided_slice %175 {offsets = [0, 64], sizes = [2, 64], strides = [1, 1]} : vector<2x128xf32> to vector<2x64xf32>
    %178 = arith.addf %176, %177 : vector<2x64xf32>
    %179 = vector.extract_strided_slice %178 {offsets = [0, 0], sizes = [2, 32], strides = [1, 1]} : vector<2x64xf32> to vector<2x32xf32>
    %180 = vector.extract_strided_slice %178 {offsets = [0, 32], sizes = [2, 32], strides = [1, 1]} : vector<2x64xf32> to vector<2x32xf32>
    %181 = arith.addf %179, %180 : vector<2x32xf32>
    %182 = vector.extract_strided_slice %181 {offsets = [0, 0], sizes = [1, 32], strides = [1, 1]} : vector<2x32xf32> to vector<1x32xf32>
    %cst_50 = arith.constant 1.280000e+02 : f32
    %183 = vector.broadcast %cst_50 : f32 to vector<1x32xf32>
    %184 = arith.divf %182, %183 : vector<1x32xf32>
    %185 = vector.extract_strided_slice %181 {offsets = [1, 0], sizes = [1, 32], strides = [1, 1]} : vector<2x32xf32> to vector<1x32xf32>
    %cst_51 = arith.constant 1.280000e+02 : f32
    %186 = vector.broadcast %cst_51 : f32 to vector<1x32xf32>
    %187 = arith.divf %185, %186 : vector<1x32xf32>
    %188 = arith.mulf %184, %184 : vector<1x32xf32>
    %189 = arith.subf %187, %188 : vector<1x32xf32>
    %cst_52 = arith.constant 0.000000e+00 : f32
    %190 = vector.broadcast %cst_52 : f32 to vector<1x32xf32>
    %191 = arith.maximumf %189, %190 : vector<1x32xf32>
    %c0_53 = arith.constant 0 : index
    %c0_54 = arith.constant 0 : index
    %192 = vector.load %arg4[%c0_53, %c0_54] : memref<1x32xf32, #tpu.memory_space<vmem>>, vector<1x32xf32>
    %cst_55 = arith.constant 9.99999974E-6 : f32
    %193 = vector.broadcast %cst_55 : f32 to vector<1x32xf32>
    %194 = arith.addf %191, %193 : vector<1x32xf32>
    %195 = math.rsqrt %194 : vector<1x32xf32>
    %196 = arith.mulf %192, %195 : vector<1x32xf32>
    %c0_56 = arith.constant 0 : index
    %c0_57 = arith.constant 0 : index
    %197 = vector.load %arg5[%c0_56, %c0_57] : memref<1x32xf32, #tpu.memory_space<vmem>>, vector<1x32xf32>
    %198 = arith.mulf %184, %196 : vector<1x32xf32>
    %199 = arith.subf %197, %198 : vector<1x32xf32>
    %200 = tpu.concatenate %196, %196, %196, %196, %196, %196, %196, %196 in 1 : vector<1x32xf32>, vector<1x32xf32>, vector<1x32xf32>, vector<1x32xf32>, vector<1x32xf32>, vector<1x32xf32>, vector<1x32xf32>, vector<1x32xf32> -> vector<1x256xf32>
    %201 = tpu.concatenate %199, %199, %199, %199, %199, %199, %199, %199 in 1 : vector<1x32xf32>, vector<1x32xf32>, vector<1x32xf32>, vector<1x32xf32>, vector<1x32xf32>, vector<1x32xf32>, vector<1x32xf32>, vector<1x32xf32> -> vector<1x256xf32>
    %202 = vector.broadcast %200 : vector<1x256xf32> to vector<16x256xf32>
    %203 = arith.mulf %166, %202 : vector<16x256xf32>
    %204 = vector.broadcast %201 : vector<1x256xf32> to vector<16x256xf32>
    %205 = arith.addf %203, %204 : vector<16x256xf32>
    %cst_58 = arith.constant 0.000000e+00 : f32
    %206 = vector.broadcast %cst_58 : f32 to vector<16x256xf32>
    %207 = arith.maximumf %205, %206 : vector<16x256xf32>
    %208 = vector.shape_cast %207 : vector<16x256xf32> to vector<8x512xf32>
    %209 = vector.extract_strided_slice %208 {offsets = [0, 0], sizes = [8, 256], strides = [1, 1]} : vector<8x512xf32> to vector<8x256xf32>
    %210 = vector.extract_strided_slice %208 {offsets = [0, 256], sizes = [8, 256], strides = [1, 1]} : vector<8x512xf32> to vector<8x256xf32>
    %cst_59 = arith.constant 0.000000e+00 : f32
    %211 = vector.broadcast %cst_59 : f32 to vector<1x256xf32>
    %212 = tpu.iota {dimensions = array<i32: 0>} : vector<8x1xi32>
    %c4_i32 = arith.constant 4 : i32
    %c0_i32_60 = arith.constant 0 : i32
    %213 = arith.cmpi eq, %c4_i32, %c0_i32_60 : i32
    %c1_i32_61 = arith.constant 1 : i32
    %214 = arith.select %213, %c1_i32_61, %c4_i32 : i32
    %215 = vector.broadcast %214 : i32 to vector<8x1xi32>
    %216 = arith.remsi %212, %215 : vector<8x1xi32>
    %c0_i32_62 = arith.constant 0 : i32
    %217 = vector.broadcast %c0_i32_62 : i32 to vector<8x1xi32>
    %218 = arith.cmpi ne, %216, %217 : vector<8x1xi32>
    %c0_i32_63 = arith.constant 0 : i32
    %219 = vector.broadcast %c0_i32_63 : i32 to vector<8x1xi32>
    %220 = arith.cmpi slt, %216, %219 : vector<8x1xi32>
    %c0_i32_64 = arith.constant 0 : i32
    %221 = arith.cmpi slt, %214, %c0_i32_64 : i32
    %222 = vector.broadcast %221 : i1 to vector<8x1xi1>
    %223 = vector.broadcast %222 : vector<8x1xi1> to vector<8x1xi1>
    %224 = arith.xori %220, %223 : vector<8x1xi1>
    %225 = arith.andi %224, %218 : vector<8x1xi1>
    %226 = vector.broadcast %214 : i32 to vector<8x1xi32>
    %227 = arith.addi %216, %226 : vector<8x1xi32>
    %228 = arith.select %225, %227, %216 : vector<8x1xi1>, vector<8x1xi32>
    %c0_i32_65 = arith.constant 0 : i32
    %229 = vector.broadcast %c0_i32_65 : i32 to vector<8x1xi32>
    %230 = arith.cmpi eq, %228, %229 : vector<8x1xi32>
    %c4_i32_66 = arith.constant 4 : i32
    %c0_i32_67 = arith.constant 0 : i32
    %231 = arith.cmpi eq, %c4_i32_66, %c0_i32_67 : i32
    %c1_i32_68 = arith.constant 1 : i32
    %232 = arith.select %231, %c1_i32_68, %c4_i32_66 : i32
    %233 = vector.broadcast %232 : i32 to vector<8x1xi32>
    %234 = arith.remsi %212, %233 : vector<8x1xi32>
    %c0_i32_69 = arith.constant 0 : i32
    %235 = vector.broadcast %c0_i32_69 : i32 to vector<8x1xi32>
    %236 = arith.cmpi ne, %234, %235 : vector<8x1xi32>
    %c0_i32_70 = arith.constant 0 : i32
    %237 = vector.broadcast %c0_i32_70 : i32 to vector<8x1xi32>
    %238 = arith.cmpi slt, %234, %237 : vector<8x1xi32>
    %c0_i32_71 = arith.constant 0 : i32
    %239 = arith.cmpi slt, %232, %c0_i32_71 : i32
    %240 = vector.broadcast %239 : i1 to vector<8x1xi1>
    %241 = vector.broadcast %240 : vector<8x1xi1> to vector<8x1xi1>
    %242 = arith.xori %238, %241 : vector<8x1xi1>
    %243 = arith.andi %242, %236 : vector<8x1xi1>
    %244 = vector.broadcast %232 : i32 to vector<8x1xi32>
    %245 = arith.addi %234, %244 : vector<8x1xi32>
    %246 = arith.select %243, %245, %234 : vector<8x1xi1>, vector<8x1xi32>
    %c3_i32 = arith.constant 3 : i32
    %247 = vector.broadcast %c3_i32 : i32 to vector<8x1xi32>
    %248 = arith.cmpi eq, %246, %247 : vector<8x1xi32>
    %249 = vector.extract_strided_slice %210 {offsets = [0, 0], sizes = [7, 256], strides = [1, 1]} : vector<8x256xf32> to vector<7x256xf32>
    %250 = tpu.concatenate %211, %249 in 0 : vector<1x256xf32>, vector<7x256xf32> -> vector<8x256xf32>
    %cst_72 = arith.constant 0.000000e+00 : f32
    %251 = vector.shape_cast %230 : vector<8x1xi1> to vector<8x1xi1>
    %252 = vector.broadcast %251 : vector<8x1xi1> to vector<8x256xi1>
    %253 = vector.broadcast %cst_72 : f32 to vector<8x256xf32>
    %254 = arith.select %252, %253, %250 : vector<8x256xi1>, vector<8x256xf32>
    %255 = vector.extract_strided_slice %209 {offsets = [1, 0], sizes = [7, 256], strides = [1, 1]} : vector<8x256xf32> to vector<7x256xf32>
    %256 = tpu.concatenate %255, %211 in 0 : vector<7x256xf32>, vector<1x256xf32> -> vector<8x256xf32>
    %cst_73 = arith.constant 0.000000e+00 : f32
    %257 = vector.shape_cast %248 : vector<8x1xi1> to vector<8x1xi1>
    %258 = vector.broadcast %257 : vector<8x1xi1> to vector<8x256xi1>
    %259 = vector.broadcast %cst_73 : f32 to vector<8x256xf32>
    %260 = arith.select %258, %259, %256 : vector<8x256xi1>, vector<8x256xf32>
    %261 = tpu.concatenate %254, %209, %210, %260 in 1 : vector<8x256xf32>, vector<8x256xf32>, vector<8x256xf32>, vector<8x256xf32> -> vector<8x1024xf32>
    %262 = arith.truncf %261 : vector<8x1024xf32> to vector<8x1024xbf16>
    %c1_i32_74 = arith.constant 1 : i32
    %263 = tpu.memref_slice %arg20[%c1_i32_74] : memref<3x!tpu.dma_semaphore, #tpu.memory_space<semaphore_mem>> -> memref<1x!tpu.dma_semaphore, #tpu.memory_space<semaphore_mem>>
    %264 = tpu.memref_squeeze %263 : memref<1x!tpu.dma_semaphore, #tpu.memory_space<semaphore_mem>> -> memref<!tpu.dma_semaphore, #tpu.memory_space<semaphore_mem>>
    tpu.wait_dma2 semaphore(%264 : memref<!tpu.dma_semaphore, #tpu.memory_space<semaphore_mem>>) src(%arg14 : memref<1024x256xbf16, #tpu.memory_space<any>>) dst(%arg18 : memref<1024x256xbf16, #tpu.memory_space<vmem>>)
    %c0_75 = arith.constant 0 : index
    %c0_76 = arith.constant 0 : index
    %265 = vector.load %arg18[%c0_75, %c0_76] : memref<1024x256xbf16, #tpu.memory_space<vmem>>, vector<1024x256xbf16>
    %cst_77 = arith.constant dense<0.000000e+00> : vector<8x256xf32>
    %266 = tpu.matmul %262, %265, %cst_77 {dimension_numbers = #tpu.dot_dimension_numbers<[1], [0], [0], [1], [0, 0, 1, 1], [], []>} : vector<8x1024xbf16>, vector<1024x256xbf16>, vector<8x256xf32> -> vector<8x256xf32>
    %cst_78 = arith.constant dense<0.000000e+00> : vector<256xf32>
    %267 = vector.multi_reduction <add>, %266, %cst_78 [0] : vector<8x256xf32> to vector<256xf32>
    %268 = vector.shape_cast %267 : vector<256xf32> to vector<1x256xf32>
    %269 = arith.mulf %266, %266 : vector<8x256xf32>
    %cst_79 = arith.constant dense<0.000000e+00> : vector<256xf32>
    %270 = vector.multi_reduction <add>, %269, %cst_79 [0] : vector<8x256xf32> to vector<256xf32>
    %271 = vector.shape_cast %270 : vector<256xf32> to vector<1x256xf32>
    %272 = tpu.concatenate %268, %271 in 0 : vector<1x256xf32>, vector<1x256xf32> -> vector<2x256xf32>
    %273 = vector.extract_strided_slice %272 {offsets = [0, 0], sizes = [2, 128], strides = [1, 1]} : vector<2x256xf32> to vector<2x128xf32>
    %274 = vector.extract_strided_slice %272 {offsets = [0, 128], sizes = [2, 128], strides = [1, 1]} : vector<2x256xf32> to vector<2x128xf32>
    %275 = arith.addf %273, %274 : vector<2x128xf32>
    %276 = vector.extract_strided_slice %275 {offsets = [0, 0], sizes = [2, 64], strides = [1, 1]} : vector<2x128xf32> to vector<2x64xf32>
    %277 = vector.extract_strided_slice %275 {offsets = [0, 64], sizes = [2, 64], strides = [1, 1]} : vector<2x128xf32> to vector<2x64xf32>
    %278 = arith.addf %276, %277 : vector<2x64xf32>
    %279 = vector.extract_strided_slice %278 {offsets = [0, 0], sizes = [1, 64], strides = [1, 1]} : vector<2x64xf32> to vector<1x64xf32>
    %cst_80 = arith.constant 3.200000e+01 : f32
    %280 = vector.broadcast %cst_80 : f32 to vector<1x64xf32>
    %281 = arith.divf %279, %280 : vector<1x64xf32>
    %282 = vector.extract_strided_slice %278 {offsets = [1, 0], sizes = [1, 64], strides = [1, 1]} : vector<2x64xf32> to vector<1x64xf32>
    %cst_81 = arith.constant 3.200000e+01 : f32
    %283 = vector.broadcast %cst_81 : f32 to vector<1x64xf32>
    %284 = arith.divf %282, %283 : vector<1x64xf32>
    %285 = arith.mulf %281, %281 : vector<1x64xf32>
    %286 = arith.subf %284, %285 : vector<1x64xf32>
    %cst_82 = arith.constant 0.000000e+00 : f32
    %287 = vector.broadcast %cst_82 : f32 to vector<1x64xf32>
    %288 = arith.maximumf %286, %287 : vector<1x64xf32>
    %c0_83 = arith.constant 0 : index
    %c0_84 = arith.constant 0 : index
    %289 = vector.load %arg6[%c0_83, %c0_84] : memref<1x64xf32, #tpu.memory_space<vmem>>, vector<1x64xf32>
    %cst_85 = arith.constant 9.99999974E-6 : f32
    %290 = vector.broadcast %cst_85 : f32 to vector<1x64xf32>
    %291 = arith.addf %288, %290 : vector<1x64xf32>
    %292 = math.rsqrt %291 : vector<1x64xf32>
    %293 = arith.mulf %289, %292 : vector<1x64xf32>
    %c0_86 = arith.constant 0 : index
    %c0_87 = arith.constant 0 : index
    %294 = vector.load %arg7[%c0_86, %c0_87] : memref<1x64xf32, #tpu.memory_space<vmem>>, vector<1x64xf32>
    %295 = arith.mulf %281, %293 : vector<1x64xf32>
    %296 = arith.subf %294, %295 : vector<1x64xf32>
    %297 = tpu.concatenate %293, %293, %293, %293 in 1 : vector<1x64xf32>, vector<1x64xf32>, vector<1x64xf32>, vector<1x64xf32> -> vector<1x256xf32>
    %298 = tpu.concatenate %296, %296, %296, %296 in 1 : vector<1x64xf32>, vector<1x64xf32>, vector<1x64xf32>, vector<1x64xf32> -> vector<1x256xf32>
    %299 = vector.broadcast %297 : vector<1x256xf32> to vector<8x256xf32>
    %300 = arith.mulf %266, %299 : vector<8x256xf32>
    %301 = vector.broadcast %298 : vector<1x256xf32> to vector<8x256xf32>
    %302 = arith.addf %300, %301 : vector<8x256xf32>
    %cst_88 = arith.constant 0.000000e+00 : f32
    %303 = vector.broadcast %cst_88 : f32 to vector<8x256xf32>
    %304 = arith.maximumf %302, %303 : vector<8x256xf32>
    %305 = vector.shape_cast %304 : vector<8x256xf32> to vector<4x512xf32>
    %306 = vector.extract_strided_slice %305 {offsets = [0, 0], sizes = [4, 256], strides = [1, 1]} : vector<4x512xf32> to vector<4x256xf32>
    %307 = vector.extract_strided_slice %305 {offsets = [0, 256], sizes = [4, 256], strides = [1, 1]} : vector<4x512xf32> to vector<4x256xf32>
    %cst_89 = arith.constant 0.000000e+00 : f32
    %308 = vector.broadcast %cst_89 : f32 to vector<1x256xf32>
    %309 = tpu.iota {dimensions = array<i32: 0>} : vector<4x1xi32>
    %c2_i32_90 = arith.constant 2 : i32
    %c0_i32_91 = arith.constant 0 : i32
    %310 = arith.cmpi eq, %c2_i32_90, %c0_i32_91 : i32
    %c1_i32_92 = arith.constant 1 : i32
    %311 = arith.select %310, %c1_i32_92, %c2_i32_90 : i32
    %312 = vector.broadcast %311 : i32 to vector<4x1xi32>
    %313 = arith.remsi %309, %312 : vector<4x1xi32>
    %c0_i32_93 = arith.constant 0 : i32
    %314 = vector.broadcast %c0_i32_93 : i32 to vector<4x1xi32>
    %315 = arith.cmpi ne, %313, %314 : vector<4x1xi32>
    %c0_i32_94 = arith.constant 0 : i32
    %316 = vector.broadcast %c0_i32_94 : i32 to vector<4x1xi32>
    %317 = arith.cmpi slt, %313, %316 : vector<4x1xi32>
    %c0_i32_95 = arith.constant 0 : i32
    %318 = arith.cmpi slt, %311, %c0_i32_95 : i32
    %319 = vector.broadcast %318 : i1 to vector<4x1xi1>
    %320 = vector.broadcast %319 : vector<4x1xi1> to vector<4x1xi1>
    %321 = arith.xori %317, %320 : vector<4x1xi1>
    %322 = arith.andi %321, %315 : vector<4x1xi1>
    %323 = vector.broadcast %311 : i32 to vector<4x1xi32>
    %324 = arith.addi %313, %323 : vector<4x1xi32>
    %325 = arith.select %322, %324, %313 : vector<4x1xi1>, vector<4x1xi32>
    %c0_i32_96 = arith.constant 0 : i32
    %326 = vector.broadcast %c0_i32_96 : i32 to vector<4x1xi32>
    %327 = arith.cmpi eq, %325, %326 : vector<4x1xi32>
    %c2_i32_97 = arith.constant 2 : i32
    %c0_i32_98 = arith.constant 0 : i32
    %328 = arith.cmpi eq, %c2_i32_97, %c0_i32_98 : i32
    %c1_i32_99 = arith.constant 1 : i32
    %329 = arith.select %328, %c1_i32_99, %c2_i32_97 : i32
    %330 = vector.broadcast %329 : i32 to vector<4x1xi32>
    %331 = arith.remsi %309, %330 : vector<4x1xi32>
    %c0_i32_100 = arith.constant 0 : i32
    %332 = vector.broadcast %c0_i32_100 : i32 to vector<4x1xi32>
    %333 = arith.cmpi ne, %331, %332 : vector<4x1xi32>
    %c0_i32_101 = arith.constant 0 : i32
    %334 = vector.broadcast %c0_i32_101 : i32 to vector<4x1xi32>
    %335 = arith.cmpi slt, %331, %334 : vector<4x1xi32>
    %c0_i32_102 = arith.constant 0 : i32
    %336 = arith.cmpi slt, %329, %c0_i32_102 : i32
    %337 = vector.broadcast %336 : i1 to vector<4x1xi1>
    %338 = vector.broadcast %337 : vector<4x1xi1> to vector<4x1xi1>
    %339 = arith.xori %335, %338 : vector<4x1xi1>
    %340 = arith.andi %339, %333 : vector<4x1xi1>
    %341 = vector.broadcast %329 : i32 to vector<4x1xi32>
    %342 = arith.addi %331, %341 : vector<4x1xi32>
    %343 = arith.select %340, %342, %331 : vector<4x1xi1>, vector<4x1xi32>
    %c1_i32_103 = arith.constant 1 : i32
    %344 = vector.broadcast %c1_i32_103 : i32 to vector<4x1xi32>
    %345 = arith.cmpi eq, %343, %344 : vector<4x1xi32>
    %346 = vector.extract_strided_slice %307 {offsets = [0, 0], sizes = [3, 256], strides = [1, 1]} : vector<4x256xf32> to vector<3x256xf32>
    %347 = tpu.concatenate %308, %346 in 0 : vector<1x256xf32>, vector<3x256xf32> -> vector<4x256xf32>
    %cst_104 = arith.constant 0.000000e+00 : f32
    %348 = vector.shape_cast %327 : vector<4x1xi1> to vector<4x1xi1>
    %349 = vector.broadcast %348 : vector<4x1xi1> to vector<4x256xi1>
    %350 = vector.broadcast %cst_104 : f32 to vector<4x256xf32>
    %351 = arith.select %349, %350, %347 : vector<4x256xi1>, vector<4x256xf32>
    %352 = vector.extract_strided_slice %306 {offsets = [1, 0], sizes = [3, 256], strides = [1, 1]} : vector<4x256xf32> to vector<3x256xf32>
    %353 = tpu.concatenate %352, %308 in 0 : vector<3x256xf32>, vector<1x256xf32> -> vector<4x256xf32>
    %cst_105 = arith.constant 0.000000e+00 : f32
    %354 = vector.shape_cast %345 : vector<4x1xi1> to vector<4x1xi1>
    %355 = vector.broadcast %354 : vector<4x1xi1> to vector<4x256xi1>
    %356 = vector.broadcast %cst_105 : f32 to vector<4x256xf32>
    %357 = arith.select %355, %356, %353 : vector<4x256xi1>, vector<4x256xf32>
    %358 = tpu.concatenate %351, %306, %307, %357 in 1 : vector<4x256xf32>, vector<4x256xf32>, vector<4x256xf32>, vector<4x256xf32> -> vector<4x1024xf32>
    %359 = arith.truncf %358 : vector<4x1024xf32> to vector<4x1024xbf16>
    %c2_i32_106 = arith.constant 2 : i32
    %360 = tpu.memref_slice %arg20[%c2_i32_106] : memref<3x!tpu.dma_semaphore, #tpu.memory_space<semaphore_mem>> -> memref<1x!tpu.dma_semaphore, #tpu.memory_space<semaphore_mem>>
    %361 = tpu.memref_squeeze %360 : memref<1x!tpu.dma_semaphore, #tpu.memory_space<semaphore_mem>> -> memref<!tpu.dma_semaphore, #tpu.memory_space<semaphore_mem>>
    tpu.wait_dma2 semaphore(%361 : memref<!tpu.dma_semaphore, #tpu.memory_space<semaphore_mem>>) src(%arg15 : memref<1024x256xbf16, #tpu.memory_space<any>>) dst(%arg19 : memref<1024x256xbf16, #tpu.memory_space<vmem>>)
    %c0_107 = arith.constant 0 : index
    %c0_108 = arith.constant 0 : index
    %362 = vector.load %arg19[%c0_107, %c0_108] : memref<1024x256xbf16, #tpu.memory_space<vmem>>, vector<1024x256xbf16>
    %cst_109 = arith.constant dense<0.000000e+00> : vector<4x256xf32>
    %363 = tpu.matmul %359, %362, %cst_109 {dimension_numbers = #tpu.dot_dimension_numbers<[1], [0], [0], [1], [0, 0, 1, 1], [], []>} : vector<4x1024xbf16>, vector<1024x256xbf16>, vector<4x256xf32> -> vector<4x256xf32>
    %cst_110 = arith.constant dense<0.000000e+00> : vector<256xf32>
    %364 = vector.multi_reduction <add>, %363, %cst_110 [0] : vector<4x256xf32> to vector<256xf32>
    %365 = vector.shape_cast %364 : vector<256xf32> to vector<1x256xf32>
    %366 = arith.mulf %363, %363 : vector<4x256xf32>
    %cst_111 = arith.constant dense<0.000000e+00> : vector<256xf32>
    %367 = vector.multi_reduction <add>, %366, %cst_111 [0] : vector<4x256xf32> to vector<256xf32>
    %368 = vector.shape_cast %367 : vector<256xf32> to vector<1x256xf32>
    %369 = tpu.concatenate %365, %368 in 0 : vector<1x256xf32>, vector<1x256xf32> -> vector<2x256xf32>
    %370 = vector.extract_strided_slice %369 {offsets = [0, 0], sizes = [2, 128], strides = [1, 1]} : vector<2x256xf32> to vector<2x128xf32>
    %371 = vector.extract_strided_slice %369 {offsets = [0, 128], sizes = [2, 128], strides = [1, 1]} : vector<2x256xf32> to vector<2x128xf32>
    %372 = arith.addf %370, %371 : vector<2x128xf32>
    %373 = vector.extract_strided_slice %372 {offsets = [0, 0], sizes = [1, 128], strides = [1, 1]} : vector<2x128xf32> to vector<1x128xf32>
    %cst_112 = arith.constant 8.000000e+00 : f32
    %374 = vector.broadcast %cst_112 : f32 to vector<1x128xf32>
    %375 = arith.divf %373, %374 : vector<1x128xf32>
    %376 = vector.extract_strided_slice %372 {offsets = [1, 0], sizes = [1, 128], strides = [1, 1]} : vector<2x128xf32> to vector<1x128xf32>
    %cst_113 = arith.constant 8.000000e+00 : f32
    %377 = vector.broadcast %cst_113 : f32 to vector<1x128xf32>
    %378 = arith.divf %376, %377 : vector<1x128xf32>
    %379 = arith.mulf %375, %375 : vector<1x128xf32>
    %380 = arith.subf %378, %379 : vector<1x128xf32>
    %cst_114 = arith.constant 0.000000e+00 : f32
    %381 = vector.broadcast %cst_114 : f32 to vector<1x128xf32>
    %382 = arith.maximumf %380, %381 : vector<1x128xf32>
    %c0_115 = arith.constant 0 : index
    %c0_116 = arith.constant 0 : index
    %383 = vector.load %arg8[%c0_115, %c0_116] : memref<1x128xf32, #tpu.memory_space<vmem>>, vector<1x128xf32>
    %cst_117 = arith.constant 9.99999974E-6 : f32
    %384 = vector.broadcast %cst_117 : f32 to vector<1x128xf32>
    %385 = arith.addf %382, %384 : vector<1x128xf32>
    %386 = math.rsqrt %385 : vector<1x128xf32>
    %387 = arith.mulf %383, %386 : vector<1x128xf32>
    %c0_118 = arith.constant 0 : index
    %c0_119 = arith.constant 0 : index
    %388 = vector.load %arg9[%c0_118, %c0_119] : memref<1x128xf32, #tpu.memory_space<vmem>>, vector<1x128xf32>
    %389 = arith.mulf %375, %387 : vector<1x128xf32>
    %390 = arith.subf %388, %389 : vector<1x128xf32>
    %391 = tpu.concatenate %387, %387 in 1 : vector<1x128xf32>, vector<1x128xf32> -> vector<1x256xf32>
    %392 = tpu.concatenate %390, %390 in 1 : vector<1x128xf32>, vector<1x128xf32> -> vector<1x256xf32>
    %393 = vector.broadcast %391 : vector<1x256xf32> to vector<4x256xf32>
    %394 = arith.mulf %363, %393 : vector<4x256xf32>
    %395 = vector.broadcast %392 : vector<1x256xf32> to vector<4x256xf32>
    %396 = arith.addf %394, %395 : vector<4x256xf32>
    %cst_120 = arith.constant 0.000000e+00 : f32
    %397 = vector.broadcast %cst_120 : f32 to vector<4x256xf32>
    %398 = arith.maximumf %396, %397 : vector<4x256xf32>
    %399 = vector.shape_cast %398 : vector<4x256xf32> to vector<2x512xf32>
    %400 = arith.truncf %399 : vector<2x512xf32> to vector<2x512xbf16>
    %c0_121 = arith.constant 0 : index
    %c0_122 = arith.constant 0 : index
    %401 = vector.load %arg10[%c0_121, %c0_122] : memref<512x64xbf16, #tpu.memory_space<vmem>>, vector<512x64xbf16>
    %cst_123 = arith.constant dense<0.000000e+00> : vector<2x64xf32>
    %402 = tpu.matmul %400, %401, %cst_123 {dimension_numbers = #tpu.dot_dimension_numbers<[1], [0], [0], [1], [0, 0, 1, 1], [], []>} : vector<2x512xbf16>, vector<512x64xbf16>, vector<2x64xf32> -> vector<2x64xf32>
    %c0_124 = arith.constant 0 : index
    %c0_125 = arith.constant 0 : index
    %403 = vector.load %arg11[%c0_124, %c0_125] : memref<1x64xf32, #tpu.memory_space<vmem>>, vector<1x64xf32>
    %404 = vector.broadcast %403 : vector<1x64xf32> to vector<2x64xf32>
    %405 = arith.addf %402, %404 : vector<2x64xf32>
    %406 = vector.extract_strided_slice %405 {offsets = [0, 0], sizes = [2, 32], strides = [1, 1]} : vector<2x64xf32> to vector<2x32xf32>
    %407 = vector.extract_strided_slice %405 {offsets = [0, 32], sizes = [2, 32], strides = [1, 1]} : vector<2x64xf32> to vector<2x32xf32>
    %cst_126 = arith.constant 0.000000e+00 : f32
    %408 = vector.broadcast %cst_126 : f32 to vector<2x32xf32>
    %409 = arith.maximumf %407, %408 : vector<2x32xf32>
    %410 = math.absf %407 : vector<2x32xf32>
    %cst_127 = arith.constant 0.000000e+00 : f32
    %411 = vector.broadcast %cst_127 : f32 to vector<2x32xf32>
    %412 = arith.subf %411, %410 : vector<2x32xf32>
    %413 = math.exp %412 : vector<2x32xf32>
    %414 = math.log1p %413 : vector<2x32xf32>
    %415 = arith.addf %409, %414 : vector<2x32xf32>
    %c0_128 = arith.constant 0 : index
    %c0_129 = arith.constant 0 : index
    %416 = vector.load %arg12[%c0_128, %c0_129] : memref<2x32xf32, #tpu.memory_space<vmem>>, vector<2x32xf32>
    %417 = arith.mulf %416, %415 : vector<2x32xf32>
    %418 = arith.addf %406, %417 : vector<2x32xf32>
    %c0_130 = arith.constant 0 : index
    %c0_131 = arith.constant 0 : index
    %419 = vector.load %arg16[%c0_130, %c0_131] : memref<2x32xf32, #tpu.memory_space<vmem>>, vector<2x32xf32>
    tpu.vector_store %arg16[%c0_130, %c0_131], %418 {strides = array<i32>} : memref<2x32xf32, #tpu.memory_space<vmem>>, vector<2x32xf32>,
    return
  }
}

</mosaic_0001>

<llo_original>
// kernel: forward.1
$region0: #{forward.1}
  #allocation0 [shape = 'u32[]', space=smem, size = 0x4, offset = 0x4, fixed_abs, tag = 'smem constant byte address 0x4 - core index']
  #allocation1 [shape = 'u32[72,128]{1,0:T(1,128)}', space=vmem, size = 0x9000, scoped, tag = 'internal scratch']
  #allocation2 [shape = 'bf16[1024,256]{1,0:T(8,128)(2,1)}', space=vmem, size = 0x80000, scoped, tag = 'scratch operand']
  #allocation3 [shape = 'bf16[1024,256]{1,0:T(8,128)(2,1)}', space=vmem, size = 0x80000, scoped, tag = 'scratch operand']
  #allocation4 [shape = 'bf16[1024,256]{1,0:T(8,128)(2,1)}', space=vmem, size = 0x80000, scoped, tag = 'scratch operand']
  #allocation5 [shape = 's32[3]{0}', space=sflag, size = 0xc, scoped, tag = 'scratch operand']
  #allocation10 [shape = 's32[]', space=sflag, size = 0x4, offset = 0, fixed_abs, tag = 'sflag constant byte address 0x0 - dummy sync flag']
  #allocation11 [shape = 's32[]', space=sflag, size = 0x4, offset = 0, fixed_abs, tag = 'sflag constant byte address 0x0 - dummy sync flag']
  #allocation12 [shape = 's32[]', space=sflag, size = 0x4, offset = 0, fixed_abs, tag = 'sflag constant byte address 0x0 - dummy sync flag']
  #allocation13 [shape = 'u32[]', space=smem, size = 0x4, offset = 0x44, fixed_abs, tag = 'smem constant byte address 0x44 - assertion arg 0']
  #allocation14 [shape = 'u32[]', space=smem, size = 0x4, offset = 0x48, fixed_abs, tag = 'smem constant byte address 0x48 - assertion arg 1']
  #allocation15 [shape = 's32[]', space=sflag, size = 0x4, offset = 0, fixed_abs, tag = 'sflag constant byte address 0x0 - dummy sync flag']
  #allocation16 [shape = 's32[]', space=sflag, size = 0x4, offset = 0, fixed_abs, tag = 'sflag constant byte address 0x0 - dummy sync flag']
  %s0 = inlined_call_operand.vmem [shape: f32[64,128], index: 0, kind: input, shape index: {}]
  %s1 = inlined_call_operand.hbm [shape: bf16[512,256], index: 1, kind: input, shape index: {}]
  %s2 = inlined_call_operand.vmem [shape: f32[1,16], index: 2, kind: input, shape index: {}]
  %s3 = inlined_call_operand.vmem [shape: f32[1,16], index: 3, kind: input, shape index: {}]
  %s4 = inlined_call_operand.vmem [shape: f32[1,32], index: 4, kind: input, shape index: {}]
  %s5 = inlined_call_operand.vmem [shape: f32[1,32], index: 5, kind: input, shape index: {}]
  %s6 = inlined_call_operand.vmem [shape: f32[1,64], index: 6, kind: input, shape index: {}]
  %s7 = inlined_call_operand.vmem [shape: f32[1,64], index: 7, kind: input, shape index: {}]
  %s8 = inlined_call_operand.vmem [shape: f32[1,128], index: 8, kind: input, shape index: {}]
  %s9 = inlined_call_operand.vmem [shape: f32[1,128], index: 9, kind: input, shape index: {}]
  %s10 = inlined_call_operand.vmem [shape: bf16[512,64], index: 10, kind: input, shape index: {}]
  %s11 = inlined_call_operand.vmem [shape: f32[1,64], index: 11, kind: input, shape index: {}]
  %s12 = inlined_call_operand.vmem [shape: f32[2,32], index: 12, kind: input, shape index: {}]
  %s13 = inlined_call_operand.vmem [shape: bf16[1024,256], index: 13, kind: input, shape index: {}]
  %s14 = inlined_call_operand.hbm [shape: bf16[1024,256], index: 14, kind: input, shape index: {}]
  %s15 = inlined_call_operand.hbm [shape: bf16[1024,256], index: 15, kind: input, shape index: {}]
  %s16 = inlined_call_operand.hbm [shape: f32[2,32], index: 16, kind: output, shape index: {}]
  %s17 = sld [smem:[#allocation0]]
  $region93: #{forward.1} parent=0
    _
  %s19 = ssub.s32 1, %s17
  %s20 = scalar_select 0, %s19, %s17
  $region1: #{forward.1} parent=0
    #allocation6 [shape = 'u8[262144]{0}', space=vmem, size = 0x40000, scoped, tag = 'input window, operand 1, single buffered']
    #allocation7 [shape = 's32[1]{0}', space=sflag, size = 0x4, scoped, tag = 'scoped memory for forward.1']
    #allocation8 [shape = 's32[1]{0}', space=sflag, size = 0x4, scoped, tag = 'scoped memory for forward.1']
    #allocation9 [shape = 'u8[1024]{0}', space=vmem, size = 0x400, scoped, tag = 'output window, operand 0, single buffered']
    %21 = vsyncpa [#allocation7], 0
    %22 = vsyncpa [#allocation8], 0
    // Predicated region
    $region2: #{forward.1} parent=1 // pred_check
      _
    $region3: #{forward.1} parent=1 // pred_check_branch
      %24 = sbr.rel (0) target = $region5
    $region4: #{forward.1} parent=1 // pred_region
      _
    $region5: #{forward.1} parent=1 // pred_fallthru
      _
    // Predicated region
    $region6: #{forward.1} parent=1 // pred_check
      _
    $region7: #{forward.1} parent=1 // pred_check_branch
      %26 = sbr.rel (0) target = $region9
    $region8: #{forward.1} parent=1 // pred_region
      %28 = vsyncadd [#allocation7], 0
      %s29 = sshll.u32 %s1, 4
      %s30 = int_to_ptr.hbm [resolvable:$true] %s29
      %s31 = sshll.u32 [#allocation6], 4
      %s32 = int_to_ptr.vmem [resolvable:$true] %s31
      %37 = dma.hbm_to_vmem [thread:$0]  %s30, 8192, %s32, [#allocation7], 128, 128, 8
    $region9: #{forward.1} parent=1 // pred_fallthru
      _
    // Predicated region
    $region10: #{forward.1} parent=1 // pred_check
      _
    $region11: #{forward.1} parent=1 // pred_check_branch
      %39 = sbr.rel (0) target = $region13
    $region12: #{forward.1} parent=1 // pred_region
      _
    $region13: #{forward.1} parent=1 // pred_fallthru
      _
    // Predicated region
    $region14: #{forward.1} parent=1 // pred_check
      _
    $region15: #{forward.1} parent=1 // pred_check_branch
      %41 = sbr.rel (0) target = $region17
    $region16: #{forward.1} parent=1 // pred_region
      _
    $region17: #{forward.1} parent=1 // pred_fallthru
      _
    // Predicated region
    $region18: #{forward.1} parent=1 // pred_check
      _
    $region19: #{forward.1} parent=1 // pred_check_branch
      %43 = sbr.rel (0) target = $region21
    $region20: #{forward.1} parent=1 // pred_region
      _
    $region21: #{forward.1} parent=1 // pred_fallthru
      _
    // Predicated region
    $region22: #{forward.1} parent=1 // pred_check
      _
    $region23: #{forward.1} parent=1 // pred_check_branch
      %45 = sbr.rel (0) target = $region25
    $region24: #{forward.1} parent=1 // pred_region
      _
    $region25: #{forward.1} parent=1 // pred_fallthru
      _
    // Predicated region
    $region26: #{forward.1} parent=1 // pred_check
      _
    $region27: #{forward.1} parent=1 // pred_check_branch
      %47 = sbr.rel (0) target = $region29
    $region28: #{forward.1} parent=1 // pred_region
      _
    $region29: #{forward.1} parent=1 // pred_fallthru
      _
    // Predicated region
    $region30: #{forward.1} parent=1 // pred_check
      _
    $region31: #{forward.1} parent=1 // pred_check_branch
      %49 = sbr.rel (0) target = $region33
    $region32: #{forward.1} parent=1 // pred_region
      _
    $region33: #{forward.1} parent=1 // pred_fallthru
      _
    // Predicated region
    $region34: #{forward.1} parent=1 // pred_check
      _
    $region35: #{forward.1} parent=1 // pred_check_branch
      %51 = sbr.rel (0) target = $region37
    $region36: #{forward.1} parent=1 // pred_region
      _
    $region37: #{forward.1} parent=1 // pred_fallthru
      _
    // Predicated region
    $region38: #{forward.1} parent=1 // pred_check
      _
    $region39: #{forward.1} parent=1 // pred_check_branch
      %53 = sbr.rel (0) target = $region41
    $region40: #{forward.1} parent=1 // pred_region
      _
    $region41: #{forward.1} parent=1 // pred_fallthru
      _
    // Predicated region
    $region42: #{forward.1} parent=1 // pred_check
      _
    $region43: #{forward.1} parent=1 // pred_check_branch
      %55 = sbr.rel (0) target = $region45
    $region44: #{forward.1} parent=1 // pred_region
      _
    $region45: #{forward.1} parent=1 // pred_fallthru
      _
    // Predicated region
    $region46: #{forward.1} parent=1 // pred_check
      _
    $region47: #{forward.1} parent=1 // pred_check_branch
      %57 = sbr.rel (0) target = $region49
    $region48: #{forward.1} parent=1 // pred_region
      _
    $region49: #{forward.1} parent=1 // pred_fallthru
      _
    // Predicated region
    $region50: #{forward.1} parent=1 // pred_check
      _
    $region51: #{forward.1} parent=1 // pred_check_branch
      %59 = sbr.rel (0) target = $region53
    $region52: #{forward.1} parent=1 // pred_region
      _
    $region53: #{forward.1} parent=1 // pred_fallthru
      _
    // Predicated region
    $region54: #{forward.1} parent=1 // pred_check
      _
    $region55: #{forward.1} parent=1 // pred_check_branch
      %61 = sbr.rel (0) target = $region57
    $region56: #{forward.1} parent=1 // pred_region
      %63 = dma.done [#allocation7], 8192
    $region57: #{forward.1} parent=1 // pred_fallthru
      _
    // Predicated region
    $region58: #{forward.1} parent=1 // pred_check
      _
    $region59: #{forward.1} parent=1 // pred_check_branch
      %65 = sbr.rel (0) target = $region61
    $region60: #{forward.1} parent=1 // pred_region
      loop: start=0, step=1, limit=1
      $region62: #{forward.1} parent=60 // loop_pre_header
        _
      $region63: #{forward.1} parent=60 // loop_header
        %s67 = sphi 0, %s71
        %p68 = scmp.ge.s32.totalorder %s67, 1
        %s72 = sphi %s13, %s13
        %s73 = sphi [#allocation2], [#allocation2]
      $region64: #{forward.1} parent=60 // loop_header_branch
        %70 = sbr.rel (%p68) target = $region68
      $region65: #{forward.1} parent=60 // loop_body
        %v74 = vld [vmem:[%s72] sm:$0xff]
        %75 = vst [vmem:[%s73] sm:$0xff] %v74
        %v76 = vld [vmem:[%s72 + $0x8] sm:$0xff]
        %77 = vst [vmem:[%s73 + $0x8] sm:$0xff] %v76
        %v78 = vld [vmem:[%s72 + $0x10] sm:$0xff]
        %79 = vst [vmem:[%s73 + $0x10] sm:$0xff] %v78
        %v80 = vld [vmem:[%s72 + $0x18] sm:$0xff]
        %81 = vst [vmem:[%s73 + $0x18] sm:$0xff] %v80
        %v82 = vld [vmem:[%s72 + $0x20] sm:$0xff]
        %83 = vst [vmem:[%s73 + $0x20] sm:$0xff] %v82
        %v84 = vld [vmem:[%s72 + $0x28] sm:$0xff]
        %85 = vst [vmem:[%s73 + $0x28] sm:$0xff] %v84
        %v86 = vld [vmem:[%s72 + $0x30] sm:$0xff]
        %87 = vst [vmem:[%s73 + $0x30] sm:$0xff] %v86
        %v88 = vld [vmem:[%s72 + $0x38] sm:$0xff]
        %89 = vst [vmem:[%s73 + $0x38] sm:$0xff] %v88
        %v90 = vld [vmem:[%s72 + $0x40] sm:$0xff]
        %91 = vst [vmem:[%s73 + $0x40] sm:$0xff] %v90
        %v92 = vld [vmem:[%s72 + $0x48] sm:$0xff]
        %93 = vst [vmem:[%s73 + $0x48] sm:$0xff] %v92
        %v94 = vld [vmem:[%s72 + $0x50] sm:$0xff]
        %95 = vst [vmem:[%s73 + $0x50] sm:$0xff] %v94
        %v96 = vld [vmem:[%s72 + $0x58] sm:$0xff]
        %97 = vst [vmem:[%s73 + $0x58] sm:$0xff] %v96
        %v98 = vld [vmem:[%s72 + $0x60] sm:$0xff]
        %99 = vst [vmem:[%s73 + $0x60] sm:$0xff] %v98
        %v100 = vld [vmem:[%s72 + $0x68] sm:$0xff]
        %101 = vst [vmem:[%s73 + $0x68] sm:$0xff] %v100
        %v102 = vld [vmem:[%s72 + $0x70] sm:$0xff]
        %103 = vst [vmem:[%s73 + $0x70] sm:$0xff] %v102
        %v104 = vld [vmem:[%s72 + $0x78] sm:$0xff]
        %105 = vst [vmem:[%s73 + $0x78] sm:$0xff] %v104
        %v106 = vld [vmem:[%s72 + $0x80] sm:$0xff]
        %107 = vst [vmem:[%s73 + $0x80] sm:$0xff] %v106
        %v108 = vld [vmem:[%s72 + $0x88] sm:$0xff]
        %109 = vst [vmem:[%s73 + $0x88] sm:$0xff] %v108
        %v110 = vld [vmem:[%s72 + $0x90] sm:$0xff]
        %111 = vst [vmem:[%s73 + $0x90] sm:$0xff] %v110
        %v112 = vld [vmem:[%s72 + $0x98] sm:$0xff]
        %113 = vst [vmem:[%s73 + $0x98] sm:$0xff] %v112
        %v114 = vld [vmem:[%s72 + $0xa0] sm:$0xff]
        %115 = vst [vmem:[%s73 + $0xa0] sm:$0xff] %v114
        %v116 = vld [vmem:[%s72 + $0xa8] sm:$0xff]
        %117 = vst [vmem:[%s73 + $0xa8] sm:$0xff] %v116
        %v118 = vld [vmem:[%s72 + $0xb0] sm:$0xff]
        %119 = vst [vmem:[%s73 + $0xb0] sm:$0xff] %v118
        %v120 = vld [vmem:[%s72 + $0xb8] sm:$0xff]
        %121 = vst [vmem:[%s73 + $0xb8] sm:$0xff] %v120
        %v122 = vld [vmem:[%s72 + $0xc0] sm:$0xff]
        %123 = vst [vmem:[%s73 + $0xc0] sm:$0xff] %v122
        %v124 = vld [vmem:[%s72 + $0xc8] sm:$0xff]
        %125 = vst [vmem:[%s73 + $0xc8] sm:$0xff] %v124
        %v126 = vld [vmem:[%s72 + $0xd0] sm:$0xff]
        %127 = vst [vmem:[%s73 + $0xd0] sm:$0xff] %v126
        %v128 = vld [vmem:[%s72 + $0xd8] sm:$0xff]
        %129 = vst [vmem:[%s73 + $0xd8] sm:$0xff] %v128
        %v130 = vld [vmem:[%s72 + $0xe0] sm:$0xff]
        %131 = vst [vmem:[%s73 + $0xe0] sm:$0xff] %v130
        %v132 = vld [vmem:[%s72 + $0xe8] sm:$0xff]
        %133 = vst [vmem:[%s73 + $0xe8] sm:$0xff] %v132
        %v134 = vld [vmem:[%s72 + $0xf0] sm:$0xff]
        %135 = vst [vmem:[%s73 + $0xf0] sm:$0xff] %v134
        %v136 = vld [vmem:[%s72 + $0xf8] sm:$0xff]
        %137 = vst [vmem:[%s73 + $0xf8] sm:$0xff] %v136
        %v138 = vld [vmem:[%s72 + $0x100] sm:$0xff]
        %139 = vst [vmem:[%s73 + $0x100] sm:$0xff] %v138
        %v140 = vld [vmem:[%s72 + $0x108] sm:$0xff]
        %141 = vst [vmem:[%s73 + $0x108] sm:$0xff] %v140
        %v142 = vld [vmem:[%s72 + $0x110] sm:$0xff]
        %143 = vst [vmem:[%s73 + $0x110] sm:$0xff] %v142
        %v144 = vld [vmem:[%s72 + $0x118] sm:$0xff]
        %145 = vst [vmem:[%s73 + $0x118] sm:$0xff] %v144
        %v146 = vld [vmem:[%s72 + $0x120] sm:$0xff]
        %147 = vst [vmem:[%s73 + $0x120] sm:$0xff] %v146
        %v148 = vld [vmem:[%s72 + $0x128] sm:$0xff]
        %149 = vst [vmem:[%s73 + $0x128] sm:$0xff] %v148
        %v150 = vld [vmem:[%s72 + $0x130] sm:$0xff]
        %151 = vst [vmem:[%s73 + $0x130] sm:$0xff] %v150
        %v152 = vld [vmem:[%s72 + $0x138] sm:$0xff]
        %153 = vst [vmem:[%s73 + $0x138] sm:$0xff] %v152
        %v154 = vld [vmem:[%s72 + $0x140] sm:$0xff]
        %155 = vst [vmem:[%s73 + $0x140] sm:$0xff] %v154
        %v156 = vld [vmem:[%s72 + $0x148] sm:$0xff]
        %157 = vst [vmem:[%s73 + $0x148] sm:$0xff] %v156
        %v158 = vld [vmem:[%s72 + $0x150] sm:$0xff]
        %159 = vst [vmem:[%s73 + $0x150] sm:$0xff] %v158
        %v160 = vld [vmem:[%s72 + $0x158] sm:$0xff]
        %161 = vst [vmem:[%s73 + $0x158] sm:$0xff] %v160
        %v162 = vld [vmem:[%s72 + $0x160] sm:$0xff]
        %163 = vst [vmem:[%s73 + $0x160] sm:$0xff] %v162
        %v164 = vld [vmem:[%s72 + $0x168] sm:$0xff]
        %165 = vst [vmem:[%s73 + $0x168] sm:$0xff] %v164
        %v166 = vld [vmem:[%s72 + $0x170] sm:$0xff]
        %167 = vst [vmem:[%s73 + $0x170] sm:$0xff] %v166
        %v168 = vld [vmem:[%s72 + $0x178] sm:$0xff]
        %169 = vst [vmem:[%s73 + $0x178] sm:$0xff] %v168
        %v170 = vld [vmem:[%s72 + $0x180] sm:$0xff]
        %171 = vst [vmem:[%s73 + $0x180] sm:$0xff] %v170
        %v172 = vld [vmem:[%s72 + $0x188] sm:$0xff]
        %173 = vst [vmem:[%s73 + $0x188] sm:$0xff] %v172
        %v174 = vld [vmem:[%s72 + $0x190] sm:$0xff]
        %175 = vst [vmem:[%s73 + $0x190] sm:$0xff] %v174
        %v176 = vld [vmem:[%s72 + $0x198] sm:$0xff]
        %177 = vst [vmem:[%s73 + $0x198] sm:$0xff] %v176
        %v178 = vld [vmem:[%s72 + $0x1a0] sm:$0xff]
        %179 = vst [vmem:[%s73 + $0x1a0] sm:$0xff] %v178
        %v180 = vld [vmem:[%s72 + $0x1a8] sm:$0xff]
        %181 = vst [vmem:[%s73 + $0x1a8] sm:$0xff] %v180
        %v182 = vld [vmem:[%s72 + $0x1b0] sm:$0xff]
        %183 = vst [vmem:[%s73 + $0x1b0] sm:$0xff] %v182
        %v184 = vld [vmem:[%s72 + $0x1b8] sm:$0xff]
        %185 = vst [vmem:[%s73 + $0x1b8] sm:$0xff] %v184
        %v186 = vld [vmem:[%s72 + $0x1c0] sm:$0xff]
        %187 = vst [vmem:[%s73 + $0x1c0] sm:$0xff] %v186
        %v188 = vld [vmem:[%s72 + $0x1c8] sm:$0xff]
        %189 = vst [vmem:[%s73 + $0x1c8] sm:$0xff] %v188
        %v190 = vld [vmem:[%s72 + $0x1d0] sm:$0xff]
        %191 = vst [vmem:[%s73 + $0x1d0] sm:$0xff] %v190
        %v192 = vld [vmem:[%s72 + $0x1d8] sm:$0xff]
        %193 = vst [vmem:[%s73 + $0x1d8] sm:$0xff] %v192
        %v194 = vld [vmem:[%s72 + $0x1e0] sm:$0xff]
        %195 = vst [vmem:[%s73 + $0x1e0] sm:$0xff] %v194
        %v196 = vld [vmem:[%s72 + $0x1e8] sm:$0xff]
        %197 = vst [vmem:[%s73 + $0x1e8] sm:$0xff] %v196
        %v198 = vld [vmem:[%s72 + $0x1f0] sm:$0xff]
        %199 = vst [vmem:[%s73 + $0x1f0] sm:$0xff] %v198
        %v200 = vld [vmem:[%s72 + $0x1f8] sm:$0xff]
        %201 = vst [vmem:[%s73 + $0x1f8] sm:$0xff] %v200
        %v202 = vld [vmem:[%s72 + $0x200] sm:$0xff]
        %203 = vst [vmem:[%s73 + $0x200] sm:$0xff] %v202
        %v204 = vld [vmem:[%s72 + $0x208] sm:$0xff]
        %205 = vst [vmem:[%s73 + $0x208] sm:$0xff] %v204
        %v206 = vld [vmem:[%s72 + $0x210] sm:$0xff]
        %207 = vst [vmem:[%s73 + $0x210] sm:$0xff] %v206
        %v208 = vld [vmem:[%s72 + $0x218] sm:$0xff]
        %209 = vst [vmem:[%s73 + $0x218] sm:$0xff] %v208
        %v210 = vld [vmem:[%s72 + $0x220] sm:$0xff]
        %211 = vst [vmem:[%s73 + $0x220] sm:$0xff] %v210
        %v212 = vld [vmem:[%s72 + $0x228] sm:$0xff]
        %213 = vst [vmem:[%s73 + $0x228] sm:$0xff] %v212
        %v214 = vld [vmem:[%s72 + $0x230] sm:$0xff]
        %215 = vst [vmem:[%s73 + $0x230] sm:$0xff] %v214
        %v216 = vld [vmem:[%s72 + $0x238] sm:$0xff]
        %217 = vst [vmem:[%s73 + $0x238] sm:$0xff] %v216
        %v218 = vld [vmem:[%s72 + $0x240] sm:$0xff]
        %219 = vst [vmem:[%s73 + $0x240] sm:$0xff] %v218
        %v220 = vld [vmem:[%s72 + $0x248] sm:$0xff]
        %221 = vst [vmem:[%s73 + $0x248] sm:$0xff] %v220
        %v222 = vld [vmem:[%s72 + $0x250] sm:$0xff]
        %223 = vst [vmem:[%s73 + $0x250] sm:$0xff] %v222
        %v224 = vld [vmem:[%s72 + $0x258] sm:$0xff]
        %225 = vst [vmem:[%s73 + $0x258] sm:$0xff] %v224
        %v226 = vld [vmem:[%s72 + $0x260] sm:$0xff]
        %227 = vst [vmem:[%s73 + $0x260] sm:$0xff] %v226
        %v228 = vld [vmem:[%s72 + $0x268] sm:$0xff]
        %229 = vst [vmem:[%s73 + $0x268] sm:$0xff] %v228
        %v230 = vld [vmem:[%s72 + $0x270] sm:$0xff]
        %231 = vst [vmem:[%s73 + $0x270] sm:$0xff] %v230
        %v232 = vld [vmem:[%s72 + $0x278] sm:$0xff]
        %233 = vst [vmem:[%s73 + $0x278] sm:$0xff] %v232
        %v234 = vld [vmem:[%s72 + $0x280] sm:$0xff]
        %235 = vst [vmem:[%s73 + $0x280] sm:$0xff] %v234
        %v236 = vld [vmem:[%s72 + $0x288] sm:$0xff]
        %237 = vst [vmem:[%s73 + $0x288] sm:$0xff] %v236
        %v238 = vld [vmem:[%s72 + $0x290] sm:$0xff]
        %239 = vst [vmem:[%s73 + $0x290] sm:$0xff] %v238
        %v240 = vld [vmem:[%s72 + $0x298] sm:$0xff]
        %241 = vst [vmem:[%s73 + $0x298] sm:$0xff] %v240
        %v242 = vld [vmem:[%s72 + $0x2a0] sm:$0xff]
        %243 = vst [vmem:[%s73 + $0x2a0] sm:$0xff] %v242
        %v244 = vld [vmem:[%s72 + $0x2a8] sm:$0xff]
        %245 = vst [vmem:[%s73 + $0x2a8] sm:$0xff] %v244
        %v246 = vld [vmem:[%s72 + $0x2b0] sm:$0xff]
        %247 = vst [vmem:[%s73 + $0x2b0] sm:$0xff] %v246
        %v248 = vld [vmem:[%s72 + $0x2b8] sm:$0xff]
        %249 = vst [vmem:[%s73 + $0x2b8] sm:$0xff] %v248
        %v250 = vld [vmem:[%s72 + $0x2c0] sm:$0xff]
        %251 = vst [vmem:[%s73 + $0x2c0] sm:$0xff] %v250
        %v252 = vld [vmem:[%s72 + $0x2c8] sm:$0xff]
        %253 = vst [vmem:[%s73 + $0x2c8] sm:$0xff] %v252
        %v254 = vld [vmem:[%s72 + $0x2d0] sm:$0xff]
        %255 = vst [vmem:[%s73 + $0x2d0] sm:$0xff] %v254
        %v256 = vld [vmem:[%s72 + $0x2d8] sm:$0xff]
        %257 = vst [vmem:[%s73 + $0x2d8] sm:$0xff] %v256
        %v258 = vld [vmem:[%s72 + $0x2e0] sm:$0xff]
        %259 = vst [vmem:[%s73 + $0x2e0] sm:$0xff] %v258
        %v260 = vld [vmem:[%s72 + $0x2e8] sm:$0xff]
        %261 = vst [vmem:[%s73 + $0x2e8] sm:$0xff] %v260
        %v262 = vld [vmem:[%s72 + $0x2f0] sm:$0xff]
        %263 = vst [vmem:[%s73 + $0x2f0] sm:$0xff] %v262
        %v264 = vld [vmem:[%s72 + $0x2f8] sm:$0xff]
        %265 = vst [vmem:[%s73 + $0x2f8] sm:$0xff] %v264
        %v266 = vld [vmem:[%s72 + $0x300] sm:$0xff]
        %267 = vst [vmem:[%s73 + $0x300] sm:$0xff] %v266
        %v268 = vld [vmem:[%s72 + $0x308] sm:$0xff]
        %269 = vst [vmem:[%s73 + $0x308] sm:$0xff] %v268
        %v270 = vld [vmem:[%s72 + $0x310] sm:$0xff]
        %271 = vst [vmem:[%s73 + $0x310] sm:$0xff] %v270
        %v272 = vld [vmem:[%s72 + $0x318] sm:$0xff]
        %273 = vst [vmem:[%s73 + $0x318] sm:$0xff] %v272
        %v274 = vld [vmem:[%s72 + $0x320] sm:$0xff]
        %275 = vst [vmem:[%s73 + $0x320] sm:$0xff] %v274
        %v276 = vld [vmem:[%s72 + $0x328] sm:$0xff]
        %277 = vst [vmem:[%s73 + $0x328] sm:$0xff] %v276
        %v278 = vld [vmem:[%s72 + $0x330] sm:$0xff]
        %279 = vst [vmem:[%s73 + $0x330] sm:$0xff] %v278
        %v280 = vld [vmem:[%s72 + $0x338] sm:$0xff]
        %281 = vst [vmem:[%s73 + $0x338] sm:$0xff] %v280
        %v282 = vld [vmem:[%s72 + $0x340] sm:$0xff]
        %283 = vst [vmem:[%s73 + $0x340] sm:$0xff] %v282
        %v284 = vld [vmem:[%s72 + $0x348] sm:$0xff]
        %285 = vst [vmem:[%s73 + $0x348] sm:$0xff] %v284
        %v286 = vld [vmem:[%s72 + $0x350] sm:$0xff]
        %287 = vst [vmem:[%s73 + $0x350] sm:$0xff] %v286
        %v288 = vld [vmem:[%s72 + $0x358] sm:$0xff]
        %289 = vst [vmem:[%s73 + $0x358] sm:$0xff] %v288
        %v290 = vld [vmem:[%s72 + $0x360] sm:$0xff]
        %291 = vst [vmem:[%s73 + $0x360] sm:$0xff] %v290
        %v292 = vld [vmem:[%s72 + $0x368] sm:$0xff]
        %293 = vst [vmem:[%s73 + $0x368] sm:$0xff] %v292
        %v294 = vld [vmem:[%s72 + $0x370] sm:$0xff]
        %295 = vst [vmem:[%s73 + $0x370] sm:$0xff] %v294
        %v296 = vld [vmem:[%s72 + $0x378] sm:$0xff]
        %297 = vst [vmem:[%s73 + $0x378] sm:$0xff] %v296
        %v298 = vld [vmem:[%s72 + $0x380] sm:$0xff]
        %299 = vst [vmem:[%s73 + $0x380] sm:$0xff] %v298
        %v300 = vld [vmem:[%s72 + $0x388] sm:$0xff]
        %301 = vst [vmem:[%s73 + $0x388] sm:$0xff] %v300
        %v302 = vld [vmem:[%s72 + $0x390] sm:$0xff]
        %303 = vst [vmem:[%s73 + $0x390] sm:$0xff] %v302
        %v304 = vld [vmem:[%s72 + $0x398] sm:$0xff]
        %305 = vst [vmem:[%s73 + $0x398] sm:$0xff] %v304
        %v306 = vld [vmem:[%s72 + $0x3a0] sm:$0xff]
        %307 = vst [vmem:[%s73 + $0x3a0] sm:$0xff] %v306
        %v308 = vld [vmem:[%s72 + $0x3a8] sm:$0xff]
        %309 = vst [vmem:[%s73 + $0x3a8] sm:$0xff] %v308
        %v310 = vld [vmem:[%s72 + $0x3b0] sm:$0xff]
        %311 = vst [vmem:[%s73 + $0x3b0] sm:$0xff] %v310
        %v312 = vld [vmem:[%s72 + $0x3b8] sm:$0xff]
        %313 = vst [vmem:[%s73 + $0x3b8] sm:$0xff] %v312
        %v314 = vld [vmem:[%s72 + $0x3c0] sm:$0xff]
        %315 = vst [vmem:[%s73 + $0x3c0] sm:$0xff] %v314
        %v316 = vld [vmem:[%s72 + $0x3c8] sm:$0xff]
        %317 = vst [vmem:[%s73 + $0x3c8] sm:$0xff] %v316
        %v318 = vld [vmem:[%s72 + $0x3d0] sm:$0xff]
        %319 = vst [vmem:[%s73 + $0x3d0] sm:$0xff] %v318
        %v320 = vld [vmem:[%s72 + $0x3d8] sm:$0xff]
        %321 = vst [vmem:[%s73 + $0x3d8] sm:$0xff] %v320
        %v322 = vld [vmem:[%s72 + $0x3e0] sm:$0xff]
        %323 = vst [vmem:[%s73 + $0x3e0] sm:$0xff] %v322
        %v324 = vld [vmem:[%s72 + $0x3e8] sm:$0xff]
        %325 = vst [vmem:[%s73 + $0x3e8] sm:$0xff] %v324
        %v326 = vld [vmem:[%s72 + $0x3f0] sm:$0xff]
        %327 = vst [vmem:[%s73 + $0x3f0] sm:$0xff] %v326
        %v328 = vld [vmem:[%s72 + $0x3f8] sm:$0xff]
        %329 = vst [vmem:[%s73 + $0x3f8] sm:$0xff] %v328
      $region66: #{forward.1} parent=60 // loop_footer
        %s71 = sadd.s32 1, %s67
      $region67: #{forward.1} parent=60 // loop_footer_branch
        %66 = sbr.rel target = $region63
      $region68: #{forward.1} parent=60 // loop_exit
        _
    $region61: #{forward.1} parent=1 // pred_fallthru
      _
    // Predicated region
    $region69: #{forward.1} parent=1 // pred_check
      _
    $region70: #{forward.1} parent=1 // pred_check_branch
      %331 = sbr.rel target = $region72
    $region71: #{forward.1} parent=1 // pred_region
      _
    $region72: #{forward.1} parent=1 // pred_fallthru
      _
    // Predicated region
    $region73: #{forward.1} parent=1 // pred_check
      _
    $region74: #{forward.1} parent=1 // pred_check_branch
      %334 = sbr.rel (0) target = $region76
    $region75: #{forward.1} parent=1 // pred_region
      %335 = vsyncadd [#allocation5], 16384
    $region76: #{forward.1} parent=1 // pred_fallthru
      _
    %s336 = scalar_lea.sflag [#allocation5], 1
    // Predicated region
    $region77: #{forward.1} parent=1 // pred_check
      _
    $region78: #{forward.1} parent=1 // pred_check_branch
      %338 = sbr.rel target = $region80
    $region79: #{forward.1} parent=1 // pred_region
      %339 = sst [smem:[#allocation13]] [#allocation12]
      %340 = sst [smem:[#allocation14]] [#allocation11]
    $region80: #{forward.1} parent=1 // pred_fallthru
      _
    %342 = shalt.err (0)
    %s344 = sshll.u32 %s14, 4
    %s345 = int_to_ptr.hbm [resolvable:$true] %s344
    %s346 = sshll.u32 [#allocation3], 4
    %s347 = int_to_ptr.vmem [resolvable:$true] %s346
    %349 = dma.hbm_to_vmem [thread:$0]  %s345, 16384, %s347, %s336
    %s350 = scalar_lea.sflag [#allocation5], 2
    // Predicated region
    $region81: #{forward.1} parent=1 // pred_check
      _
    $region82: #{forward.1} parent=1 // pred_check_branch
      %352 = sbr.rel target = $region84
    $region83: #{forward.1} parent=1 // pred_region
      %353 = sst [smem:[#allocation13]] [#allocation16]
      %354 = sst [smem:[#allocation14]] [#allocation15]
    $region84: #{forward.1} parent=1 // pred_fallthru
      _
    %356 = shalt.err (0)
    %s358 = sshll.u32 %s15, 4
    %s359 = int_to_ptr.hbm [resolvable:$true] %s358
    %s360 = sshll.u32 [#allocation4], 4
    %s361 = int_to_ptr.vmem [resolvable:$true] %s360
    %363 = dma.hbm_to_vmem [thread:$0]  %s359, 16384, %s361, %s350
    %v364 = vld [vmem:[%s0] sm:$0xff]
    %v365 = vld [vmem:[%s0 + $0x8] sm:$0xff]
    %v366 = vld [vmem:[%s0 + $0x10] sm:$0xff]
    %v367 = vld [vmem:[%s0 + $0x18] sm:$0xff]
    %v368 = vld [vmem:[%s0 + $0x20] sm:$0xff]
    %v369 = vld [vmem:[%s0 + $0x28] sm:$0xff]
    %v370 = vld [vmem:[%s0 + $0x30] sm:$0xff]
    %v371 = vld [vmem:[%s0 + $0x38] sm:$0xff]
    %v373 = vunpack.c.l.s4 1966171168
    %v374 = vunpack.c.0.s8 %v373
    %v375 = vperm.slane %v364, %v374
    %v377 = vunpack.c.l.s4 1966171168
    %v378 = vunpack.c.0.s8 %v377
    %v379 = vperm.slane %v365, %v378
    %v381 = vunpack.c.l.s4 1966171168
    %v382 = vunpack.c.0.s8 %v381
    %v383 = vperm.slane %v366, %v382
    %v385 = vunpack.c.l.s4 1966171168
    %v386 = vunpack.c.0.s8 %v385
    %v387 = vperm.slane %v367, %v386
    %v389 = vunpack.c.l.s4 1966171168
    %v390 = vunpack.c.0.s8 %v389
    %v391 = vperm.slane %v368, %v390
    %v393 = vunpack.c.l.s4 1966171168
    %v394 = vunpack.c.0.s8 %v393
    %v395 = vperm.slane %v369, %v394
    %v397 = vunpack.c.l.s4 1966171168
    %v398 = vunpack.c.0.s8 %v397
    %v399 = vperm.slane %v370, %v398
    %v401 = vunpack.c.l.s4 1966171168
    %v402 = vunpack.c.0.s8 %v401
    %v403 = vperm.slane %v371, %v402
    %v404 = vlaneseq
    %v405 = vshrl.u32 %v404, 7
    %v406 = vadd.s32 %v405, 8
    %v407 = vadd.s32 %v405, 16
    %v408 = vadd.s32 %v405, 24
    %vm409 = vcmp.lt.s32.totalorder %v405, 0
    %v410 = vsub.s32 0, %v405
    %v411 = vsel %vm409, %v410, %v405
    %v412 = vshrl.u32 %v411, 4
    %v413 = vand.u32 %v411, 15
    %v414 = vsub.s32 0, %v413
    %v415 = vsel %vm409, %v414, %v413
    %vm416 = vcmp.lt.s32.totalorder %v406, 0
    %v417 = vsub.s32 0, %v406
    %v418 = vsel %vm416, %v417, %v406
    %v419 = vshrl.u32 %v418, 4
    %v420 = vand.u32 %v418, 15
    %v421 = vsub.s32 0, %v420
    %v422 = vsel %vm416, %v421, %v420
    %vm423 = vcmp.lt.s32.totalorder %v407, 0
    %v424 = vsub.s32 0, %v407
    %v425 = vsel %vm423, %v424, %v407
    %v426 = vshrl.u32 %v425, 4
    %v427 = vand.u32 %v425, 15
    %v428 = vsub.s32 0, %v427
    %v429 = vsel %vm423, %v428, %v427
    %vm430 = vcmp.lt.s32.totalorder %v408, 0
    %v431 = vsub.s32 0, %v408
    %v432 = vsel %vm430, %v431, %v408
    %v433 = vshrl.u32 %v432, 4
    %v434 = vand.u32 %v432, 15
    %v435 = vsub.s32 0, %v434
    %v436 = vsel %vm430, %v435, %v434
    %vm437 = vcmp.ne.s32.totalorder %v415, 0
    %vm438 = vcmp.ne.s32.totalorder %v422, 0
    %vm439 = vcmp.ne.s32.totalorder %v429, 0
    %vm440 = vcmp.ne.s32.totalorder %v436, 0
    %vm441 = vcmp.lt.s32.totalorder %v415, 0
    %vm442 = vcmp.lt.s32.totalorder %v422, 0
    %vm443 = vcmp.lt.s32.totalorder %v429, 0
    %vm444 = vcmp.lt.s32.totalorder %v436, 0
    %vm445 = vmand %vm441, %vm437
    %vm446 = vmand %vm442, %vm438
    %vm447 = vmand %vm443, %vm439
    %vm448 = vmand %vm444, %vm440
    %v449 = vadd.s32 %v415, 16
    %v450 = vadd.s32 %v422, 16
    %v451 = vadd.s32 %v429, 16
    %v452 = vadd.s32 %v436, 16
    %v453 = vsel %vm445, %v449, %v415
    %v454 = vsel %vm446, %v450, %v422
    %v455 = vsel %vm447, %v451, %v429
    %v456 = vsel %vm448, %v452, %v436
    %vm457 = vcmp.eq.s32.totalorder %v453, 0
    %vm458 = vcmp.eq.s32.totalorder %v454, 0
    %vm459 = vcmp.eq.s32.totalorder %v455, 0
    %vm460 = vcmp.eq.s32.totalorder %v456, 0
    %vm461 = vcmp.eq.s32.totalorder %v453, 15
    %vm462 = vcmp.eq.s32.totalorder %v454, 15
    %vm463 = vcmp.eq.s32.totalorder %v455, 15
    %vm464 = vcmp.eq.s32.totalorder %v456, 15
    %473 = vst [vmem:[#allocation1] ss:$2 sm:$0xff] %v375
    %s474 = scalar_lea.vmem [#allocation1], 1
    %475 = vst [vmem:[%s474] ss:$2 sm:$0xff] %v379
    %s476 = scalar_lea.vmem [#allocation1], 16
    %477 = vst [vmem:[%s476] ss:$2 sm:$0xff] %v383
    %s478 = scalar_lea.vmem [#allocation1], 17
    %479 = vst [vmem:[%s478] ss:$2 sm:$0xff] %v387
    %s480 = scalar_lea.vmem [#allocation1], 32
    %481 = vst [vmem:[%s480] ss:$2 sm:$0xff] %v391
    %s482 = scalar_lea.vmem [#allocation1], 33
    %483 = vst [vmem:[%s482] ss:$2 sm:$0xff] %v395
    %s484 = scalar_lea.vmem [#allocation1], 48
    %485 = vst [vmem:[%s484] ss:$2 sm:$0xff] %v399
    %s486 = scalar_lea.vmem [#allocation1], 49
    %487 = vst [vmem:[%s486] ss:$2 sm:$0xff] %v403
    %v488 = vld.sshfl [vmem:[#allocation1 + $0x8] sm:$0xff pattern:$0x75316420]
    %v489 = vld.sshfl [vmem:[#allocation1 + $0x18] sm:$0xff pattern:$0x75316420]
    %v490 = vld.sshfl [vmem:[#allocation1 + $0x28] sm:$0xff pattern:$0x75316420]
    %v491 = vld.sshfl [vmem:[#allocation1 + $0x38] sm:$0xff pattern:$0x75316420]
    %vm492 = vcmask 1040384
    %v493 = vrot.slane %v488, 7
    %v494 = vrot.slane %v489, 7
    %v495 = vsel %vm492, %v493, %v494
    %v496 = vrot.slane %v490, 7
    %v497 = vsel %vm492, %v494, %v496
    %v498 = vrot.slane %v491, 7
    %v499 = vsel %vm492, %v496, %v498
    %v504 = vsel %vm492, 0.0, %v493
    %v505 = vsel %vm457, 1, 0
    %v506 = vsel %vm458, 1, 0
    %v507 = vsel %vm459, 1, 0
    %v508 = vsel %vm460, 1, 0
    %vm509 = vcmp.eq.s32.totalorder %v505, 1
    %vm510 = vcmp.eq.s32.totalorder %v506, 1
    %vm511 = vcmp.eq.s32.totalorder %v507, 1
    %vm512 = vcmp.eq.s32.totalorder %v508, 1
    %v513 = vsel %vm509, 0.0, %v504
    %v514 = vsel %vm510, 0.0, %v495
    %v515 = vsel %vm511, 0.0, %v497
    %v516 = vsel %vm512, 0.0, %v499
    %517 = vst [vmem:[#allocation1] ss:$2 sm:$0xff] %v375
    %s518 = scalar_lea.vmem [#allocation1], 1
    %519 = vst [vmem:[%s518] ss:$2 sm:$0xff] %v379
    %s520 = scalar_lea.vmem [#allocation1], 16
    %521 = vst [vmem:[%s520] ss:$2 sm:$0xff] %v383
    %s522 = scalar_lea.vmem [#allocation1], 17
    %523 = vst [vmem:[%s522] ss:$2 sm:$0xff] %v387
    %s524 = scalar_lea.vmem [#allocation1], 32
    %525 = vst [vmem:[%s524] ss:$2 sm:$0xff] %v391
    %s526 = scalar_lea.vmem [#allocation1], 33
    %527 = vst [vmem:[%s526] ss:$2 sm:$0xff] %v395
    %s528 = scalar_lea.vmem [#allocation1], 48
    %529 = vst [vmem:[%s528] ss:$2 sm:$0xff] %v399
    %s530 = scalar_lea.vmem [#allocation1], 49
    %531 = vst [vmem:[%s530] ss:$2 sm:$0xff] %v403
    %v532 = vld.sshfl [vmem:[#allocation1] sm:$0xff pattern:$0x75316420]
    %v533 = vld.sshfl [vmem:[#allocation1 + $0x10] sm:$0xff pattern:$0x75316420]
    %v534 = vld.sshfl [vmem:[#allocation1 + $0x20] sm:$0xff pattern:$0x75316420]
    %v535 = vld.sshfl [vmem:[#allocation1 + $0x30] sm:$0xff pattern:$0x75316420]
    %vm536 = vcmask 1046528
    %v537 = vrot.slane %v532, 1
    %v538 = vrot.slane %v533, 1
    %v539 = vsel %vm536, %v537, %v538
    %v540 = vrot.slane %v534, 1
    %v541 = vsel %vm536, %v538, %v540
    %v542 = vrot.slane %v535, 1
    %v543 = vsel %vm536, %v540, %v542
    %v548 = vsel %vm536, %v542, 0.0
    %v549 = vsel %vm461, 1, 0
    %v550 = vsel %vm462, 1, 0
    %v551 = vsel %vm463, 1, 0
    %v552 = vsel %vm464, 1, 0
    %vm553 = vcmp.eq.s32.totalorder %v549, 1
    %vm554 = vcmp.eq.s32.totalorder %v550, 1
    %vm555 = vcmp.eq.s32.totalorder %v551, 1
    %vm556 = vcmp.eq.s32.totalorder %v552, 1
    %v557 = vsel %vm553, 0.0, %v539
    %v558 = vsel %vm554, 0.0, %v541
    %v559 = vsel %vm555, 0.0, %v543
    %v560 = vsel %vm556, 0.0, %v548
    %561 = vst [vmem:[#allocation1] ss:$2 sm:$0xff] %v375
    %s562 = scalar_lea.vmem [#allocation1], 1
    %563 = vst [vmem:[%s562] ss:$2 sm:$0xff] %v379
    %s564 = scalar_lea.vmem [#allocation1], 16
    %565 = vst [vmem:[%s564] ss:$2 sm:$0xff] %v383
    %s566 = scalar_lea.vmem [#allocation1], 17
    %567 = vst [vmem:[%s566] ss:$2 sm:$0xff] %v387
    %s568 = scalar_lea.vmem [#allocation1], 32
    %569 = vst [vmem:[%s568] ss:$2 sm:$0xff] %v391
    %s570 = scalar_lea.vmem [#allocation1], 33
    %571 = vst [vmem:[%s570] ss:$2 sm:$0xff] %v395
    %s572 = scalar_lea.vmem [#allocation1], 48
    %573 = vst [vmem:[%s572] ss:$2 sm:$0xff] %v399
    %s574 = scalar_lea.vmem [#allocation1], 49
    %575 = vst [vmem:[%s574] ss:$2 sm:$0xff] %v403
    %v576 = vld.sshfl [vmem:[#allocation1] sm:$0xff pattern:$0x75316420]
    %v577 = vld.sshfl [vmem:[#allocation1 + $0x10] sm:$0xff pattern:$0x75316420]
    %v578 = vld.sshfl [vmem:[#allocation1 + $0x20] sm:$0xff pattern:$0x75316420]
    %v579 = vld.sshfl [vmem:[#allocation1 + $0x30] sm:$0xff pattern:$0x75316420]
    %584 = vst [vmem:[#allocation1] ss:$2 sm:$0xff] %v375
    %s585 = scalar_lea.vmem [#allocation1], 1
    %586 = vst [vmem:[%s585] ss:$2 sm:$0xff] %v379
    %s587 = scalar_lea.vmem [#allocation1], 16
    %588 = vst [vmem:[%s587] ss:$2 sm:$0xff] %v383
    %s589 = scalar_lea.vmem [#allocation1], 17
    %590 = vst [vmem:[%s589] ss:$2 sm:$0xff] %v387
    %s591 = scalar_lea.vmem [#allocation1], 32
    %592 = vst [vmem:[%s591] ss:$2 sm:$0xff] %v391
    %s593 = scalar_lea.vmem [#allocation1], 33
    %594 = vst [vmem:[%s593] ss:$2 sm:$0xff] %v395
    %s595 = scalar_lea.vmem [#allocation1], 48
    %596 = vst [vmem:[%s595] ss:$2 sm:$0xff] %v399
    %s597 = scalar_lea.vmem [#allocation1], 49
    %598 = vst [vmem:[%s597] ss:$2 sm:$0xff] %v403
    %v599 = vld.sshfl [vmem:[#allocation1 + $0x8] sm:$0xff pattern:$0x75316420]
    %v600 = vld.sshfl [vmem:[#allocation1 + $0x18] sm:$0xff pattern:$0x75316420]
    %v601 = vld.sshfl [vmem:[#allocation1 + $0x28] sm:$0xff pattern:$0x75316420]
    %v602 = vld.sshfl [vmem:[#allocation1 + $0x38] sm:$0xff pattern:$0x75316420]
    %v607 = vpack.c.bf16 %v514, %v513
    %v608 = vpack.c.bf16 %v577, %v576
    %v609 = vpack.c.bf16 %v600, %v599
    %v610 = vpack.c.bf16 %v558, %v557
    %v611 = vpack.c.bf16 %v516, %v515
    %v612 = vpack.c.bf16 %v579, %v578
    %v613 = vpack.c.bf16 %v602, %v601
    %v614 = vpack.c.bf16 %v560, %v559
    %v615 = vld [vmem:[#allocation6] sm:$0xff]
    %v616 = vld [vmem:[#allocation6 + $0x8] sm:$0xff]
    %v617 = vld [vmem:[#allocation6 + $0x10] sm:$0xff]
    %v618 = vld [vmem:[#allocation6 + $0x18] sm:$0xff]
    %v619 = vld [vmem:[#allocation6 + $0x20] sm:$0xff]
    %v620 = vld [vmem:[#allocation6 + $0x28] sm:$0xff]
    %v621 = vld [vmem:[#allocation6 + $0x30] sm:$0xff]
    %v622 = vld [vmem:[#allocation6 + $0x38] sm:$0xff]
    %v623 = vld [vmem:[#allocation6 + $0x40] sm:$0xff]
    %v624 = vld [vmem:[#allocation6 + $0x48] sm:$0xff]
    %v625 = vld [vmem:[#allocation6 + $0x50] sm:$0xff]
    %v626 = vld [vmem:[#allocation6 + $0x58] sm:$0xff]
    %v627 = vld [vmem:[#allocation6 + $0x60] sm:$0xff]
    %v628 = vld [vmem:[#allocation6 + $0x68] sm:$0xff]
    %v629 = vld [vmem:[#allocation6 + $0x70] sm:$0xff]
    %v630 = vld [vmem:[#allocation6 + $0x78] sm:$0xff]
    %v631 = vld [vmem:[#allocation6 + $0x80] sm:$0xff]
    %v632 = vld [vmem:[#allocation6 + $0x88] sm:$0xff]
    %v633 = vld [vmem:[#allocation6 + $0x90] sm:$0xff]
    %v634 = vld [vmem:[#allocation6 + $0x98] sm:$0xff]
    %v635 = vld [vmem:[#allocation6 + $0xa0] sm:$0xff]
    %v636 = vld [vmem:[#allocation6 + $0xa8] sm:$0xff]
    %v637 = vld [vmem:[#allocation6 + $0xb0] sm:$0xff]
    %v638 = vld [vmem:[#allocation6 + $0xb8] sm:$0xff]
    %v639 = vld [vmem:[#allocation6 + $0xc0] sm:$0xff]
    %v640 = vld [vmem:[#allocation6 + $0xc8] sm:$0xff]
    %v641 = vld [vmem:[#allocation6 + $0xd0] sm:$0xff]
    %v642 = vld [vmem:[#allocation6 + $0xd8] sm:$0xff]
    %v643 = vld [vmem:[#allocation6 + $0xe0] sm:$0xff]
    %v644 = vld [vmem:[#allocation6 + $0xe8] sm:$0xff]
    %v645 = vld [vmem:[#allocation6 + $0xf0] sm:$0xff]
    %v646 = vld [vmem:[#allocation6 + $0xf8] sm:$0xff]
    %v647 = vld [vmem:[#allocation6 + $0x100] sm:$0xff]
    %v648 = vld [vmem:[#allocation6 + $0x108] sm:$0xff]
    %v649 = vld [vmem:[#allocation6 + $0x110] sm:$0xff]
    %v650 = vld [vmem:[#allocation6 + $0x118] sm:$0xff]
    %v651 = vld [vmem:[#allocation6 + $0x120] sm:$0xff]
    %v652 = vld [vmem:[#allocation6 + $0x128] sm:$0xff]
    %v653 = vld [vmem:[#allocation6 + $0x130] sm:$0xff]
    %v654 = vld [vmem:[#allocation6 + $0x138] sm:$0xff]
    %v655 = vld [vmem:[#allocation6 + $0x140] sm:$0xff]
    %v656 = vld [vmem:[#allocation6 + $0x148] sm:$0xff]
    %v657 = vld [vmem:[#allocation6 + $0x150] sm:$0xff]
    %v658 = vld [vmem:[#allocation6 + $0x158] sm:$0xff]
    %v659 = vld [vmem:[#allocation6 + $0x160] sm:$0xff]
    %v660 = vld [vmem:[#allocation6 + $0x168] sm:$0xff]
    %v661 = vld [vmem:[#allocation6 + $0x170] sm:$0xff]
    %v662 = vld [vmem:[#allocation6 + $0x178] sm:$0xff]
    %v663 = vld [vmem:[#allocation6 + $0x180] sm:$0xff]
    %v664 = vld [vmem:[#allocation6 + $0x188] sm:$0xff]
    %v665 = vld [vmem:[#allocation6 + $0x190] sm:$0xff]
    %v666 = vld [vmem:[#allocation6 + $0x198] sm:$0xff]
    %v667 = vld [vmem:[#allocation6 + $0x1a0] sm:$0xff]
    %v668 = vld [vmem:[#allocation6 + $0x1a8] sm:$0xff]
    %v669 = vld [vmem:[#allocation6 + $0x1b0] sm:$0xff]
    %v670 = vld [vmem:[#allocation6 + $0x1b8] sm:$0xff]
    %v671 = vld [vmem:[#allocation6 + $0x1c0] sm:$0xff]
    %v672 = vld [vmem:[#allocation6 + $0x1c8] sm:$0xff]
    %v673 = vld [vmem:[#allocation6 + $0x1d0] sm:$0xff]
    %v674 = vld [vmem:[#allocation6 + $0x1d8] sm:$0xff]
    %v675 = vld [vmem:[#allocation6 + $0x1e0] sm:$0xff]
    %v676 = vld [vmem:[#allocation6 + $0x1e8] sm:$0xff]
    %v677 = vld [vmem:[#allocation6 + $0x1f0] sm:$0xff]
    %v678 = vld [vmem:[#allocation6 + $0x1f8] sm:$0xff]
    %v743 = vunpack.c.l.b16 %v615
    %v744 = vunpack.c.h.b16 %v615
    %v745 = vunpack.c.l.b16 %v616
    %v746 = vunpack.c.h.b16 %v616
    %v747 = vunpack.c.l.b16 %v617
    %v748 = vunpack.c.h.b16 %v617
    %v749 = vunpack.c.l.b16 %v618
    %v750 = vunpack.c.h.b16 %v618
    %v751 = vunpack.c.l.b16 %v619
    %v752 = vunpack.c.h.b16 %v619
    %v753 = vunpack.c.l.b16 %v620
    %v754 = vunpack.c.h.b16 %v620
    %v755 = vunpack.c.l.b16 %v621
    %v756 = vunpack.c.h.b16 %v621
    %v757 = vunpack.c.l.b16 %v622
    %v758 = vunpack.c.h.b16 %v622
    %v759 = vunpack.c.l.b16 %v623
    %v760 = vunpack.c.h.b16 %v623
    %v761 = vunpack.c.l.b16 %v624
    %v762 = vunpack.c.h.b16 %v624
    %v763 = vunpack.c.l.b16 %v625
    %v764 = vunpack.c.h.b16 %v625
    %v765 = vunpack.c.l.b16 %v626
    %v766 = vunpack.c.h.b16 %v626
    %v767 = vunpack.c.l.b16 %v627
    %v768 = vunpack.c.h.b16 %v627
    %v769 = vunpack.c.l.b16 %v628
    %v770 = vunpack.c.h.b16 %v628
    %v771 = vunpack.c.l.b16 %v629
    %v772 = vunpack.c.h.b16 %v629
    %v773 = vunpack.c.l.b16 %v630
    %v774 = vunpack.c.h.b16 %v630
    %v775 = vunpack.c.l.b16 %v631
    %v776 = vunpack.c.h.b16 %v631
    %v777 = vunpack.c.l.b16 %v632
    %v778 = vunpack.c.h.b16 %v632
    %v779 = vunpack.c.l.b16 %v633
    %v780 = vunpack.c.h.b16 %v633
    %v781 = vunpack.c.l.b16 %v634
    %v782 = vunpack.c.h.b16 %v634
    %v783 = vunpack.c.l.b16 %v635
    %v784 = vunpack.c.h.b16 %v635
    %v785 = vunpack.c.l.b16 %v636
    %v786 = vunpack.c.h.b16 %v636
    %v787 = vunpack.c.l.b16 %v637
    %v788 = vunpack.c.h.b16 %v637
    %v789 = vunpack.c.l.b16 %v638
    %v790 = vunpack.c.h.b16 %v638
    %v791 = vunpack.c.l.b16 %v639
    %v792 = vunpack.c.h.b16 %v639
    %v793 = vunpack.c.l.b16 %v640
    %v794 = vunpack.c.h.b16 %v640
    %v795 = vunpack.c.l.b16 %v641
    %v796 = vunpack.c.h.b16 %v641
    %v797 = vunpack.c.l.b16 %v642
    %v798 = vunpack.c.h.b16 %v642
    %v799 = vunpack.c.l.b16 %v643
    %v800 = vunpack.c.h.b16 %v643
    %v801 = vunpack.c.l.b16 %v644
    %v802 = vunpack.c.h.b16 %v644
    %v803 = vunpack.c.l.b16 %v645
    %v804 = vunpack.c.h.b16 %v645
    %v805 = vunpack.c.l.b16 %v646
    %v806 = vunpack.c.h.b16 %v646
    %v807 = vunpack.c.l.b16 %v647
    %v808 = vunpack.c.h.b16 %v647
    %v809 = vunpack.c.l.b16 %v648
    %v810 = vunpack.c.h.b16 %v648
    %v811 = vunpack.c.l.b16 %v649
    %v812 = vunpack.c.h.b16 %v649
    %v813 = vunpack.c.l.b16 %v650
    %v814 = vunpack.c.h.b16 %v650
    %v815 = vunpack.c.l.b16 %v651
    %v816 = vunpack.c.h.b16 %v651
    %v817 = vunpack.c.l.b16 %v652
    %v818 = vunpack.c.h.b16 %v652
    %v819 = vunpack.c.l.b16 %v653
    %v820 = vunpack.c.h.b16 %v653
    %v821 = vunpack.c.l.b16 %v654
    %v822 = vunpack.c.h.b16 %v654
    %v823 = vunpack.c.l.b16 %v655
    %v824 = vunpack.c.h.b16 %v655
    %v825 = vunpack.c.l.b16 %v656
    %v826 = vunpack.c.h.b16 %v656
    %v827 = vunpack.c.l.b16 %v657
    %v828 = vunpack.c.h.b16 %v657
    %v829 = vunpack.c.l.b16 %v658
    %v830 = vunpack.c.h.b16 %v658
    %v831 = vunpack.c.l.b16 %v659
    %v832 = vunpack.c.h.b16 %v659
    %v833 = vunpack.c.l.b16 %v660
    %v834 = vunpack.c.h.b16 %v660
    %v835 = vunpack.c.l.b16 %v661
    %v836 = vunpack.c.h.b16 %v661
    %v837 = vunpack.c.l.b16 %v662
    %v838 = vunpack.c.h.b16 %v662
    %v839 = vunpack.c.l.b16 %v663
    %v840 = vunpack.c.h.b16 %v663
    %v841 = vunpack.c.l.b16 %v664
    %v842 = vunpack.c.h.b16 %v664
    %v843 = vunpack.c.l.b16 %v665
    %v844 = vunpack.c.h.b16 %v665
    %v845 = vunpack.c.l.b16 %v666
    %v846 = vunpack.c.h.b16 %v666
    %v847 = vunpack.c.l.b16 %v667
    %v848 = vunpack.c.h.b16 %v667
    %v849 = vunpack.c.l.b16 %v668
    %v850 = vunpack.c.h.b16 %v668
    %v851 = vunpack.c.l.b16 %v669
    %v852 = vunpack.c.h.b16 %v669
    %v853 = vunpack.c.l.b16 %v670
    %v854 = vunpack.c.h.b16 %v670
    %v855 = vunpack.c.l.b16 %v671
    %v856 = vunpack.c.h.b16 %v671
    %v857 = vunpack.c.l.b16 %v672
    %v858 = vunpack.c.h.b16 %v672
    %v859 = vunpack.c.l.b16 %v673
    %v860 = vunpack.c.h.b16 %v673
    %v861 = vunpack.c.l.b16 %v674
    %v862 = vunpack.c.h.b16 %v674
    %v863 = vunpack.c.l.b16 %v675
    %v864 = vunpack.c.h.b16 %v675
    %v865 = vunpack.c.l.b16 %v676
    %v866 = vunpack.c.h.b16 %v676
    %v867 = vunpack.c.l.b16 %v677
    %v868 = vunpack.c.h.b16 %v677
    %v869 = vunpack.c.l.b16 %v678
    %v870 = vunpack.c.h.b16 %v678
    %v871 = vpack.c.b16 %v745, %v743
    %v872 = vpack.c.b16 %v746, %v744
    %v873 = vpack.c.b16 %v749, %v747
    %v874 = vpack.c.b16 %v750, %v748
    %v875 = vpack.c.b16 %v753, %v751
    %v876 = vpack.c.b16 %v754, %v752
    %v877 = vpack.c.b16 %v757, %v755
    %v878 = vpack.c.b16 %v758, %v756
    %v879 = vpack.c.b16 %v761, %v759
    %v880 = vpack.c.b16 %v762, %v760
    %v881 = vpack.c.b16 %v765, %v763
    %v882 = vpack.c.b16 %v766, %v764
    %v883 = vpack.c.b16 %v769, %v767
    %v884 = vpack.c.b16 %v770, %v768
    %v885 = vpack.c.b16 %v773, %v771
    %v886 = vpack.c.b16 %v774, %v772
    %v887 = vpack.c.b16 %v777, %v775
    %v888 = vpack.c.b16 %v778, %v776
    %v889 = vpack.c.b16 %v781, %v779
    %v890 = vpack.c.b16 %v782, %v780
    %v891 = vpack.c.b16 %v785, %v783
    %v892 = vpack.c.b16 %v786, %v784
    %v893 = vpack.c.b16 %v789, %v787
    %v894 = vpack.c.b16 %v790, %v788
    %v895 = vpack.c.b16 %v793, %v791
    %v896 = vpack.c.b16 %v794, %v792
    %v897 = vpack.c.b16 %v797, %v795
    %v898 = vpack.c.b16 %v798, %v796
    %v899 = vpack.c.b16 %v801, %v799
    %v900 = vpack.c.b16 %v802, %v800
    %v901 = vpack.c.b16 %v805, %v803
    %v902 = vpack.c.b16 %v806, %v804
    %v903 = vpack.c.b16 %v809, %v807
    %v904 = vpack.c.b16 %v810, %v808
    %v905 = vpack.c.b16 %v813, %v811
    %v906 = vpack.c.b16 %v814, %v812
    %v907 = vpack.c.b16 %v817, %v815
    %v908 = vpack.c.b16 %v818, %v816
    %v909 = vpack.c.b16 %v821, %v819
    %v910 = vpack.c.b16 %v822, %v820
    %v911 = vpack.c.b16 %v825, %v823
    %v912 = vpack.c.b16 %v826, %v824
    %v913 = vpack.c.b16 %v829, %v827
    %v914 = vpack.c.b16 %v830, %v828
    %v915 = vpack.c.b16 %v833, %v831
    %v916 = vpack.c.b16 %v834, %v832
    %v917 = vpack.c.b16 %v837, %v835
    %v918 = vpack.c.b16 %v838, %v836
    %v919 = vpack.c.b16 %v841, %v839
    %v920 = vpack.c.b16 %v842, %v840
    %v921 = vpack.c.b16 %v845, %v843
    %v922 = vpack.c.b16 %v846, %v844
    %v923 = vpack.c.b16 %v849, %v847
    %v924 = vpack.c.b16 %v850, %v848
    %v925 = vpack.c.b16 %v853, %v851
    %v926 = vpack.c.b16 %v854, %v852
    %v927 = vpack.c.b16 %v857, %v855
    %v928 = vpack.c.b16 %v858, %v856
    %v929 = vpack.c.b16 %v861, %v859
    %v930 = vpack.c.b16 %v862, %v860
    %v931 = vpack.c.b16 %v865, %v863
    %v932 = vpack.c.b16 %v866, %v864
    %v933 = vpack.c.b16 %v869, %v867
    %v934 = vpack.c.b16 %v870, %v868
    %999 = vmatpush.bf16.msra.mxu0 %v885
    %1000 = vmatpush.bf16.msra.mxu0 %v883
    %1001 = vmatpush.bf16.msra.mxu0 %v881
    %1002 = vmatpush.bf16.msra.mxu0 %v879
    %1003 = vmatpush.bf16.msra.mxu0 %v877
    %1004 = vmatpush.bf16.msra.mxu0 %v875
    %1005 = vmatpush.bf16.msra.mxu0 %v873
    %1006 = vmatpush.bf16.msra.mxu0 %v871
    %1007 = vmatmul.bf16.gmra.mxu0 %v607
    %v1008 = vpop.f32.mrf.mxu0
    %v1009 = vadd.f32 0.0, %v1008
    %v1010 = vpop.f32.mrf.mxu0
    %v1011 = vadd.f32 0.0, %v1010
    %1012 = vmatmul.bf16.gmra.mxu0 %v611
    %v1013 = vpop.f32.mrf.mxu0
    %v1014 = vadd.f32 0.0, %v1013
    %v1015 = vpop.f32.mrf.mxu0
    %v1016 = vadd.f32 0.0, %v1015
    %1017 = vdwg.mxu0
    %1018 = vmatpush.bf16.msra.mxu0 %v901
    %1019 = vmatpush.bf16.msra.mxu0 %v899
    %1020 = vmatpush.bf16.msra.mxu0 %v897
    %1021 = vmatpush.bf16.msra.mxu0 %v895
    %1022 = vmatpush.bf16.msra.mxu0 %v893
    %1023 = vmatpush.bf16.msra.mxu0 %v891
    %1024 = vmatpush.bf16.msra.mxu0 %v889
    %1025 = vmatpush.bf16.msra.mxu0 %v887
    %1026 = vmatmul.bf16.gmra.mxu0 %v608
    %v1027 = vpop.f32.mrf.mxu0
    %v1028 = vadd.f32 %v1009, %v1027
    %v1029 = vpop.f32.mrf.mxu0
    %v1030 = vadd.f32 %v1011, %v1029
    %1031 = vmatmul.bf16.gmra.mxu0 %v612
    %v1032 = vpop.f32.mrf.mxu0
    %v1033 = vadd.f32 %v1014, %v1032
    %v1034 = vpop.f32.mrf.mxu0
    %v1035 = vadd.f32 %v1016, %v1034
    %1036 = vdwg.mxu0
    %1037 = vmatpush.bf16.msra.mxu0 %v917
    %1038 = vmatpush.bf16.msra.mxu0 %v915
    %1039 = vmatpush.bf16.msra.mxu0 %v913
    %1040 = vmatpush.bf16.msra.mxu0 %v911
    %1041 = vmatpush.bf16.msra.mxu0 %v909
    %1042 = vmatpush.bf16.msra.mxu0 %v907
    %1043 = vmatpush.bf16.msra.mxu0 %v905
    %1044 = vmatpush.bf16.msra.mxu0 %v903
    %1045 = vmatmul.bf16.gmra.mxu0 %v609
    %v1046 = vpop.f32.mrf.mxu0
    %v1047 = vadd.f32 %v1028, %v1046
    %v1048 = vpop.f32.mrf.mxu0
    %v1049 = vadd.f32 %v1030, %v1048
    %1050 = vmatmul.bf16.gmra.mxu0 %v613
    %v1051 = vpop.f32.mrf.mxu0
    %v1052 = vadd.f32 %v1033, %v1051
    %v1053 = vpop.f32.mrf.mxu0
    %v1054 = vadd.f32 %v1035, %v1053
    %1055 = vdwg.mxu0
    %1056 = vmatpush.bf16.msra.mxu0 %v933
    %1057 = vmatpush.bf16.msra.mxu0 %v931
    %1058 = vmatpush.bf16.msra.mxu0 %v929
    %1059 = vmatpush.bf16.msra.mxu0 %v927
    %1060 = vmatpush.bf16.msra.mxu0 %v925
    %1061 = vmatpush.bf16.msra.mxu0 %v923
    %1062 = vmatpush.bf16.msra.mxu0 %v921
    %1063 = vmatpush.bf16.msra.mxu0 %v919
    %1064 = vmatmul.bf16.gmra.mxu0 %v610
    %v1065 = vpop.f32.mrf.mxu0
    %v1066 = vadd.f32 %v1047, %v1065
    %v1067 = vpop.f32.mrf.mxu0
    %v1068 = vadd.f32 %v1049, %v1067
    %1069 = vmatmul.bf16.gmra.mxu0 %v614
    %v1070 = vpop.f32.mrf.mxu0
    %v1071 = vadd.f32 %v1052, %v1070
    %v1072 = vpop.f32.mrf.mxu0
    %v1073 = vadd.f32 %v1054, %v1072
    %1074 = vdwg.mxu0
    %1075 = vmatpush.bf16.msra.mxu0 %v886
    %1076 = vmatpush.bf16.msra.mxu0 %v884
    %1077 = vmatpush.bf16.msra.mxu0 %v882
    %1078 = vmatpush.bf16.msra.mxu0 %v880
    %1079 = vmatpush.bf16.msra.mxu0 %v878
    %1080 = vmatpush.bf16.msra.mxu0 %v876
    %1081 = vmatpush.bf16.msra.mxu0 %v874
    %1082 = vmatpush.bf16.msra.mxu0 %v872
    %1083 = vmatmul.bf16.gmra.mxu0 %v607
    %v1084 = vpop.f32.mrf.mxu0
    %v1085 = vadd.f32 0.0, %v1084
    %v1086 = vpop.f32.mrf.mxu0
    %v1087 = vadd.f32 0.0, %v1086
    %1088 = vmatmul.bf16.gmra.mxu0 %v611
    %v1089 = vpop.f32.mrf.mxu0
    %v1090 = vadd.f32 0.0, %v1089
    %v1091 = vpop.f32.mrf.mxu0
    %v1092 = vadd.f32 0.0, %v1091
    %1093 = vdwg.mxu0
    %1094 = vmatpush.bf16.msra.mxu0 %v902
    %1095 = vmatpush.bf16.msra.mxu0 %v900
    %1096 = vmatpush.bf16.msra.mxu0 %v898
    %1097 = vmatpush.bf16.msra.mxu0 %v896
    %1098 = vmatpush.bf16.msra.mxu0 %v894
    %1099 = vmatpush.bf16.msra.mxu0 %v892
    %1100 = vmatpush.bf16.msra.mxu0 %v890
    %1101 = vmatpush.bf16.msra.mxu0 %v888
    %1102 = vmatmul.bf16.gmra.mxu0 %v608
    %v1103 = vpop.f32.mrf.mxu0
    %v1104 = vadd.f32 %v1085, %v1103
    %v1105 = vpop.f32.mrf.mxu0
    %v1106 = vadd.f32 %v1087, %v1105
    %1107 = vmatmul.bf16.gmra.mxu0 %v612
    %v1108 = vpop.f32.mrf.mxu0
    %v1109 = vadd.f32 %v1090, %v1108
    %v1110 = vpop.f32.mrf.mxu0
    %v1111 = vadd.f32 %v1092, %v1110
    %1112 = vdwg.mxu0
    %1113 = vmatpush.bf16.msra.mxu0 %v918
    %1114 = vmatpush.bf16.msra.mxu0 %v916
    %1115 = vmatpush.bf16.msra.mxu0 %v914
    %1116 = vmatpush.bf16.msra.mxu0 %v912
    %1117 = vmatpush.bf16.msra.mxu0 %v910
    %1118 = vmatpush.bf16.msra.mxu0 %v908
    %1119 = vmatpush.bf16.msra.mxu0 %v906
    %1120 = vmatpush.bf16.msra.mxu0 %v904
    %1121 = vmatmul.bf16.gmra.mxu0 %v609
    %v1122 = vpop.f32.mrf.mxu0
    %v1123 = vadd.f32 %v1104, %v1122
    %v1124 = vpop.f32.mrf.mxu0
    %v1125 = vadd.f32 %v1106, %v1124
    %1126 = vmatmul.bf16.gmra.mxu0 %v613
    %v1127 = vpop.f32.mrf.mxu0
    %v1128 = vadd.f32 %v1109, %v1127
    %v1129 = vpop.f32.mrf.mxu0
    %v1130 = vadd.f32 %v1111, %v1129
    %1131 = vdwg.mxu0
    %1132 = vmatpush.bf16.msra.mxu0 %v934
    %1133 = vmatpush.bf16.msra.mxu0 %v932
    %1134 = vmatpush.bf16.msra.mxu0 %v930
    %1135 = vmatpush.bf16.msra.mxu0 %v928
    %1136 = vmatpush.bf16.msra.mxu0 %v926
    %1137 = vmatpush.bf16.msra.mxu0 %v924
    %1138 = vmatpush.bf16.msra.mxu0 %v922
    %1139 = vmatpush.bf16.msra.mxu0 %v920
    %1140 = vmatmul.bf16.gmra.mxu0 %v610
    %v1141 = vpop.f32.mrf.mxu0
    %v1142 = vadd.f32 %v1123, %v1141
    %v1143 = vpop.f32.mrf.mxu0
    %v1144 = vadd.f32 %v1125, %v1143
    %1145 = vmatmul.bf16.gmra.mxu0 %v614
    %v1146 = vpop.f32.mrf.mxu0
    %v1147 = vadd.f32 %v1128, %v1146
    %v1148 = vpop.f32.mrf.mxu0
    %v1149 = vadd.f32 %v1130, %v1148
    %1150 = vdwg.mxu0
    %v1151 = vadd.f32 %v1066, %v1068
    %v1152 = vadd.f32 %v1151, %v1071
    %v1153 = vadd.f32 %v1152, %v1073
    %v1154 = vrot.slane %v1153, 4
    %v1155 = vadd.f32 %v1153, %v1154
    %v1156 = vrot.slane %v1155, 2
    %v1157 = vadd.f32 %v1155, %v1156
    %v1158 = vrot.slane %v1157, 1
    %v1159 = vadd.f32 %v1157, %v1158
    %v1160 = vadd.f32 %v1142, %v1144
    %v1161 = vadd.f32 %v1160, %v1147
    %v1162 = vadd.f32 %v1161, %v1149
    %v1163 = vrot.slane %v1162, 4
    %v1164 = vadd.f32 %v1162, %v1163
    %v1165 = vrot.slane %v1164, 2
    %v1166 = vadd.f32 %v1164, %v1165
    %v1167 = vrot.slane %v1166, 1
    %v1168 = vadd.f32 %v1166, %v1167
    %v1169 = vmul.f32 %v1066, %v1066
    %v1170 = vmul.f32 %v1142, %v1142
    %v1171 = vmul.f32 %v1068, %v1068
    %v1172 = vmul.f32 %v1144, %v1144
    %v1173 = vmul.f32 %v1071, %v1071
    %v1174 = vmul.f32 %v1147, %v1147
    %v1175 = vmul.f32 %v1073, %v1073
    %v1176 = vmul.f32 %v1149, %v1149
    %v1177 = vadd.f32 %v1169, %v1171
    %v1178 = vadd.f32 %v1177, %v1173
    %v1179 = vadd.f32 %v1178, %v1175
    %v1180 = vrot.slane %v1179, 4
    %v1181 = vadd.f32 %v1179, %v1180
    %v1182 = vrot.slane %v1181, 2
    %v1183 = vadd.f32 %v1181, %v1182
    %v1184 = vrot.slane %v1183, 1
    %v1185 = vadd.f32 %v1183, %v1184
    %v1186 = vadd.f32 %v1170, %v1172
    %v1187 = vadd.f32 %v1186, %v1174
    %v1188 = vadd.f32 %v1187, %v1176
    %v1189 = vrot.slane %v1188, 4
    %v1190 = vadd.f32 %v1188, %v1189
    %v1191 = vrot.slane %v1190, 2
    %v1192 = vadd.f32 %v1190, %v1191
    %v1193 = vrot.slane %v1192, 1
    %v1194 = vadd.f32 %v1192, %v1193
    %v1195 = vsel %vm492, %v1159, %v1185
    %v1196 = vsel %vm492, %v1168, %v1194
    %v1197 = vadd.f32 %v1195, %v1196
    %1199 = vrot.lane.b32.xlu0 %v1197, 64
    %v1200 = vpop.permute.xlu0 %1199
    %v1202 = vadd.f32 %v1197, %v1200
    %1204 = vrot.lane.b32.xlu0 %v1202, 96
    %v1205 = vpop.permute.xlu0 %1204
    %v1207 = vadd.f32 %v1202, %v1205
    %1209 = vrot.lane.b32.xlu0 %v1207, 112
    %v1210 = vpop.permute.xlu0 %1209
    %v1212 = vadd.f32 %v1207, %v1210
    %v1213 = vrcp.pop 512.0
    %v1214 = vmul.f32 512.0, %v1213
    %v1215 = vsub.f32 1.0, %v1214
    %v1216 = vmul.f32 %v1213, %v1215
    %v1217 = vadd.f32 %v1213, %v1216
    %vm1218 = vweird.f32 %v1213
    %v1219 = vsel %vm1218, %v1213, %v1217
    %v1220 = vmul.f32 %v1212, %v1219
    %v1221 = vmul.f32 %v1220, %v1220
    %v1223 = vrot.slane %v1221, 7
    %v1225 = vsub.f32 %v1220, %v1223
    %v1226 = vmax.f32 %v1225, 0.0
    %v1227 = vld [vmem:[%s2] sm:$0x1]
    %v1228 = vadd.f32 %v1226, 1e-05
    %v1229 = vrsqrt.pop %v1228
    %v1230 = vmul.f32 %v1229, %v1228
    %v1231 = vmul.f32 %v1230, %v1229
    %v1232 = vmul.f32 0.5, %v1231
    %v1233 = vsub.f32 1.5, %v1232
    %v1234 = vmul.f32 %v1229, %v1233
    %vm1235 = vweird.f32 %v1228
    %vm1236 = vweird.f32 %v1229
    %vm1237 = vmor %vm1235, %vm1236
    %v1238 = vsel %vm1237, %v1229, %v1234
    %1240 = vst [vmem:[#allocation1] sm:$0xff] %v1238
    %s1241 = scalar_lea.vmem [#allocation1], 1
    %v1242 = vld [vmem:[%s1241] ss:$9 sm:$0xff]
    %v1244 = vmul.f32 %v1227, %v1242
    %v1245 = vld [vmem:[%s3] sm:$0x1]
    %v1246 = vmul.f32 %v1220, %v1244
    %v1247 = vsub.f32 %v1245, %v1246
    %v1249 = vperm.slane %v1244, 0
    %1250 = vrot.lane.b32.xlu0 %v1249, 16
    %v1251 = vpop.permute.xlu0 %1250
    %1253 = vrot.lane.b32.xlu0 %v1249, 32
    %v1254 = vpop.permute.xlu0 %1253
    %1256 = vrot.lane.b32.xlu0 %v1249, 48
    %v1257 = vpop.permute.xlu0 %1256
    %1259 = vrot.lane.b32.xlu0 %v1249, 64
    %v1260 = vpop.permute.xlu0 %1259
    %1262 = vrot.lane.b32.xlu0 %v1249, 80
    %v1263 = vpop.permute.xlu0 %1262
    %1265 = vrot.lane.b32.xlu0 %v1249, 96
    %v1266 = vpop.permute.xlu0 %1265
    %1268 = vrot.lane.b32.xlu0 %v1249, 112
    %v1269 = vpop.permute.xlu0 %1268
    %vm1271 = vcmask 130048
    %v1272 = vsel %vm1271, %v1244, %v1251
    %vm1273 = vcmask 261120
    %v1274 = vsel %vm1273, %v1272, %v1254
    %vm1275 = vcmask 392192
    %v1276 = vsel %vm1275, %v1274, %v1257
    %vm1277 = vcmask 523264
    %v1278 = vsel %vm1277, %v1276, %v1260
    %vm1279 = vcmask 654336
    %v1280 = vsel %vm1279, %v1278, %v1263
    %vm1281 = vcmask 785408
    %v1282 = vsel %vm1281, %v1280, %v1266
    %vm1283 = vcmask 916480
    %v1284 = vsel %vm1283, %v1282, %v1269
    %v1286 = vperm.slane %v1247, 0
    %1287 = vrot.lane.b32.xlu0 %v1286, 16
    %v1288 = vpop.permute.xlu0 %1287
    %1290 = vrot.lane.b32.xlu0 %v1286, 32
    %v1291 = vpop.permute.xlu0 %1290
    %1293 = vrot.lane.b32.xlu0 %v1286, 48
    %v1294 = vpop.permute.xlu0 %1293
    %1296 = vrot.lane.b32.xlu0 %v1286, 64
    %v1297 = vpop.permute.xlu0 %1296
    %1299 = vrot.lane.b32.xlu0 %v1286, 80
    %v1300 = vpop.permute.xlu0 %1299
    %1302 = vrot.lane.b32.xlu0 %v1286, 96
    %v1303 = vpop.permute.xlu0 %1302
    %1305 = vrot.lane.b32.xlu0 %v1286, 112
    %v1306 = vpop.permute.xlu0 %1305
    %v1308 = vsel %vm1271, %v1247, %v1288
    %v1309 = vsel %vm1273, %v1308, %v1291
    %v1310 = vsel %vm1275, %v1309, %v1294
    %v1311 = vsel %vm1277, %v1310, %v1297
    %v1312 = vsel %vm1279, %v1311, %v1300
    %v1313 = vsel %vm1281, %v1312, %v1303
    %v1314 = vsel %vm1283, %v1313, %v1306
    %v1315 = vperm.slane %v1284, 0
    %v1316 = vmul.f32 %v1066, %v1315
    %v1317 = vmul.f32 %v1142, %v1315
    %v1318 = vmul.f32 %v1068, %v1315
    %v1319 = vmul.f32 %v1144, %v1315
    %v1320 = vmul.f32 %v1071, %v1315
    %v1321 = vmul.f32 %v1147, %v1315
    %v1322 = vmul.f32 %v1073, %v1315
    %v1323 = vmul.f32 %v1149, %v1315
    %v1324 = vperm.slane %v1314, 0
    %v1325 = vadd.f32 %v1316, %v1324
    %v1326 = vadd.f32 %v1317, %v1324
    %v1327 = vadd.f32 %v1318, %v1324
    %v1328 = vadd.f32 %v1319, %v1324
    %v1329 = vadd.f32 %v1320, %v1324
    %v1330 = vadd.f32 %v1321, %v1324
    %v1331 = vadd.f32 %v1322, %v1324
    %v1332 = vadd.f32 %v1323, %v1324
    %v1333 = vmax.f32 %v1325, 0.0
    %v1334 = vmax.f32 %v1326, 0.0
    %v1335 = vmax.f32 %v1327, 0.0
    %v1336 = vmax.f32 %v1328, 0.0
    %v1337 = vmax.f32 %v1329, 0.0
    %v1338 = vmax.f32 %v1330, 0.0
    %v1339 = vmax.f32 %v1331, 0.0
    %v1340 = vmax.f32 %v1332, 0.0
    %v1349 = vrot.slane %v1334, 4
    %v1350 = vrot.slane %v1336, 4
    %v1351 = vrot.slane %v1338, 4
    %v1352 = vrot.slane %v1340, 4
    %vm1353 = vcmask 1043456
    %v1354 = vsel %vm1353, %v1333, %v1349
    %v1355 = vsel %vm1353, %v1349, %v1333
    %v1356 = vrot.slane %v1355, 4
    %v1357 = vsel %vm1353, %v1335, %v1350
    %v1358 = vsel %vm1353, %v1350, %v1335
    %v1359 = vrot.slane %v1358, 4
    %v1360 = vsel %vm1353, %v1337, %v1351
    %v1361 = vsel %vm1353, %v1351, %v1337
    %v1362 = vrot.slane %v1361, 4
    %v1363 = vsel %vm1353, %v1339, %v1352
    %v1364 = vsel %vm1353, %v1352, %v1339
    %v1365 = vrot.slane %v1364, 4
    %v1375 = vunpack.c.l.s4 1966171168
    %v1376 = vunpack.c.0.s8 %v1375
    %v1377 = vperm.slane %v1354, %v1376
    %v1379 = vunpack.c.l.s4 1966171168
    %v1380 = vunpack.c.0.s8 %v1379
    %v1381 = vperm.slane %v1356, %v1380
    %v1383 = vunpack.c.l.s4 1966171168
    %v1384 = vunpack.c.0.s8 %v1383
    %v1385 = vperm.slane %v1357, %v1384
    %v1387 = vunpack.c.l.s4 1966171168
    %v1388 = vunpack.c.0.s8 %v1387
    %v1389 = vperm.slane %v1359, %v1388
    %v1391 = vunpack.c.l.s4 1966171168
    %v1392 = vunpack.c.0.s8 %v1391
    %v1393 = vperm.slane %v1360, %v1392
    %v1395 = vunpack.c.l.s4 1966171168
    %v1396 = vunpack.c.0.s8 %v1395
    %v1397 = vperm.slane %v1362, %v1396
    %v1399 = vunpack.c.l.s4 1966171168
    %v1400 = vunpack.c.0.s8 %v1399
    %v1401 = vperm.slane %v1363, %v1400
    %v1403 = vunpack.c.l.s4 1966171168
    %v1404 = vunpack.c.0.s8 %v1403
    %v1405 = vperm.slane %v1365, %v1404
    %vm1406 = vcmp.lt.s32.totalorder %v405, 0
    %v1407 = vsub.s32 0, %v405
    %v1408 = vsel %vm1406, %v1407, %v405
    %v1409 = vshrl.u32 %v1408, 3
    %v1410 = vand.u32 %v1408, 7
    %v1411 = vsub.s32 0, %v1410
    %v1412 = vsel %vm1406, %v1411, %v1410
    %vm1413 = vcmp.lt.s32.totalorder %v406, 0
    %v1414 = vsub.s32 0, %v406
    %v1415 = vsel %vm1413, %v1414, %v406
    %v1416 = vshrl.u32 %v1415, 3
    %v1417 = vand.u32 %v1415, 7
    %v1418 = vsub.s32 0, %v1417
    %v1419 = vsel %vm1413, %v1418, %v1417
    %vm1420 = vcmp.ne.s32.totalorder %v1412, 0
    %vm1421 = vcmp.ne.s32.totalorder %v1419, 0
    %vm1422 = vcmp.lt.s32.totalorder %v1412, 0
    %vm1423 = vcmp.lt.s32.totalorder %v1419, 0
    %vm1424 = vmand %vm1422, %vm1420
    %vm1425 = vmand %vm1423, %vm1421
    %v1426 = vadd.s32 %v1412, 8
    %v1427 = vadd.s32 %v1419, 8
    %v1428 = vsel %vm1424, %v1426, %v1412
    %v1429 = vsel %vm1425, %v1427, %v1419
    %vm1430 = vcmp.eq.s32.totalorder %v1428, 0
    %vm1431 = vcmp.eq.s32.totalorder %v1429, 0
    %vm1432 = vcmp.eq.s32.totalorder %v1428, 7
    %vm1433 = vcmp.eq.s32.totalorder %v1429, 7
    %1442 = vst [vmem:[#allocation1] ss:$4 sm:$0xff] %v1377
    %s1443 = scalar_lea.vmem [#allocation1], 1
    %1444 = vst [vmem:[%s1443] ss:$4 sm:$0xff] %v1381
    %s1445 = scalar_lea.vmem [#allocation1], 2
    %1446 = vst [vmem:[%s1445] ss:$4 sm:$0xff] %v1385
    %s1447 = scalar_lea.vmem [#allocation1], 3
    %1448 = vst [vmem:[%s1447] ss:$4 sm:$0xff] %v1389
    %s1449 = scalar_lea.vmem [#allocation1], 32
    %1450 = vst [vmem:[%s1449] ss:$4 sm:$0xff] %v1393
    %s1451 = scalar_lea.vmem [#allocation1], 33
    %1452 = vst [vmem:[%s1451] ss:$4 sm:$0xff] %v1397
    %s1453 = scalar_lea.vmem [#allocation1], 34
    %1454 = vst [vmem:[%s1453] ss:$4 sm:$0xff] %v1401
    %s1455 = scalar_lea.vmem [#allocation1], 35
    %1456 = vst [vmem:[%s1455] ss:$4 sm:$0xff] %v1405
    %v1457 = vld.sshfl [vmem:[#allocation1 + $0x10] sm:$0xff pattern:$0x73625140]
    %v1458 = vld.sshfl [vmem:[#allocation1 + $0x18] sm:$0xff pattern:$0x73625140]
    %v1459 = vld.sshfl [vmem:[#allocation1 + $0x30] sm:$0xff pattern:$0x73625140]
    %v1460 = vld.sshfl [vmem:[#allocation1 + $0x38] sm:$0xff pattern:$0x73625140]
    %v1461 = vrot.slane %v1457, 7
    %v1462 = vrot.slane %v1458, 7
    %v1463 = vrot.slane %v1459, 7
    %v1464 = vsel %vm492, %v1461, %v1463
    %v1465 = vrot.slane %v1460, 7
    %v1466 = vsel %vm492, %v1462, %v1465
    %v1471 = vsel %vm492, 0.0, %v1461
    %v1472 = vsel %vm492, 0.0, %v1462
    %v1473 = vsel %vm1430, 1, 0
    %v1474 = vsel %vm1431, 1, 0
    %vm1475 = vcmp.eq.s32.totalorder %v1473, 1
    %vm1476 = vcmp.eq.s32.totalorder %v1474, 1
    %v1477 = vsel %vm1475, 0.0, %v1471
    %v1478 = vsel %vm1475, 0.0, %v1472
    %v1479 = vsel %vm1476, 0.0, %v1464
    %v1480 = vsel %vm1476, 0.0, %v1466
    %1481 = vst [vmem:[#allocation1] ss:$4 sm:$0xff] %v1377
    %s1482 = scalar_lea.vmem [#allocation1], 1
    %1483 = vst [vmem:[%s1482] ss:$4 sm:$0xff] %v1381
    %s1484 = scalar_lea.vmem [#allocation1], 2
    %1485 = vst [vmem:[%s1484] ss:$4 sm:$0xff] %v1385
    %s1486 = scalar_lea.vmem [#allocation1], 3
    %1487 = vst [vmem:[%s1486] ss:$4 sm:$0xff] %v1389
    %s1488 = scalar_lea.vmem [#allocation1], 32
    %1489 = vst [vmem:[%s1488] ss:$4 sm:$0xff] %v1393
    %s1490 = scalar_lea.vmem [#allocation1], 33
    %1491 = vst [vmem:[%s1490] ss:$4 sm:$0xff] %v1397
    %s1492 = scalar_lea.vmem [#allocation1], 34
    %1493 = vst [vmem:[%s1492] ss:$4 sm:$0xff] %v1401
    %s1494 = scalar_lea.vmem [#allocation1], 35
    %1495 = vst [vmem:[%s1494] ss:$4 sm:$0xff] %v1405
    %v1496 = vld.sshfl [vmem:[#allocation1] sm:$0xff pattern:$0x73625140]
    %v1497 = vld.sshfl [vmem:[#allocation1 + $0x8] sm:$0xff pattern:$0x73625140]
    %v1498 = vld.sshfl [vmem:[#allocation1 + $0x20] sm:$0xff pattern:$0x73625140]
    %v1499 = vld.sshfl [vmem:[#allocation1 + $0x28] sm:$0xff pattern:$0x73625140]
    %v1500 = vrot.slane %v1496, 1
    %v1501 = vrot.slane %v1498, 1
    %v1502 = vsel %vm536, %v1500, %v1501
    %v1503 = vrot.slane %v1497, 1
    %v1504 = vrot.slane %v1499, 1
    %v1505 = vsel %vm536, %v1503, %v1504
    %v1510 = vsel %vm536, %v1501, 0.0
    %v1511 = vsel %vm536, %v1504, 0.0
    %v1512 = vsel %vm1432, 1, 0
    %v1513 = vsel %vm1433, 1, 0
    %vm1514 = vcmp.eq.s32.totalorder %v1512, 1
    %vm1515 = vcmp.eq.s32.totalorder %v1513, 1
    %v1516 = vsel %vm1514, 0.0, %v1502
    %v1517 = vsel %vm1514, 0.0, %v1505
    %v1518 = vsel %vm1515, 0.0, %v1510
    %v1519 = vsel %vm1515, 0.0, %v1511
    %1520 = vst [vmem:[#allocation1] ss:$4 sm:$0xff] %v1377
    %s1521 = scalar_lea.vmem [#allocation1], 1
    %1522 = vst [vmem:[%s1521] ss:$4 sm:$0xff] %v1381
    %s1523 = scalar_lea.vmem [#allocation1], 2
    %1524 = vst [vmem:[%s1523] ss:$4 sm:$0xff] %v1385
    %s1525 = scalar_lea.vmem [#allocation1], 3
    %1526 = vst [vmem:[%s1525] ss:$4 sm:$0xff] %v1389
    %s1527 = scalar_lea.vmem [#allocation1], 32
    %1528 = vst [vmem:[%s1527] ss:$4 sm:$0xff] %v1393
    %s1529 = scalar_lea.vmem [#allocation1], 33
    %1530 = vst [vmem:[%s1529] ss:$4 sm:$0xff] %v1397
    %s1531 = scalar_lea.vmem [#allocation1], 34
    %1532 = vst [vmem:[%s1531] ss:$4 sm:$0xff] %v1401
    %s1533 = scalar_lea.vmem [#allocation1], 35
    %1534 = vst [vmem:[%s1533] ss:$4 sm:$0xff] %v1405
    %v1535 = vld.sshfl [vmem:[#allocation1] sm:$0xff pattern:$0x73625140]
    %v1536 = vld.sshfl [vmem:[#allocation1 + $0x8] sm:$0xff pattern:$0x73625140]
    %v1537 = vld.sshfl [vmem:[#allocation1 + $0x20] sm:$0xff pattern:$0x73625140]
    %v1538 = vld.sshfl [vmem:[#allocation1 + $0x28] sm:$0xff pattern:$0x73625140]
    %1543 = vst [vmem:[#allocation1] ss:$4 sm:$0xff] %v1377
    %s1544 = scalar_lea.vmem [#allocation1], 1
    %1545 = vst [vmem:[%s1544] ss:$4 sm:$0xff] %v1381
    %s1546 = scalar_lea.vmem [#allocation1], 2
    %1547 = vst [vmem:[%s1546] ss:$4 sm:$0xff] %v1385
    %s1548 = scalar_lea.vmem [#allocation1], 3
    %1549 = vst [vmem:[%s1548] ss:$4 sm:$0xff] %v1389
    %s1550 = scalar_lea.vmem [#allocation1], 32
    %1551 = vst [vmem:[%s1550] ss:$4 sm:$0xff] %v1393
    %s1552 = scalar_lea.vmem [#allocation1], 33
    %1553 = vst [vmem:[%s1552] ss:$4 sm:$0xff] %v1397
    %s1554 = scalar_lea.vmem [#allocation1], 34
    %1555 = vst [vmem:[%s1554] ss:$4 sm:$0xff] %v1401
    %s1556 = scalar_lea.vmem [#allocation1], 35
    %1557 = vst [vmem:[%s1556] ss:$4 sm:$0xff] %v1405
    %v1558 = vld.sshfl [vmem:[#allocation1 + $0x10] sm:$0xff pattern:$0x73625140]
    %v1559 = vld.sshfl [vmem:[#allocation1 + $0x18] sm:$0xff pattern:$0x73625140]
    %v1560 = vld.sshfl [vmem:[#allocation1 + $0x30] sm:$0xff pattern:$0x73625140]
    %v1561 = vld.sshfl [vmem:[#allocation1 + $0x38] sm:$0xff pattern:$0x73625140]
    %v1566 = vpack.c.bf16 %v1479, %v1477
    %v1567 = vpack.c.bf16 %v1480, %v1478
    %v1568 = vpack.c.bf16 %v1537, %v1535
    %v1569 = vpack.c.bf16 %v1538, %v1536
    %v1570 = vpack.c.bf16 %v1560, %v1558
    %v1571 = vpack.c.bf16 %v1561, %v1559
    %v1572 = vpack.c.bf16 %v1518, %v1516
    %v1573 = vpack.c.bf16 %v1519, %v1517
    %s1574 = smul.u32 4, 128
    %s1575 = smul.u32 %s1574, 2
    %s1576 = sshll.u32 %s1575, 4
    %1577 = dma.done [#allocation5], %s1576
    %v1578 = vld [vmem:[#allocation2] sm:$0xff]
    %v1579 = vld [vmem:[#allocation2 + $0x8] sm:$0xff]
    %v1580 = vld [vmem:[#allocation2 + $0x10] sm:$0xff]
    %v1581 = vld [vmem:[#allocation2 + $0x18] sm:$0xff]
    %v1582 = vld [vmem:[#allocation2 + $0x20] sm:$0xff]
    %v1583 = vld [vmem:[#allocation2 + $0x28] sm:$0xff]
    %v1584 = vld [vmem:[#allocation2 + $0x30] sm:$0xff]
    %v1585 = vld [vmem:[#allocation2 + $0x38] sm:$0xff]
    %v1586 = vld [vmem:[#allocation2 + $0x40] sm:$0xff]
    %v1587 = vld [vmem:[#allocation2 + $0x48] sm:$0xff]
    %v1588 = vld [vmem:[#allocation2 + $0x50] sm:$0xff]
    %v1589 = vld [vmem:[#allocation2 + $0x58] sm:$0xff]
    %v1590 = vld [vmem:[#allocation2 + $0x60] sm:$0xff]
    %v1591 = vld [vmem:[#allocation2 + $0x68] sm:$0xff]
    %v1592 = vld [vmem:[#allocation2 + $0x70] sm:$0xff]
    %v1593 = vld [vmem:[#allocation2 + $0x78] sm:$0xff]
    %v1594 = vld [vmem:[#allocation2 + $0x80] sm:$0xff]
    %v1595 = vld [vmem:[#allocation2 + $0x88] sm:$0xff]
    %v1596 = vld [vmem:[#allocation2 + $0x90] sm:$0xff]
    %v1597 = vld [vmem:[#allocation2 + $0x98] sm:$0xff]
    %v1598 = vld [vmem:[#allocation2 + $0xa0] sm:$0xff]
    %v1599 = vld [vmem:[#allocation2 + $0xa8] sm:$0xff]
    %v1600 = vld [vmem:[#allocation2 + $0xb0] sm:$0xff]
    %v1601 = vld [vmem:[#allocation2 + $0xb8] sm:$0xff]
    %v1602 = vld [vmem:[#allocation2 + $0xc0] sm:$0xff]
    %v1603 = vld [vmem:[#allocation2 + $0xc8] sm:$0xff]
    %v1604 = vld [vmem:[#allocation2 + $0xd0] sm:$0xff]
    %v1605 = vld [vmem:[#allocation2 + $0xd8] sm:$0xff]
    %v1606 = vld [vmem:[#allocation2 + $0xe0] sm:$0xff]
    %v1607 = vld [vmem:[#allocation2 + $0xe8] sm:$0xff]
    %v1608 = vld [vmem:[#allocation2 + $0xf0] sm:$0xff]
    %v1609 = vld [vmem:[#allocation2 + $0xf8] sm:$0xff]
    %v1610 = vld [vmem:[#allocation2 + $0x100] sm:$0xff]
    %v1611 = vld [vmem:[#allocation2 + $0x108] sm:$0xff]
    %v1612 = vld [vmem:[#allocation2 + $0x110] sm:$0xff]
    %v1613 = vld [vmem:[#allocation2 + $0x118] sm:$0xff]
    %v1614 = vld [vmem:[#allocation2 + $0x120] sm:$0xff]
    %v1615 = vld [vmem:[#allocation2 + $0x128] sm:$0xff]
    %v1616 = vld [vmem:[#allocation2 + $0x130] sm:$0xff]
    %v1617 = vld [vmem:[#allocation2 + $0x138] sm:$0xff]
    %v1618 = vld [vmem:[#allocation2 + $0x140] sm:$0xff]
    %v1619 = vld [vmem:[#allocation2 + $0x148] sm:$0xff]
    %v1620 = vld [vmem:[#allocation2 + $0x150] sm:$0xff]
    %v1621 = vld [vmem:[#allocation2 + $0x158] sm:$0xff]
    %v1622 = vld [vmem:[#allocation2 + $0x160] sm:$0xff]
    %v1623 = vld [vmem:[#allocation2 + $0x168] sm:$0xff]
    %v1624 = vld [vmem:[#allocation2 + $0x170] sm:$0xff]
    %v1625 = vld [vmem:[#allocation2 + $0x178] sm:$0xff]
    %v1626 = vld [vmem:[#allocation2 + $0x180] sm:$0xff]
    %v1627 = vld [vmem:[#allocation2 + $0x188] sm:$0xff]
    %v1628 = vld [vmem:[#allocation2 + $0x190] sm:$0xff]
    %v1629 = vld [vmem:[#allocation2 + $0x198] sm:$0xff]
    %v1630 = vld [vmem:[#allocation2 + $0x1a0] sm:$0xff]
    %v1631 = vld [vmem:[#allocation2 + $0x1a8] sm:$0xff]
    %v1632 = vld [vmem:[#allocation2 + $0x1b0] sm:$0xff]
    %v1633 = vld [vmem:[#allocation2 + $0x1b8] sm:$0xff]
    %v1634 = vld [vmem:[#allocation2 + $0x1c0] sm:$0xff]
    %v1635 = vld [vmem:[#allocation2 + $0x1c8] sm:$0xff]
    %v1636 = vld [vmem:[#allocation2 + $0x1d0] sm:$0xff]
    %v1637 = vld [vmem:[#allocation2 + $0x1d8] sm:$0xff]
    %v1638 = vld [vmem:[#allocation2 + $0x1e0] sm:$0xff]
    %v1639 = vld [vmem:[#allocation2 + $0x1e8] sm:$0xff]
    %v1640 = vld [vmem:[#allocation2 + $0x1f0] sm:$0xff]
    %v1641 = vld [vmem:[#allocation2 + $0x1f8] sm:$0xff]
    %v1642 = vld [vmem:[#allocation2 + $0x200] sm:$0xff]
    %v1643 = vld [vmem:[#allocation2 + $0x208] sm:$0xff]
    %v1644 = vld [vmem:[#allocation2 + $0x210] sm:$0xff]
    %v1645 = vld [vmem:[#allocation2 + $0x218] sm:$0xff]
    %v1646 = vld [vmem:[#allocation2 + $0x220] sm:$0xff]
    %v1647 = vld [vmem:[#allocation2 + $0x228] sm:$0xff]
    %v1648 = vld [vmem:[#allocation2 + $0x230] sm:$0xff]
    %v1649 = vld [vmem:[#allocation2 + $0x238] sm:$0xff]
    %v1650 = vld [vmem:[#allocation2 + $0x240] sm:$0xff]
    %v1651 = vld [vmem:[#allocation2 + $0x248] sm:$0xff]
    %v1652 = vld [vmem:[#allocation2 + $0x250] sm:$0xff]
    %v1653 = vld [vmem:[#allocation2 + $0x258] sm:$0xff]
    %v1654 = vld [vmem:[#allocation2 + $0x260] sm:$0xff]
    %v1655 = vld [vmem:[#allocation2 + $0x268] sm:$0xff]
    %v1656 = vld [vmem:[#allocation2 + $0x270] sm:$0xff]
    %v1657 = vld [vmem:[#allocation2 + $0x278] sm:$0xff]
    %v1658 = vld [vmem:[#allocation2 + $0x280] sm:$0xff]
    %v1659 = vld [vmem:[#allocation2 + $0x288] sm:$0xff]
    %v1660 = vld [vmem:[#allocation2 + $0x290] sm:$0xff]
    %v1661 = vld [vmem:[#allocation2 + $0x298] sm:$0xff]
    %v1662 = vld [vmem:[#allocation2 + $0x2a0] sm:$0xff]
    %v1663 = vld [vmem:[#allocation2 + $0x2a8] sm:$0xff]
    %v1664 = vld [vmem:[#allocation2 + $0x2b0] sm:$0xff]
    %v1665 = vld [vmem:[#allocation2 + $0x2b8] sm:$0xff]
    %v1666 = vld [vmem:[#allocation2 + $0x2c0] sm:$0xff]
    %v1667 = vld [vmem:[#allocation2 + $0x2c8] sm:$0xff]
    %v1668 = vld [vmem:[#allocation2 + $0x2d0] sm:$0xff]
    %v1669 = vld [vmem:[#allocation2 + $0x2d8] sm:$0xff]
    %v1670 = vld [vmem:[#allocation2 + $0x2e0] sm:$0xff]
    %v1671 = vld [vmem:[#allocation2 + $0x2e8] sm:$0xff]
    %v1672 = vld [vmem:[#allocation2 + $0x2f0] sm:$0xff]
    %v1673 = vld [vmem:[#allocation2 + $0x2f8] sm:$0xff]
    %v1674 = vld [vmem:[#allocation2 + $0x300] sm:$0xff]
    %v1675 = vld [vmem:[#allocation2 + $0x308] sm:$0xff]
    %v1676 = vld [vmem:[#allocation2 + $0x310] sm:$0xff]
    %v1677 = vld [vmem:[#allocation2 + $0x318] sm:$0xff]
    %v1678 = vld [vmem:[#allocation2 + $0x320] sm:$0xff]
    %v1679 = vld [vmem:[#allocation2 + $0x328] sm:$0xff]
    %v1680 = vld [vmem:[#allocation2 + $0x330] sm:$0xff]
    %v1681 = vld [vmem:[#allocation2 + $0x338] sm:$0xff]
    %v1682 = vld [vmem:[#allocation2 + $0x340] sm:$0xff]
    %v1683 = vld [vmem:[#allocation2 + $0x348] sm:$0xff]
    %v1684 = vld [vmem:[#allocation2 + $0x350] sm:$0xff]
    %v1685 = vld [vmem:[#allocation2 + $0x358] sm:$0xff]
    %v1686 = vld [vmem:[#allocation2 + $0x360] sm:$0xff]
    %v1687 = vld [vmem:[#allocation2 + $0x368] sm:$0xff]
    %v1688 = vld [vmem:[#allocation2 + $0x370] sm:$0xff]
    %v1689 = vld [vmem:[#allocation2 + $0x378] sm:$0xff]
    %v1690 = vld [vmem:[#allocation2 + $0x380] sm:$0xff]
    %v1691 = vld [vmem:[#allocation2 + $0x388] sm:$0xff]
    %v1692 = vld [vmem:[#allocation2 + $0x390] sm:$0xff]
    %v1693 = vld [vmem:[#allocation2 + $0x398] sm:$0xff]
    %v1694 = vld [vmem:[#allocation2 + $0x3a0] sm:$0xff]
    %v1695 = vld [vmem:[#allocation2 + $0x3a8] sm:$0xff]
    %v1696 = vld [vmem:[#allocation2 + $0x3b0] sm:$0xff]
    %v1697 = vld [vmem:[#allocation2 + $0x3b8] sm:$0xff]
    %v1698 = vld [vmem:[#allocation2 + $0x3c0] sm:$0xff]
    %v1699 = vld [vmem:[#allocation2 + $0x3c8] sm:$0xff]
    %v1700 = vld [vmem:[#allocation2 + $0x3d0] sm:$0xff]
    %v1701 = vld [vmem:[#allocation2 + $0x3d8] sm:$0xff]
    %v1702 = vld [vmem:[#allocation2 + $0x3e0] sm:$0xff]
    %v1703 = vld [vmem:[#allocation2 + $0x3e8] sm:$0xff]
    %v1704 = vld [vmem:[#allocation2 + $0x3f0] sm:$0xff]
    %v1705 = vld [vmem:[#allocation2 + $0x3f8] sm:$0xff]
    %v1834 = vunpack.c.l.b16 %v1578
    %v1835 = vunpack.c.h.b16 %v1578
    %v1836 = vunpack.c.l.b16 %v1579
    %v1837 = vunpack.c.h.b16 %v1579
    %v1838 = vunpack.c.l.b16 %v1580
    %v1839 = vunpack.c.h.b16 %v1580
    %v1840 = vunpack.c.l.b16 %v1581
    %v1841 = vunpack.c.h.b16 %v1581
    %v1842 = vunpack.c.l.b16 %v1582
    %v1843 = vunpack.c.h.b16 %v1582
    %v1844 = vunpack.c.l.b16 %v1583
    %v1845 = vunpack.c.h.b16 %v1583
    %v1846 = vunpack.c.l.b16 %v1584
    %v1847 = vunpack.c.h.b16 %v1584
    %v1848 = vunpack.c.l.b16 %v1585
    %v1849 = vunpack.c.h.b16 %v1585
    %v1850 = vunpack.c.l.b16 %v1586
    %v1851 = vunpack.c.h.b16 %v1586
    %v1852 = vunpack.c.l.b16 %v1587
    %v1853 = vunpack.c.h.b16 %v1587
    %v1854 = vunpack.c.l.b16 %v1588
    %v1855 = vunpack.c.h.b16 %v1588
    %v1856 = vunpack.c.l.b16 %v1589
    %v1857 = vunpack.c.h.b16 %v1589
    %v1858 = vunpack.c.l.b16 %v1590
    %v1859 = vunpack.c.h.b16 %v1590
    %v1860 = vunpack.c.l.b16 %v1591
    %v1861 = vunpack.c.h.b16 %v1591
    %v1862 = vunpack.c.l.b16 %v1592
    %v1863 = vunpack.c.h.b16 %v1592
    %v1864 = vunpack.c.l.b16 %v1593
    %v1865 = vunpack.c.h.b16 %v1593
    %v1866 = vunpack.c.l.b16 %v1594
    %v1867 = vunpack.c.h.b16 %v1594
    %v1868 = vunpack.c.l.b16 %v1595
    %v1869 = vunpack.c.h.b16 %v1595
    %v1870 = vunpack.c.l.b16 %v1596
    %v1871 = vunpack.c.h.b16 %v1596
    %v1872 = vunpack.c.l.b16 %v1597
    %v1873 = vunpack.c.h.b16 %v1597
    %v1874 = vunpack.c.l.b16 %v1598
    %v1875 = vunpack.c.h.b16 %v1598
    %v1876 = vunpack.c.l.b16 %v1599
    %v1877 = vunpack.c.h.b16 %v1599
    %v1878 = vunpack.c.l.b16 %v1600
    %v1879 = vunpack.c.h.b16 %v1600
    %v1880 = vunpack.c.l.b16 %v1601
    %v1881 = vunpack.c.h.b16 %v1601
    %v1882 = vunpack.c.l.b16 %v1602
    %v1883 = vunpack.c.h.b16 %v1602
    %v1884 = vunpack.c.l.b16 %v1603
    %v1885 = vunpack.c.h.b16 %v1603
    %v1886 = vunpack.c.l.b16 %v1604
    %v1887 = vunpack.c.h.b16 %v1604
    %v1888 = vunpack.c.l.b16 %v1605
    %v1889 = vunpack.c.h.b16 %v1605
    %v1890 = vunpack.c.l.b16 %v1606
    %v1891 = vunpack.c.h.b16 %v1606
    %v1892 = vunpack.c.l.b16 %v1607
    %v1893 = vunpack.c.h.b16 %v1607
    %v1894 = vunpack.c.l.b16 %v1608
    %v1895 = vunpack.c.h.b16 %v1608
    %v1896 = vunpack.c.l.b16 %v1609
    %v1897 = vunpack.c.h.b16 %v1609
    %v1898 = vunpack.c.l.b16 %v1610
    %v1899 = vunpack.c.h.b16 %v1610
    %v1900 = vunpack.c.l.b16 %v1611
    %v1901 = vunpack.c.h.b16 %v1611
    %v1902 = vunpack.c.l.b16 %v1612
    %v1903 = vunpack.c.h.b16 %v1612
    %v1904 = vunpack.c.l.b16 %v1613
    %v1905 = vunpack.c.h.b16 %v1613
    %v1906 = vunpack.c.l.b16 %v1614
    %v1907 = vunpack.c.h.b16 %v1614
    %v1908 = vunpack.c.l.b16 %v1615
    %v1909 = vunpack.c.h.b16 %v1615
    %v1910 = vunpack.c.l.b16 %v1616
    %v1911 = vunpack.c.h.b16 %v1616
    %v1912 = vunpack.c.l.b16 %v1617
    %v1913 = vunpack.c.h.b16 %v1617
    %v1914 = vunpack.c.l.b16 %v1618
    %v1915 = vunpack.c.h.b16 %v1618
    %v1916 = vunpack.c.l.b16 %v1619
    %v1917 = vunpack.c.h.b16 %v1619
    %v1918 = vunpack.c.l.b16 %v1620
    %v1919 = vunpack.c.h.b16 %v1620
    %v1920 = vunpack.c.l.b16 %v1621
    %v1921 = vunpack.c.h.b16 %v1621
    %v1922 = vunpack.c.l.b16 %v1622
    %v1923 = vunpack.c.h.b16 %v1622
    %v1924 = vunpack.c.l.b16 %v1623
    %v1925 = vunpack.c.h.b16 %v1623
    %v1926 = vunpack.c.l.b16 %v1624
    %v1927 = vunpack.c.h.b16 %v1624
    %v1928 = vunpack.c.l.b16 %v1625
    %v1929 = vunpack.c.h.b16 %v1625
    %v1930 = vunpack.c.l.b16 %v1626
    %v1931 = vunpack.c.h.b16 %v1626
    %v1932 = vunpack.c.l.b16 %v1627
    %v1933 = vunpack.c.h.b16 %v1627
    %v1934 = vunpack.c.l.b16 %v1628
    %v1935 = vunpack.c.h.b16 %v1628
    %v1936 = vunpack.c.l.b16 %v1629
    %v1937 = vunpack.c.h.b16 %v1629
    %v1938 = vunpack.c.l.b16 %v1630
    %v1939 = vunpack.c.h.b16 %v1630
    %v1940 = vunpack.c.l.b16 %v1631
    %v1941 = vunpack.c.h.b16 %v1631
    %v1942 = vunpack.c.l.b16 %v1632
    %v1943 = vunpack.c.h.b16 %v1632
    %v1944 = vunpack.c.l.b16 %v1633
    %v1945 = vunpack.c.h.b16 %v1633
    %v1946 = vunpack.c.l.b16 %v1634
    %v1947 = vunpack.c.h.b16 %v1634
    %v1948 = vunpack.c.l.b16 %v1635
    %v1949 = vunpack.c.h.b16 %v1635
    %v1950 = vunpack.c.l.b16 %v1636
    %v1951 = vunpack.c.h.b16 %v1636
    %v1952 = vunpack.c.l.b16 %v1637
    %v1953 = vunpack.c.h.b16 %v1637
    %v1954 = vunpack.c.l.b16 %v1638
    %v1955 = vunpack.c.h.b16 %v1638
    %v1956 = vunpack.c.l.b16 %v1639
    %v1957 = vunpack.c.h.b16 %v1639
    %v1958 = vunpack.c.l.b16 %v1640
    %v1959 = vunpack.c.h.b16 %v1640
    %v1960 = vunpack.c.l.b16 %v1641
    %v1961 = vunpack.c.h.b16 %v1641
    %v1962 = vunpack.c.l.b16 %v1642
    %v1963 = vunpack.c.h.b16 %v1642
    %v1964 = vunpack.c.l.b16 %v1643
    %v1965 = vunpack.c.h.b16 %v1643
    %v1966 = vunpack.c.l.b16 %v1644
    %v1967 = vunpack.c.h.b16 %v1644
    %v1968 = vunpack.c.l.b16 %v1645
    %v1969 = vunpack.c.h.b16 %v1645
    %v1970 = vunpack.c.l.b16 %v1646
    %v1971 = vunpack.c.h.b16 %v1646
    %v1972 = vunpack.c.l.b16 %v1647
    %v1973 = vunpack.c.h.b16 %v1647
    %v1974 = vunpack.c.l.b16 %v1648
    %v1975 = vunpack.c.h.b16 %v1648
    %v1976 = vunpack.c.l.b16 %v1649
    %v1977 = vunpack.c.h.b16 %v1649
    %v1978 = vunpack.c.l.b16 %v1650
    %v1979 = vunpack.c.h.b16 %v1650
    %v1980 = vunpack.c.l.b16 %v1651
    %v1981 = vunpack.c.h.b16 %v1651
    %v1982 = vunpack.c.l.b16 %v1652
    %v1983 = vunpack.c.h.b16 %v1652
    %v1984 = vunpack.c.l.b16 %v1653
    %v1985 = vunpack.c.h.b16 %v1653
    %v1986 = vunpack.c.l.b16 %v1654
    %v1987 = vunpack.c.h.b16 %v1654
    %v1988 = vunpack.c.l.b16 %v1655
    %v1989 = vunpack.c.h.b16 %v1655
    %v1990 = vunpack.c.l.b16 %v1656
    %v1991 = vunpack.c.h.b16 %v1656
    %v1992 = vunpack.c.l.b16 %v1657
    %v1993 = vunpack.c.h.b16 %v1657
    %v1994 = vunpack.c.l.b16 %v1658
    %v1995 = vunpack.c.h.b16 %v1658
    %v1996 = vunpack.c.l.b16 %v1659
    %v1997 = vunpack.c.h.b16 %v1659
    %v1998 = vunpack.c.l.b16 %v1660
    %v1999 = vunpack.c.h.b16 %v1660
    %v2000 = vunpack.c.l.b16 %v1661
    %v2001 = vunpack.c.h.b16 %v1661
    %v2002 = vunpack.c.l.b16 %v1662
    %v2003 = vunpack.c.h.b16 %v1662
    %v2004 = vunpack.c.l.b16 %v1663
    %v2005 = vunpack.c.h.b16 %v1663
    %v2006 = vunpack.c.l.b16 %v1664
    %v2007 = vunpack.c.h.b16 %v1664
    %v2008 = vunpack.c.l.b16 %v1665
    %v2009 = vunpack.c.h.b16 %v1665
    %v2010 = vunpack.c.l.b16 %v1666
    %v2011 = vunpack.c.h.b16 %v1666
    %v2012 = vunpack.c.l.b16 %v1667
    %v2013 = vunpack.c.h.b16 %v1667
    %v2014 = vunpack.c.l.b16 %v1668
    %v2015 = vunpack.c.h.b16 %v1668
    %v2016 = vunpack.c.l.b16 %v1669
    %v2017 = vunpack.c.h.b16 %v1669
    %v2018 = vunpack.c.l.b16 %v1670
    %v2019 = vunpack.c.h.b16 %v1670
    %v2020 = vunpack.c.l.b16 %v1671
    %v2021 = vunpack.c.h.b16 %v1671
    %v2022 = vunpack.c.l.b16 %v1672
    %v2023 = vunpack.c.h.b16 %v1672
    %v2024 = vunpack.c.l.b16 %v1673
    %v2025 = vunpack.c.h.b16 %v1673
    %v2026 = vunpack.c.l.b16 %v1674
    %v2027 = vunpack.c.h.b16 %v1674
    %v2028 = vunpack.c.l.b16 %v1675
    %v2029 = vunpack.c.h.b16 %v1675
    %v2030 = vunpack.c.l.b16 %v1676
    %v2031 = vunpack.c.h.b16 %v1676
    %v2032 = vunpack.c.l.b16 %v1677
    %v2033 = vunpack.c.h.b16 %v1677
    %v2034 = vunpack.c.l.b16 %v1678
    %v2035 = vunpack.c.h.b16 %v1678
    %v2036 = vunpack.c.l.b16 %v1679
    %v2037 = vunpack.c.h.b16 %v1679
    %v2038 = vunpack.c.l.b16 %v1680
    %v2039 = vunpack.c.h.b16 %v1680
    %v2040 = vunpack.c.l.b16 %v1681
    %v2041 = vunpack.c.h.b16 %v1681
    %v2042 = vunpack.c.l.b16 %v1682
    %v2043 = vunpack.c.h.b16 %v1682
    %v2044 = vunpack.c.l.b16 %v1683
    %v2045 = vunpack.c.h.b16 %v1683
    %v2046 = vunpack.c.l.b16 %v1684
    %v2047 = vunpack.c.h.b16 %v1684
    %v2048 = vunpack.c.l.b16 %v1685
    %v2049 = vunpack.c.h.b16 %v1685
    %v2050 = vunpack.c.l.b16 %v1686
    %v2051 = vunpack.c.h.b16 %v1686
    %v2052 = vunpack.c.l.b16 %v1687
    %v2053 = vunpack.c.h.b16 %v1687
    %v2054 = vunpack.c.l.b16 %v1688
    %v2055 = vunpack.c.h.b16 %v1688
    %v2056 = vunpack.c.l.b16 %v1689
    %v2057 = vunpack.c.h.b16 %v1689
    %v2058 = vunpack.c.l.b16 %v1690
    %v2059 = vunpack.c.h.b16 %v1690
    %v2060 = vunpack.c.l.b16 %v1691
    %v2061 = vunpack.c.h.b16 %v1691
    %v2062 = vunpack.c.l.b16 %v1692
    %v2063 = vunpack.c.h.b16 %v1692
    %v2064 = vunpack.c.l.b16 %v1693
    %v2065 = vunpack.c.h.b16 %v1693
    %v2066 = vunpack.c.l.b16 %v1694
    %v2067 = vunpack.c.h.b16 %v1694
    %v2068 = vunpack.c.l.b16 %v1695
    %v2069 = vunpack.c.h.b16 %v1695
    %v2070 = vunpack.c.l.b16 %v1696
    %v2071 = vunpack.c.h.b16 %v1696
    %v2072 = vunpack.c.l.b16 %v1697
    %v2073 = vunpack.c.h.b16 %v1697
    %v2074 = vunpack.c.l.b16 %v1698
    %v2075 = vunpack.c.h.b16 %v1698
    %v2076 = vunpack.c.l.b16 %v1699
    %v2077 = vunpack.c.h.b16 %v1699
    %v2078 = vunpack.c.l.b16 %v1700
    %v2079 = vunpack.c.h.b16 %v1700
    %v2080 = vunpack.c.l.b16 %v1701
    %v2081 = vunpack.c.h.b16 %v1701
    %v2082 = vunpack.c.l.b16 %v1702
    %v2083 = vunpack.c.h.b16 %v1702
    %v2084 = vunpack.c.l.b16 %v1703
    %v2085 = vunpack.c.h.b16 %v1703
    %v2086 = vunpack.c.l.b16 %v1704
    %v2087 = vunpack.c.h.b16 %v1704
    %v2088 = vunpack.c.l.b16 %v1705
    %v2089 = vunpack.c.h.b16 %v1705
    %v2090 = vpack.c.b16 %v1836, %v1834
    %v2091 = vpack.c.b16 %v1837, %v1835
    %v2092 = vpack.c.b16 %v1840, %v1838
    %v2093 = vpack.c.b16 %v1841, %v1839
    %v2094 = vpack.c.b16 %v1844, %v1842
    %v2095 = vpack.c.b16 %v1845, %v1843
    %v2096 = vpack.c.b16 %v1848, %v1846
    %v2097 = vpack.c.b16 %v1849, %v1847
    %v2098 = vpack.c.b16 %v1852, %v1850
    %v2099 = vpack.c.b16 %v1853, %v1851
    %v2100 = vpack.c.b16 %v1856, %v1854
    %v2101 = vpack.c.b16 %v1857, %v1855
    %v2102 = vpack.c.b16 %v1860, %v1858
    %v2103 = vpack.c.b16 %v1861, %v1859
    %v2104 = vpack.c.b16 %v1864, %v1862
    %v2105 = vpack.c.b16 %v1865, %v1863
    %v2106 = vpack.c.b16 %v1868, %v1866
    %v2107 = vpack.c.b16 %v1869, %v1867
    %v2108 = vpack.c.b16 %v1872, %v1870
    %v2109 = vpack.c.b16 %v1873, %v1871
    %v2110 = vpack.c.b16 %v1876, %v1874
    %v2111 = vpack.c.b16 %v1877, %v1875
    %v2112 = vpack.c.b16 %v1880, %v1878
    %v2113 = vpack.c.b16 %v1881, %v1879
    %v2114 = vpack.c.b16 %v1884, %v1882
    %v2115 = vpack.c.b16 %v1885, %v1883
    %v2116 = vpack.c.b16 %v1888, %v1886
    %v2117 = vpack.c.b16 %v1889, %v1887
    %v2118 = vpack.c.b16 %v1892, %v1890
    %v2119 = vpack.c.b16 %v1893, %v1891
    %v2120 = vpack.c.b16 %v1896, %v1894
    %v2121 = vpack.c.b16 %v1897, %v1895
    %v2122 = vpack.c.b16 %v1900, %v1898
    %v2123 = vpack.c.b16 %v1901, %v1899
    %v2124 = vpack.c.b16 %v1904, %v1902
    %v2125 = vpack.c.b16 %v1905, %v1903
    %v2126 = vpack.c.b16 %v1908, %v1906
    %v2127 = vpack.c.b16 %v1909, %v1907
    %v2128 = vpack.c.b16 %v1912, %v1910
    %v2129 = vpack.c.b16 %v1913, %v1911
    %v2130 = vpack.c.b16 %v1916, %v1914
    %v2131 = vpack.c.b16 %v1917, %v1915
    %v2132 = vpack.c.b16 %v1920, %v1918
    %v2133 = vpack.c.b16 %v1921, %v1919
    %v2134 = vpack.c.b16 %v1924, %v1922
    %v2135 = vpack.c.b16 %v1925, %v1923
    %v2136 = vpack.c.b16 %v1928, %v1926
    %v2137 = vpack.c.b16 %v1929, %v1927
    %v2138 = vpack.c.b16 %v1932, %v1930
    %v2139 = vpack.c.b16 %v1933, %v1931
    %v2140 = vpack.c.b16 %v1936, %v1934
    %v2141 = vpack.c.b16 %v1937, %v1935
    %v2142 = vpack.c.b16 %v1940, %v1938
    %v2143 = vpack.c.b16 %v1941, %v1939
    %v2144 = vpack.c.b16 %v1944, %v1942
    %v2145 = vpack.c.b16 %v1945, %v1943
    %v2146 = vpack.c.b16 %v1948, %v1946
    %v2147 = vpack.c.b16 %v1949, %v1947
    %v2148 = vpack.c.b16 %v1952, %v1950
    %v2149 = vpack.c.b16 %v1953, %v1951
    %v2150 = vpack.c.b16 %v1956, %v1954
    %v2151 = vpack.c.b16 %v1957, %v1955
    %v2152 = vpack.c.b16 %v1960, %v1958
    %v2153 = vpack.c.b16 %v1961, %v1959
    %v2154 = vpack.c.b16 %v1964, %v1962
    %v2155 = vpack.c.b16 %v1965, %v1963
    %v2156 = vpack.c.b16 %v1968, %v1966
    %v2157 = vpack.c.b16 %v1969, %v1967
    %v2158 = vpack.c.b16 %v1972, %v1970
    %v2159 = vpack.c.b16 %v1973, %v1971
    %v2160 = vpack.c.b16 %v1976, %v1974
    %v2161 = vpack.c.b16 %v1977, %v1975
    %v2162 = vpack.c.b16 %v1980, %v1978
    %v2163 = vpack.c.b16 %v1981, %v1979
    %v2164 = vpack.c.b16 %v1984, %v1982
    %v2165 = vpack.c.b16 %v1985, %v1983
    %v2166 = vpack.c.b16 %v1988, %v1986
    %v2167 = vpack.c.b16 %v1989, %v1987
    %v2168 = vpack.c.b16 %v1992, %v1990
    %v2169 = vpack.c.b16 %v1993, %v1991
    %v2170 = vpack.c.b16 %v1996, %v1994
    %v2171 = vpack.c.b16 %v1997, %v1995
    %v2172 = vpack.c.b16 %v2000, %v1998
    %v2173 = vpack.c.b16 %v2001, %v1999
    %v2174 = vpack.c.b16 %v2004, %v2002
    %v2175 = vpack.c.b16 %v2005, %v2003
    %v2176 = vpack.c.b16 %v2008, %v2006
    %v2177 = vpack.c.b16 %v2009, %v2007
    %v2178 = vpack.c.b16 %v2012, %v2010
    %v2179 = vpack.c.b16 %v2013, %v2011
    %v2180 = vpack.c.b16 %v2016, %v2014
    %v2181 = vpack.c.b16 %v2017, %v2015
    %v2182 = vpack.c.b16 %v2020, %v2018
    %v2183 = vpack.c.b16 %v2021, %v2019
    %v2184 = vpack.c.b16 %v2024, %v2022
    %v2185 = vpack.c.b16 %v2025, %v2023
    %v2186 = vpack.c.b16 %v2028, %v2026
    %v2187 = vpack.c.b16 %v2029, %v2027
    %v2188 = vpack.c.b16 %v2032, %v2030
    %v2189 = vpack.c.b16 %v2033, %v2031
    %v2190 = vpack.c.b16 %v2036, %v2034
    %v2191 = vpack.c.b16 %v2037, %v2035
    %v2192 = vpack.c.b16 %v2040, %v2038
    %v2193 = vpack.c.b16 %v2041, %v2039
    %v2194 = vpack.c.b16 %v2044, %v2042
    %v2195 = vpack.c.b16 %v2045, %v2043
    %v2196 = vpack.c.b16 %v2048, %v2046
    %v2197 = vpack.c.b16 %v2049, %v2047
    %v2198 = vpack.c.b16 %v2052, %v2050
    %v2199 = vpack.c.b16 %v2053, %v2051
    %v2200 = vpack.c.b16 %v2056, %v2054
    %v2201 = vpack.c.b16 %v2057, %v2055
    %v2202 = vpack.c.b16 %v2060, %v2058
    %v2203 = vpack.c.b16 %v2061, %v2059
    %v2204 = vpack.c.b16 %v2064, %v2062
    %v2205 = vpack.c.b16 %v2065, %v2063
    %v2206 = vpack.c.b16 %v2068, %v2066
    %v2207 = vpack.c.b16 %v2069, %v2067
    %v2208 = vpack.c.b16 %v2072, %v2070
    %v2209 = vpack.c.b16 %v2073, %v2071
    %v2210 = vpack.c.b16 %v2076, %v2074
    %v2211 = vpack.c.b16 %v2077, %v2075
    %v2212 = vpack.c.b16 %v2080, %v2078
    %v2213 = vpack.c.b16 %v2081, %v2079
    %v2214 = vpack.c.b16 %v2084, %v2082
    %v2215 = vpack.c.b16 %v2085, %v2083
    %v2216 = vpack.c.b16 %v2088, %v2086
    %v2217 = vpack.c.b16 %v2089, %v2087
    %2346 = vmatpush.bf16.msra.mxu0 %v2104
    %2347 = vmatpush.bf16.msra.mxu0 %v2102
    %2348 = vmatpush.bf16.msra.mxu0 %v2100
    %2349 = vmatpush.bf16.msra.mxu0 %v2098
    %2350 = vmatpush.bf16.msra.mxu0 %v2096
    %2351 = vmatpush.bf16.msra.mxu0 %v2094
    %2352 = vmatpush.bf16.msra.mxu0 %v2092
    %2353 = vmatpush.bf16.msra.mxu0 %v2090
    %2354 = vmatmul.bf16.gmra.mxu0 %v1566
    %v2355 = vpop.f32.mrf.mxu0
    %v2356 = vadd.f32 0.0, %v2355
    %v2357 = vpop.f32.mrf.mxu0
    %v2358 = vadd.f32 0.0, %v2357
    %2359 = vdwg.mxu0
    %2360 = vmatpush.bf16.msra.mxu0 %v2120
    %2361 = vmatpush.bf16.msra.mxu0 %v2118
    %2362 = vmatpush.bf16.msra.mxu0 %v2116
    %2363 = vmatpush.bf16.msra.mxu0 %v2114
    %2364 = vmatpush.bf16.msra.mxu0 %v2112
    %2365 = vmatpush.bf16.msra.mxu0 %v2110
    %2366 = vmatpush.bf16.msra.mxu0 %v2108
    %2367 = vmatpush.bf16.msra.mxu0 %v2106
    %2368 = vmatmul.bf16.gmra.mxu0 %v1567
    %v2369 = vpop.f32.mrf.mxu0
    %v2370 = vadd.f32 %v2356, %v2369
    %v2371 = vpop.f32.mrf.mxu0
    %v2372 = vadd.f32 %v2358, %v2371
    %2373 = vdwg.mxu0
    %2374 = vmatpush.bf16.msra.mxu0 %v2136
    %2375 = vmatpush.bf16.msra.mxu0 %v2134
    %2376 = vmatpush.bf16.msra.mxu0 %v2132
    %2377 = vmatpush.bf16.msra.mxu0 %v2130
    %2378 = vmatpush.bf16.msra.mxu0 %v2128
    %2379 = vmatpush.bf16.msra.mxu0 %v2126
    %2380 = vmatpush.bf16.msra.mxu0 %v2124
    %2381 = vmatpush.bf16.msra.mxu0 %v2122
    %2382 = vmatmul.bf16.gmra.mxu0 %v1568
    %v2383 = vpop.f32.mrf.mxu0
    %v2384 = vadd.f32 %v2370, %v2383
    %v2385 = vpop.f32.mrf.mxu0
    %v2386 = vadd.f32 %v2372, %v2385
    %2387 = vdwg.mxu0
    %2388 = vmatpush.bf16.msra.mxu0 %v2152
    %2389 = vmatpush.bf16.msra.mxu0 %v2150
    %2390 = vmatpush.bf16.msra.mxu0 %v2148
    %2391 = vmatpush.bf16.msra.mxu0 %v2146
    %2392 = vmatpush.bf16.msra.mxu0 %v2144
    %2393 = vmatpush.bf16.msra.mxu0 %v2142
    %2394 = vmatpush.bf16.msra.mxu0 %v2140
    %2395 = vmatpush.bf16.msra.mxu0 %v2138
    %2396 = vmatmul.bf16.gmra.mxu0 %v1569
    %v2397 = vpop.f32.mrf.mxu0
    %v2398 = vadd.f32 %v2384, %v2397
    %v2399 = vpop.f32.mrf.mxu0
    %v2400 = vadd.f32 %v2386, %v2399
    %2401 = vdwg.mxu0
    %2402 = vmatpush.bf16.msra.mxu0 %v2168
    %2403 = vmatpush.bf16.msra.mxu0 %v2166
    %2404 = vmatpush.bf16.msra.mxu0 %v2164
    %2405 = vmatpush.bf16.msra.mxu0 %v2162
    %2406 = vmatpush.bf16.msra.mxu0 %v2160
    %2407 = vmatpush.bf16.msra.mxu0 %v2158
    %2408 = vmatpush.bf16.msra.mxu0 %v2156
    %2409 = vmatpush.bf16.msra.mxu0 %v2154
    %2410 = vmatmul.bf16.gmra.mxu0 %v1570
    %v2411 = vpop.f32.mrf.mxu0
    %v2412 = vadd.f32 %v2398, %v2411
    %v2413 = vpop.f32.mrf.mxu0
    %v2414 = vadd.f32 %v2400, %v2413
    %2415 = vdwg.mxu0
    %2416 = vmatpush.bf16.msra.mxu0 %v2184
    %2417 = vmatpush.bf16.msra.mxu0 %v2182
    %2418 = vmatpush.bf16.msra.mxu0 %v2180
    %2419 = vmatpush.bf16.msra.mxu0 %v2178
    %2420 = vmatpush.bf16.msra.mxu0 %v2176
    %2421 = vmatpush.bf16.msra.mxu0 %v2174
    %2422 = vmatpush.bf16.msra.mxu0 %v2172
    %2423 = vmatpush.bf16.msra.mxu0 %v2170
    %2424 = vmatmul.bf16.gmra.mxu0 %v1571
    %v2425 = vpop.f32.mrf.mxu0
    %v2426 = vadd.f32 %v2412, %v2425
    %v2427 = vpop.f32.mrf.mxu0
    %v2428 = vadd.f32 %v2414, %v2427
    %2429 = vdwg.mxu0
    %2430 = vmatpush.bf16.msra.mxu0 %v2200
    %2431 = vmatpush.bf16.msra.mxu0 %v2198
    %2432 = vmatpush.bf16.msra.mxu0 %v2196
    %2433 = vmatpush.bf16.msra.mxu0 %v2194
    %2434 = vmatpush.bf16.msra.mxu0 %v2192
    %2435 = vmatpush.bf16.msra.mxu0 %v2190
    %2436 = vmatpush.bf16.msra.mxu0 %v2188
    %2437 = vmatpush.bf16.msra.mxu0 %v2186
    %2438 = vmatmul.bf16.gmra.mxu0 %v1572
    %v2439 = vpop.f32.mrf.mxu0
    %v2440 = vadd.f32 %v2426, %v2439
    %v2441 = vpop.f32.mrf.mxu0
    %v2442 = vadd.f32 %v2428, %v2441
    %2443 = vdwg.mxu0
    %2444 = vmatpush.bf16.msra.mxu0 %v2216
    %2445 = vmatpush.bf16.msra.mxu0 %v2214
    %2446 = vmatpush.bf16.msra.mxu0 %v2212
    %2447 = vmatpush.bf16.msra.mxu0 %v2210
    %2448 = vmatpush.bf16.msra.mxu0 %v2208
    %2449 = vmatpush.bf16.msra.mxu0 %v2206
    %2450 = vmatpush.bf16.msra.mxu0 %v2204
    %2451 = vmatpush.bf16.msra.mxu0 %v2202
    %2452 = vmatmul.bf16.gmra.mxu0 %v1573
    %v2453 = vpop.f32.mrf.mxu0
    %v2454 = vadd.f32 %v2440, %v2453
    %v2455 = vpop.f32.mrf.mxu0
    %v2456 = vadd.f32 %v2442, %v2455
    %2457 = vdwg.mxu0
    %2458 = vmatpush.bf16.msra.mxu0 %v2105
    %2459 = vmatpush.bf16.msra.mxu0 %v2103
    %2460 = vmatpush.bf16.msra.mxu0 %v2101
    %2461 = vmatpush.bf16.msra.mxu0 %v2099
    %2462 = vmatpush.bf16.msra.mxu0 %v2097
    %2463 = vmatpush.bf16.msra.mxu0 %v2095
    %2464 = vmatpush.bf16.msra.mxu0 %v2093
    %2465 = vmatpush.bf16.msra.mxu0 %v2091
    %2466 = vmatmul.bf16.gmra.mxu0 %v1566
    %v2467 = vpop.f32.mrf.mxu0
    %v2468 = vadd.f32 0.0, %v2467
    %v2469 = vpop.f32.mrf.mxu0
    %v2470 = vadd.f32 0.0, %v2469
    %2471 = vdwg.mxu0
    %2472 = vmatpush.bf16.msra.mxu0 %v2121
    %2473 = vmatpush.bf16.msra.mxu0 %v2119
    %2474 = vmatpush.bf16.msra.mxu0 %v2117
    %2475 = vmatpush.bf16.msra.mxu0 %v2115
    %2476 = vmatpush.bf16.msra.mxu0 %v2113
    %2477 = vmatpush.bf16.msra.mxu0 %v2111
    %2478 = vmatpush.bf16.msra.mxu0 %v2109
    %2479 = vmatpush.bf16.msra.mxu0 %v2107
    %2480 = vmatmul.bf16.gmra.mxu0 %v1567
    %v2481 = vpop.f32.mrf.mxu0
    %v2482 = vadd.f32 %v2468, %v2481
    %v2483 = vpop.f32.mrf.mxu0
    %v2484 = vadd.f32 %v2470, %v2483
    %2485 = vdwg.mxu0
    %2486 = vmatpush.bf16.msra.mxu0 %v2137
    %2487 = vmatpush.bf16.msra.mxu0 %v2135
    %2488 = vmatpush.bf16.msra.mxu0 %v2133
    %2489 = vmatpush.bf16.msra.mxu0 %v2131
    %2490 = vmatpush.bf16.msra.mxu0 %v2129
    %2491 = vmatpush.bf16.msra.mxu0 %v2127
    %2492 = vmatpush.bf16.msra.mxu0 %v2125
    %2493 = vmatpush.bf16.msra.mxu0 %v2123
    %2494 = vmatmul.bf16.gmra.mxu0 %v1568
    %v2495 = vpop.f32.mrf.mxu0
    %v2496 = vadd.f32 %v2482, %v2495
    %v2497 = vpop.f32.mrf.mxu0
    %v2498 = vadd.f32 %v2484, %v2497
    %2499 = vdwg.mxu0
    %2500 = vmatpush.bf16.msra.mxu0 %v2153
    %2501 = vmatpush.bf16.msra.mxu0 %v2151
    %2502 = vmatpush.bf16.msra.mxu0 %v2149
    %2503 = vmatpush.bf16.msra.mxu0 %v2147
    %2504 = vmatpush.bf16.msra.mxu0 %v2145
    %2505 = vmatpush.bf16.msra.mxu0 %v2143
    %2506 = vmatpush.bf16.msra.mxu0 %v2141
    %2507 = vmatpush.bf16.msra.mxu0 %v2139
    %2508 = vmatmul.bf16.gmra.mxu0 %v1569
    %v2509 = vpop.f32.mrf.mxu0
    %v2510 = vadd.f32 %v2496, %v2509
    %v2511 = vpop.f32.mrf.mxu0
    %v2512 = vadd.f32 %v2498, %v2511
    %2513 = vdwg.mxu0
    %2514 = vmatpush.bf16.msra.mxu0 %v2169
    %2515 = vmatpush.bf16.msra.mxu0 %v2167
    %2516 = vmatpush.bf16.msra.mxu0 %v2165
    %2517 = vmatpush.bf16.msra.mxu0 %v2163
    %2518 = vmatpush.bf16.msra.mxu0 %v2161
    %2519 = vmatpush.bf16.msra.mxu0 %v2159
    %2520 = vmatpush.bf16.msra.mxu0 %v2157
    %2521 = vmatpush.bf16.msra.mxu0 %v2155
    %2522 = vmatmul.bf16.gmra.mxu0 %v1570
    %v2523 = vpop.f32.mrf.mxu0
    %v2524 = vadd.f32 %v2510, %v2523
    %v2525 = vpop.f32.mrf.mxu0
    %v2526 = vadd.f32 %v2512, %v2525
    %2527 = vdwg.mxu0
    %2528 = vmatpush.bf16.msra.mxu0 %v2185
    %2529 = vmatpush.bf16.msra.mxu0 %v2183
    %2530 = vmatpush.bf16.msra.mxu0 %v2181
    %2531 = vmatpush.bf16.msra.mxu0 %v2179
    %2532 = vmatpush.bf16.msra.mxu0 %v2177
    %2533 = vmatpush.bf16.msra.mxu0 %v2175
    %2534 = vmatpush.bf16.msra.mxu0 %v2173
    %2535 = vmatpush.bf16.msra.mxu0 %v2171
    %2536 = vmatmul.bf16.gmra.mxu0 %v1571
    %v2537 = vpop.f32.mrf.mxu0
    %v2538 = vadd.f32 %v2524, %v2537
    %v2539 = vpop.f32.mrf.mxu0
    %v2540 = vadd.f32 %v2526, %v2539
    %2541 = vdwg.mxu0
    %2542 = vmatpush.bf16.msra.mxu0 %v2201
    %2543 = vmatpush.bf16.msra.mxu0 %v2199
    %2544 = vmatpush.bf16.msra.mxu0 %v2197
    %2545 = vmatpush.bf16.msra.mxu0 %v2195
    %2546 = vmatpush.bf16.msra.mxu0 %v2193
    %2547 = vmatpush.bf16.msra.mxu0 %v2191
    %2548 = vmatpush.bf16.msra.mxu0 %v2189
    %2549 = vmatpush.bf16.msra.mxu0 %v2187
    %2550 = vmatmul.bf16.gmra.mxu0 %v1572
    %v2551 = vpop.f32.mrf.mxu0
    %v2552 = vadd.f32 %v2538, %v2551
    %v2553 = vpop.f32.mrf.mxu0
    %v2554 = vadd.f32 %v2540, %v2553
    %2555 = vdwg.mxu0
    %2556 = vmatpush.bf16.msra.mxu0 %v2217
    %2557 = vmatpush.bf16.msra.mxu0 %v2215
    %2558 = vmatpush.bf16.msra.mxu0 %v2213
    %2559 = vmatpush.bf16.msra.mxu0 %v2211
    %2560 = vmatpush.bf16.msra.mxu0 %v2209
    %2561 = vmatpush.bf16.msra.mxu0 %v2207
    %2562 = vmatpush.bf16.msra.mxu0 %v2205
    %2563 = vmatpush.bf16.msra.mxu0 %v2203
    %2564 = vmatmul.bf16.gmra.mxu0 %v1573
    %v2565 = vpop.f32.mrf.mxu0
    %v2566 = vadd.f32 %v2552, %v2565
    %v2567 = vpop.f32.mrf.mxu0
    %v2568 = vadd.f32 %v2554, %v2567
    %2569 = vdwg.mxu0
    %v2570 = vadd.f32 %v2454, %v2456
    %v2571 = vrot.slane %v2570, 4
    %v2572 = vadd.f32 %v2570, %v2571
    %v2573 = vrot.slane %v2572, 2
    %v2574 = vadd.f32 %v2572, %v2573
    %v2575 = vrot.slane %v2574, 1
    %v2576 = vadd.f32 %v2574, %v2575
    %v2577 = vadd.f32 %v2566, %v2568
    %v2578 = vrot.slane %v2577, 4
    %v2579 = vadd.f32 %v2577, %v2578
    %v2580 = vrot.slane %v2579, 2
    %v2581 = vadd.f32 %v2579, %v2580
    %v2582 = vrot.slane %v2581, 1
    %v2583 = vadd.f32 %v2581, %v2582
    %v2584 = vmul.f32 %v2454, %v2454
    %v2585 = vmul.f32 %v2566, %v2566
    %v2586 = vmul.f32 %v2456, %v2456
    %v2587 = vmul.f32 %v2568, %v2568
    %v2588 = vadd.f32 %v2584, %v2586
    %v2589 = vrot.slane %v2588, 4
    %v2590 = vadd.f32 %v2588, %v2589
    %v2591 = vrot.slane %v2590, 2
    %v2592 = vadd.f32 %v2590, %v2591
    %v2593 = vrot.slane %v2592, 1
    %v2594 = vadd.f32 %v2592, %v2593
    %v2595 = vadd.f32 %v2585, %v2587
    %v2596 = vrot.slane %v2595, 4
    %v2597 = vadd.f32 %v2595, %v2596
    %v2598 = vrot.slane %v2597, 2
    %v2599 = vadd.f32 %v2597, %v2598
    %v2600 = vrot.slane %v2599, 1
    %v2601 = vadd.f32 %v2599, %v2600
    %v2602 = vsel %vm492, %v2576, %v2594
    %v2603 = vsel %vm492, %v2583, %v2601
    %v2604 = vadd.f32 %v2602, %v2603
    %2606 = vrot.lane.b32.xlu0 %v2604, 64
    %v2607 = vpop.permute.xlu0 %2606
    %v2609 = vadd.f32 %v2604, %v2607
    %2611 = vrot.lane.b32.xlu0 %v2609, 96
    %v2612 = vpop.permute.xlu0 %2611
    %v2614 = vadd.f32 %v2609, %v2612
    %v2615 = vrcp.pop 128.0
    %v2616 = vmul.f32 128.0, %v2615
    %v2617 = vsub.f32 1.0, %v2616
    %v2618 = vmul.f32 %v2615, %v2617
    %v2619 = vadd.f32 %v2615, %v2618
    %vm2620 = vweird.f32 %v2615
    %v2621 = vsel %vm2620, %v2615, %v2619
    %v2622 = vmul.f32 %v2614, %v2621
    %v2623 = vmul.f32 %v2622, %v2622
    %v2625 = vrot.slane %v2623, 7
    %v2627 = vsub.f32 %v2622, %v2625
    %v2628 = vmax.f32 %v2627, 0.0
    %v2629 = vld [vmem:[%s4] sm:$0x1]
    %v2630 = vadd.f32 %v2628, 1e-05
    %v2631 = vrsqrt.pop %v2630
    %v2632 = vmul.f32 %v2631, %v2630
    %v2633 = vmul.f32 %v2632, %v2631
    %v2634 = vmul.f32 0.5, %v2633
    %v2635 = vsub.f32 1.5, %v2634
    %v2636 = vmul.f32 %v2631, %v2635
    %vm2637 = vweird.f32 %v2630
    %vm2638 = vweird.f32 %v2631
    %vm2639 = vmor %vm2637, %vm2638
    %v2640 = vsel %vm2639, %v2631, %v2636
    %2642 = vst [vmem:[#allocation1] sm:$0xff] %v2640
    %s2643 = scalar_lea.vmem [#allocation1], 1
    %v2644 = vld [vmem:[%s2643] ss:$9 sm:$0xff]
    %v2646 = vmul.f32 %v2629, %v2644
    %v2647 = vld [vmem:[%s5] sm:$0x1]
    %v2648 = vmul.f32 %v2622, %v2646
    %v2649 = vsub.f32 %v2647, %v2648
    %v2651 = vperm.slane %v2646, 0
    %2652 = vrot.lane.b32.xlu0 %v2651, 32
    %v2653 = vpop.permute.xlu0 %2652
    %2655 = vrot.lane.b32.xlu0 %v2651, 64
    %v2656 = vpop.permute.xlu0 %2655
    %2658 = vrot.lane.b32.xlu0 %v2651, 96
    %v2659 = vpop.permute.xlu0 %2658
    %v2661 = vsel %vm1273, %v2646, %v2653
    %v2662 = vsel %vm1277, %v2661, %v2656
    %v2663 = vsel %vm1281, %v2662, %v2659
    %v2665 = vperm.slane %v2649, 0
    %2666 = vrot.lane.b32.xlu0 %v2665, 32
    %v2667 = vpop.permute.xlu0 %2666
    %2669 = vrot.lane.b32.xlu0 %v2665, 64
    %v2670 = vpop.permute.xlu0 %2669
    %2672 = vrot.lane.b32.xlu0 %v2665, 96
    %v2673 = vpop.permute.xlu0 %2672
    %v2675 = vsel %vm1273, %v2649, %v2667
    %v2676 = vsel %vm1277, %v2675, %v2670
    %v2677 = vsel %vm1281, %v2676, %v2673
    %v2678 = vperm.slane %v2663, 0
    %v2679 = vmul.f32 %v2454, %v2678
    %v2680 = vmul.f32 %v2566, %v2678
    %v2681 = vmul.f32 %v2456, %v2678
    %v2682 = vmul.f32 %v2568, %v2678
    %v2683 = vperm.slane %v2677, 0
    %v2684 = vadd.f32 %v2679, %v2683
    %v2685 = vadd.f32 %v2680, %v2683
    %v2686 = vadd.f32 %v2681, %v2683
    %v2687 = vadd.f32 %v2682, %v2683
    %v2688 = vmax.f32 %v2684, 0.0
    %v2689 = vmax.f32 %v2685, 0.0
    %v2690 = vmax.f32 %v2686, 0.0
    %v2691 = vmax.f32 %v2687, 0.0
    %v2696 = vrot.slane %v2689, 4
    %v2697 = vrot.slane %v2691, 4
    %v2698 = vsel %vm1353, %v2688, %v2696
    %v2699 = vsel %vm1353, %v2696, %v2688
    %v2700 = vrot.slane %v2699, 4
    %v2701 = vsel %vm1353, %v2690, %v2697
    %v2702 = vsel %vm1353, %v2697, %v2690
    %v2703 = vrot.slane %v2702, 4
    %v2709 = vunpack.c.l.s4 1966171168
    %v2710 = vunpack.c.0.s8 %v2709
    %v2711 = vperm.slane %v2698, %v2710
    %v2713 = vunpack.c.l.s4 1966171168
    %v2714 = vunpack.c.0.s8 %v2713
    %v2715 = vperm.slane %v2700, %v2714
    %v2717 = vunpack.c.l.s4 1966171168
    %v2718 = vunpack.c.0.s8 %v2717
    %v2719 = vperm.slane %v2701, %v2718
    %v2721 = vunpack.c.l.s4 1966171168
    %v2722 = vunpack.c.0.s8 %v2721
    %v2723 = vperm.slane %v2703, %v2722
    %vm2724 = vcmp.lt.s32.totalorder %v405, 0
    %v2725 = vsub.s32 0, %v405
    %v2726 = vsel %vm2724, %v2725, %v405
    %v2727 = vshrl.u32 %v2726, 2
    %v2728 = vand.u32 %v2726, 3
    %v2729 = vsub.s32 0, %v2728
    %v2730 = vsel %vm2724, %v2729, %v2728
    %vm2731 = vcmp.ne.s32.totalorder %v2730, 0
    %vm2732 = vcmp.lt.s32.totalorder %v2730, 0
    %vm2733 = vmand %vm2732, %vm2731
    %v2734 = vadd.s32 %v2730, 4
    %v2735 = vsel %vm2733, %v2734, %v2730
    %vm2736 = vcmp.eq.s32.totalorder %v2735, 0
    %vm2737 = vcmp.eq.s32.totalorder %v2735, 3
    %2742 = vst [vmem:[#allocation1] ss:$4 sm:$0xff] %v2711
    %s2743 = scalar_lea.vmem [#allocation1], 1
    %2744 = vst [vmem:[%s2743] ss:$4 sm:$0xff] %v2715
    %s2745 = scalar_lea.vmem [#allocation1], 2
    %2746 = vst [vmem:[%s2745] ss:$4 sm:$0xff] %v2719
    %s2747 = scalar_lea.vmem [#allocation1], 3
    %2748 = vst [vmem:[%s2747] ss:$4 sm:$0xff] %v2723
    %v2749 = vld.sshfl [vmem:[#allocation1 + $0x10] sm:$0xff pattern:$0x73625140]
    %v2750 = vld.sshfl [vmem:[#allocation1 + $0x18] sm:$0xff pattern:$0x73625140]
    %v2751 = vrot.slane %v2749, 7
    %v2752 = vrot.slane %v2750, 7
    %v2755 = vsel %vm492, 0.0, %v2751
    %v2756 = vsel %vm492, 0.0, %v2752
    %v2757 = vsel %vm2736, 1, 0
    %vm2758 = vcmp.eq.s32.totalorder %v2757, 1
    %v2759 = vsel %vm2758, 0.0, %v2755
    %v2760 = vsel %vm2758, 0.0, %v2756
    %2761 = vst [vmem:[#allocation1] ss:$4 sm:$0xff] %v2711
    %s2762 = scalar_lea.vmem [#allocation1], 1
    %2763 = vst [vmem:[%s2762] ss:$4 sm:$0xff] %v2715
    %s2764 = scalar_lea.vmem [#allocation1], 2
    %2765 = vst [vmem:[%s2764] ss:$4 sm:$0xff] %v2719
    %s2766 = scalar_lea.vmem [#allocation1], 3
    %2767 = vst [vmem:[%s2766] ss:$4 sm:$0xff] %v2723
    %v2768 = vld.sshfl [vmem:[#allocation1] sm:$0xff pattern:$0x73625140]
    %v2769 = vld.sshfl [vmem:[#allocation1 + $0x8] sm:$0xff pattern:$0x73625140]
    %v2770 = vrot.slane %v2768, 1
    %v2771 = vrot.slane %v2769, 1
    %v2774 = vsel %vm536, %v2770, 0.0
    %v2775 = vsel %vm536, %v2771, 0.0
    %v2776 = vsel %vm2737, 1, 0
    %vm2777 = vcmp.eq.s32.totalorder %v2776, 1
    %v2778 = vsel %vm2777, 0.0, %v2774
    %v2779 = vsel %vm2777, 0.0, %v2775
    %2780 = vst [vmem:[#allocation1] ss:$4 sm:$0xff] %v2711
    %s2781 = scalar_lea.vmem [#allocation1], 1
    %2782 = vst [vmem:[%s2781] ss:$4 sm:$0xff] %v2715
    %s2783 = scalar_lea.vmem [#allocation1], 2
    %2784 = vst [vmem:[%s2783] ss:$4 sm:$0xff] %v2719
    %s2785 = scalar_lea.vmem [#allocation1], 3
    %2786 = vst [vmem:[%s2785] ss:$4 sm:$0xff] %v2723
    %v2787 = vld.sshfl [vmem:[#allocation1] sm:$0xff pattern:$0x73625140]
    %v2788 = vld.sshfl [vmem:[#allocation1 + $0x8] sm:$0xff pattern:$0x73625140]
    %2791 = vst [vmem:[#allocation1] ss:$4 sm:$0xff] %v2711
    %s2792 = scalar_lea.vmem [#allocation1], 1
    %2793 = vst [vmem:[%s2792] ss:$4 sm:$0xff] %v2715
    %s2794 = scalar_lea.vmem [#allocation1], 2
    %2795 = vst [vmem:[%s2794] ss:$4 sm:$0xff] %v2719
    %s2796 = scalar_lea.vmem [#allocation1], 3
    %2797 = vst [vmem:[%s2796] ss:$4 sm:$0xff] %v2723
    %v2798 = vld.sshfl [vmem:[#allocation1 + $0x10] sm:$0xff pattern:$0x73625140]
    %v2799 = vld.sshfl [vmem:[#allocation1 + $0x18] sm:$0xff pattern:$0x73625140]
    %v2802 = vpack.c.bf16 %v2759, %v2759
    %v2803 = vpack.c.bf16 %v2760, %v2760
    %v2804 = vpack.c.bf16 %v2787, %v2787
    %v2805 = vpack.c.bf16 %v2788, %v2788
    %v2806 = vpack.c.bf16 %v2798, %v2798
    %v2807 = vpack.c.bf16 %v2799, %v2799
    %v2808 = vpack.c.bf16 %v2778, %v2778
    %v2809 = vpack.c.bf16 %v2779, %v2779
    %s2810 = sshll.u32 %s1575, 4
    %2811 = dma.done %s336, %s2810
    %v2812 = vld [vmem:[#allocation3] sm:$0xff]
    %v2813 = vld [vmem:[#allocation3 + $0x8] sm:$0xff]
    %v2814 = vld [vmem:[#allocation3 + $0x10] sm:$0xff]
    %v2815 = vld [vmem:[#allocation3 + $0x18] sm:$0xff]
    %v2816 = vld [vmem:[#allocation3 + $0x20] sm:$0xff]
    %v2817 = vld [vmem:[#allocation3 + $0x28] sm:$0xff]
    %v2818 = vld [vmem:[#allocation3 + $0x30] sm:$0xff]
    %v2819 = vld [vmem:[#allocation3 + $0x38] sm:$0xff]
    %v2820 = vld [vmem:[#allocation3 + $0x40] sm:$0xff]
    %v2821 = vld [vmem:[#allocation3 + $0x48] sm:$0xff]
    %v2822 = vld [vmem:[#allocation3 + $0x50] sm:$0xff]
    %v2823 = vld [vmem:[#allocation3 + $0x58] sm:$0xff]
    %v2824 = vld [vmem:[#allocation3 + $0x60] sm:$0xff]
    %v2825 = vld [vmem:[#allocation3 + $0x68] sm:$0xff]
    %v2826 = vld [vmem:[#allocation3 + $0x70] sm:$0xff]
    %v2827 = vld [vmem:[#allocation3 + $0x78] sm:$0xff]
    %v2828 = vld [vmem:[#allocation3 + $0x80] sm:$0xff]
    %v2829 = vld [vmem:[#allocation3 + $0x88] sm:$0xff]
    %v2830 = vld [vmem:[#allocation3 + $0x90] sm:$0xff]
    %v2831 = vld [vmem:[#allocation3 + $0x98] sm:$0xff]
    %v2832 = vld [vmem:[#allocation3 + $0xa0] sm:$0xff]
    %v2833 = vld [vmem:[#allocation3 + $0xa8] sm:$0xff]
    %v2834 = vld [vmem:[#allocation3 + $0xb0] sm:$0xff]
    %v2835 = vld [vmem:[#allocation3 + $0xb8] sm:$0xff]
    %v2836 = vld [vmem:[#allocation3 + $0xc0] sm:$0xff]
    %v2837 = vld [vmem:[#allocation3 + $0xc8] sm:$0xff]
    %v2838 = vld [vmem:[#allocation3 + $0xd0] sm:$0xff]
    %v2839 = vld [vmem:[#allocation3 + $0xd8] sm:$0xff]
    %v2840 = vld [vmem:[#allocation3 + $0xe0] sm:$0xff]
    %v2841 = vld [vmem:[#allocation3 + $0xe8] sm:$0xff]
    %v2842 = vld [vmem:[#allocation3 + $0xf0] sm:$0xff]
    %v2843 = vld [vmem:[#allocation3 + $0xf8] sm:$0xff]
    %v2844 = vld [vmem:[#allocation3 + $0x100] sm:$0xff]
    %v2845 = vld [vmem:[#allocation3 + $0x108] sm:$0xff]
    %v2846 = vld [vmem:[#allocation3 + $0x110] sm:$0xff]
    %v2847 = vld [vmem:[#allocation3 + $0x118] sm:$0xff]
    %v2848 = vld [vmem:[#allocation3 + $0x120] sm:$0xff]
    %v2849 = vld [vmem:[#allocation3 + $0x128] sm:$0xff]
    %v2850 = vld [vmem:[#allocation3 + $0x130] sm:$0xff]
    %v2851 = vld [vmem:[#allocation3 + $0x138] sm:$0xff]
    %v2852 = vld [vmem:[#allocation3 + $0x140] sm:$0xff]
    %v2853 = vld [vmem:[#allocation3 + $0x148] sm:$0xff]
    %v2854 = vld [vmem:[#allocation3 + $0x150] sm:$0xff]
    %v2855 = vld [vmem:[#allocation3 + $0x158] sm:$0xff]
    %v2856 = vld [vmem:[#allocation3 + $0x160] sm:$0xff]
    %v2857 = vld [vmem:[#allocation3 + $0x168] sm:$0xff]
    %v2858 = vld [vmem:[#allocation3 + $0x170] sm:$0xff]
    %v2859 = vld [vmem:[#allocation3 + $0x178] sm:$0xff]
    %v2860 = vld [vmem:[#allocation3 + $0x180] sm:$0xff]
    %v2861 = vld [vmem:[#allocation3 + $0x188] sm:$0xff]
    %v2862 = vld [vmem:[#allocation3 + $0x190] sm:$0xff]
    %v2863 = vld [vmem:[#allocation3 + $0x198] sm:$0xff]
    %v2864 = vld [vmem:[#allocation3 + $0x1a0] sm:$0xff]
    %v2865 = vld [vmem:[#allocation3 + $0x1a8] sm:$0xff]
    %v2866 = vld [vmem:[#allocation3 + $0x1b0] sm:$0xff]
    %v2867 = vld [vmem:[#allocation3 + $0x1b8] sm:$0xff]
    %v2868 = vld [vmem:[#allocation3 + $0x1c0] sm:$0xff]
    %v2869 = vld [vmem:[#allocation3 + $0x1c8] sm:$0xff]
    %v2870 = vld [vmem:[#allocation3 + $0x1d0] sm:$0xff]
    %v2871 = vld [vmem:[#allocation3 + $0x1d8] sm:$0xff]
    %v2872 = vld [vmem:[#allocation3 + $0x1e0] sm:$0xff]
    %v2873 = vld [vmem:[#allocation3 + $0x1e8] sm:$0xff]
    %v2874 = vld [vmem:[#allocation3 + $0x1f0] sm:$0xff]
    %v2875 = vld [vmem:[#allocation3 + $0x1f8] sm:$0xff]
    %v2876 = vld [vmem:[#allocation3 + $0x200] sm:$0xff]
    %v2877 = vld [vmem:[#allocation3 + $0x208] sm:$0xff]
    %v2878 = vld [vmem:[#allocation3 + $0x210] sm:$0xff]
    %v2879 = vld [vmem:[#allocation3 + $0x218] sm:$0xff]
    %v2880 = vld [vmem:[#allocation3 + $0x220] sm:$0xff]
    %v2881 = vld [vmem:[#allocation3 + $0x228] sm:$0xff]
    %v2882 = vld [vmem:[#allocation3 + $0x230] sm:$0xff]
    %v2883 = vld [vmem:[#allocation3 + $0x238] sm:$0xff]
    %v2884 = vld [vmem:[#allocation3 + $0x240] sm:$0xff]
    %v2885 = vld [vmem:[#allocation3 + $0x248] sm:$0xff]
    %v2886 = vld [vmem:[#allocation3 + $0x250] sm:$0xff]
    %v2887 = vld [vmem:[#allocation3 + $0x258] sm:$0xff]
    %v2888 = vld [vmem:[#allocation3 + $0x260] sm:$0xff]
    %v2889 = vld [vmem:[#allocation3 + $0x268] sm:$0xff]
    %v2890 = vld [vmem:[#allocation3 + $0x270] sm:$0xff]
    %v2891 = vld [vmem:[#allocation3 + $0x278] sm:$0xff]
    %v2892 = vld [vmem:[#allocation3 + $0x280] sm:$0xff]
    %v2893 = vld [vmem:[#allocation3 + $0x288] sm:$0xff]
    %v2894 = vld [vmem:[#allocation3 + $0x290] sm:$0xff]
    %v2895 = vld [vmem:[#allocation3 + $0x298] sm:$0xff]
    %v2896 = vld [vmem:[#allocation3 + $0x2a0] sm:$0xff]
    %v2897 = vld [vmem:[#allocation3 + $0x2a8] sm:$0xff]
    %v2898 = vld [vmem:[#allocation3 + $0x2b0] sm:$0xff]
    %v2899 = vld [vmem:[#allocation3 + $0x2b8] sm:$0xff]
    %v2900 = vld [vmem:[#allocation3 + $0x2c0] sm:$0xff]
    %v2901 = vld [vmem:[#allocation3 + $0x2c8] sm:$0xff]
    %v2902 = vld [vmem:[#allocation3 + $0x2d0] sm:$0xff]
    %v2903 = vld [vmem:[#allocation3 + $0x2d8] sm:$0xff]
    %v2904 = vld [vmem:[#allocation3 + $0x2e0] sm:$0xff]
    %v2905 = vld [vmem:[#allocation3 + $0x2e8] sm:$0xff]
    %v2906 = vld [vmem:[#allocation3 + $0x2f0] sm:$0xff]
    %v2907 = vld [vmem:[#allocation3 + $0x2f8] sm:$0xff]
    %v2908 = vld [vmem:[#allocation3 + $0x300] sm:$0xff]
    %v2909 = vld [vmem:[#allocation3 + $0x308] sm:$0xff]
    %v2910 = vld [vmem:[#allocation3 + $0x310] sm:$0xff]
    %v2911 = vld [vmem:[#allocation3 + $0x318] sm:$0xff]
    %v2912 = vld [vmem:[#allocation3 + $0x320] sm:$0xff]
    %v2913 = vld [vmem:[#allocation3 + $0x328] sm:$0xff]
    %v2914 = vld [vmem:[#allocation3 + $0x330] sm:$0xff]
    %v2915 = vld [vmem:[#allocation3 + $0x338] sm:$0xff]
    %v2916 = vld [vmem:[#allocation3 + $0x340] sm:$0xff]
    %v2917 = vld [vmem:[#allocation3 + $0x348] sm:$0xff]
    %v2918 = vld [vmem:[#allocation3 + $0x350] sm:$0xff]
    %v2919 = vld [vmem:[#allocation3 + $0x358] sm:$0xff]
    %v2920 = vld [vmem:[#allocation3 + $0x360] sm:$0xff]
    %v2921 = vld [vmem:[#allocation3 + $0x368] sm:$0xff]
    %v2922 = vld [vmem:[#allocation3 + $0x370] sm:$0xff]
    %v2923 = vld [vmem:[#allocation3 + $0x378] sm:$0xff]
    %v2924 = vld [vmem:[#allocation3 + $0x380] sm:$0xff]
    %v2925 = vld [vmem:[#allocation3 + $0x388] sm:$0xff]
    %v2926 = vld [vmem:[#allocation3 + $0x390] sm:$0xff]
    %v2927 = vld [vmem:[#allocation3 + $0x398] sm:$0xff]
    %v2928 = vld [vmem:[#allocation3 + $0x3a0] sm:$0xff]
    %v2929 = vld [vmem:[#allocation3 + $0x3a8] sm:$0xff]
    %v2930 = vld [vmem:[#allocation3 + $0x3b0] sm:$0xff]
    %v2931 = vld [vmem:[#allocation3 + $0x3b8] sm:$0xff]
    %v2932 = vld [vmem:[#allocation3 + $0x3c0] sm:$0xff]
    %v2933 = vld [vmem:[#allocation3 + $0x3c8] sm:$0xff]
    %v2934 = vld [vmem:[#allocation3 + $0x3d0] sm:$0xff]
    %v2935 = vld [vmem:[#allocation3 + $0x3d8] sm:$0xff]
    %v2936 = vld [vmem:[#allocation3 + $0x3e0] sm:$0xff]
    %v2937 = vld [vmem:[#allocation3 + $0x3e8] sm:$0xff]
    %v2938 = vld [vmem:[#allocation3 + $0x3f0] sm:$0xff]
    %v2939 = vld [vmem:[#allocation3 + $0x3f8] sm:$0xff]
    %v3068 = vunpack.c.l.b16 %v2812
    %v3069 = vunpack.c.h.b16 %v2812
    %v3070 = vunpack.c.l.b16 %v2813
    %v3071 = vunpack.c.h.b16 %v2813
    %v3072 = vunpack.c.l.b16 %v2814
    %v3073 = vunpack.c.h.b16 %v2814
    %v3074 = vunpack.c.l.b16 %v2815
    %v3075 = vunpack.c.h.b16 %v2815
    %v3076 = vunpack.c.l.b16 %v2816
    %v3077 = vunpack.c.h.b16 %v2816
    %v3078 = vunpack.c.l.b16 %v2817
    %v3079 = vunpack.c.h.b16 %v2817
    %v3080 = vunpack.c.l.b16 %v2818
    %v3081 = vunpack.c.h.b16 %v2818
    %v3082 = vunpack.c.l.b16 %v2819
    %v3083 = vunpack.c.h.b16 %v2819
    %v3084 = vunpack.c.l.b16 %v2820
    %v3085 = vunpack.c.h.b16 %v2820
    %v3086 = vunpack.c.l.b16 %v2821
    %v3087 = vunpack.c.h.b16 %v2821
    %v3088 = vunpack.c.l.b16 %v2822
    %v3089 = vunpack.c.h.b16 %v2822
    %v3090 = vunpack.c.l.b16 %v2823
    %v3091 = vunpack.c.h.b16 %v2823
    %v3092 = vunpack.c.l.b16 %v2824
    %v3093 = vunpack.c.h.b16 %v2824
    %v3094 = vunpack.c.l.b16 %v2825
    %v3095 = vunpack.c.h.b16 %v2825
    %v3096 = vunpack.c.l.b16 %v2826
    %v3097 = vunpack.c.h.b16 %v2826
    %v3098 = vunpack.c.l.b16 %v2827
    %v3099 = vunpack.c.h.b16 %v2827
    %v3100 = vunpack.c.l.b16 %v2828
    %v3101 = vunpack.c.h.b16 %v2828
    %v3102 = vunpack.c.l.b16 %v2829
    %v3103 = vunpack.c.h.b16 %v2829
    %v3104 = vunpack.c.l.b16 %v2830
    %v3105 = vunpack.c.h.b16 %v2830
    %v3106 = vunpack.c.l.b16 %v2831
    %v3107 = vunpack.c.h.b16 %v2831
    %v3108 = vunpack.c.l.b16 %v2832
    %v3109 = vunpack.c.h.b16 %v2832
    %v3110 = vunpack.c.l.b16 %v2833
    %v3111 = vunpack.c.h.b16 %v2833
    %v3112 = vunpack.c.l.b16 %v2834
    %v3113 = vunpack.c.h.b16 %v2834
    %v3114 = vunpack.c.l.b16 %v2835
    %v3115 = vunpack.c.h.b16 %v2835
    %v3116 = vunpack.c.l.b16 %v2836
    %v3117 = vunpack.c.h.b16 %v2836
    %v3118 = vunpack.c.l.b16 %v2837
    %v3119 = vunpack.c.h.b16 %v2837
    %v3120 = vunpack.c.l.b16 %v2838
    %v3121 = vunpack.c.h.b16 %v2838
    %v3122 = vunpack.c.l.b16 %v2839
    %v3123 = vunpack.c.h.b16 %v2839
    %v3124 = vunpack.c.l.b16 %v2840
    %v3125 = vunpack.c.h.b16 %v2840
    %v3126 = vunpack.c.l.b16 %v2841
    %v3127 = vunpack.c.h.b16 %v2841
    %v3128 = vunpack.c.l.b16 %v2842
    %v3129 = vunpack.c.h.b16 %v2842
    %v3130 = vunpack.c.l.b16 %v2843
    %v3131 = vunpack.c.h.b16 %v2843
    %v3132 = vunpack.c.l.b16 %v2844
    %v3133 = vunpack.c.h.b16 %v2844
    %v3134 = vunpack.c.l.b16 %v2845
    %v3135 = vunpack.c.h.b16 %v2845
    %v3136 = vunpack.c.l.b16 %v2846
    %v3137 = vunpack.c.h.b16 %v2846
    %v3138 = vunpack.c.l.b16 %v2847
    %v3139 = vunpack.c.h.b16 %v2847
    %v3140 = vunpack.c.l.b16 %v2848
    %v3141 = vunpack.c.h.b16 %v2848
    %v3142 = vunpack.c.l.b16 %v2849
    %v3143 = vunpack.c.h.b16 %v2849
    %v3144 = vunpack.c.l.b16 %v2850
    %v3145 = vunpack.c.h.b16 %v2850
    %v3146 = vunpack.c.l.b16 %v2851
    %v3147 = vunpack.c.h.b16 %v2851
    %v3148 = vunpack.c.l.b16 %v2852
    %v3149 = vunpack.c.h.b16 %v2852
    %v3150 = vunpack.c.l.b16 %v2853
    %v3151 = vunpack.c.h.b16 %v2853
    %v3152 = vunpack.c.l.b16 %v2854
    %v3153 = vunpack.c.h.b16 %v2854
    %v3154 = vunpack.c.l.b16 %v2855
    %v3155 = vunpack.c.h.b16 %v2855
    %v3156 = vunpack.c.l.b16 %v2856
    %v3157 = vunpack.c.h.b16 %v2856
    %v3158 = vunpack.c.l.b16 %v2857
    %v3159 = vunpack.c.h.b16 %v2857
    %v3160 = vunpack.c.l.b16 %v2858
    %v3161 = vunpack.c.h.b16 %v2858
    %v3162 = vunpack.c.l.b16 %v2859
    %v3163 = vunpack.c.h.b16 %v2859
    %v3164 = vunpack.c.l.b16 %v2860
    %v3165 = vunpack.c.h.b16 %v2860
    %v3166 = vunpack.c.l.b16 %v2861
    %v3167 = vunpack.c.h.b16 %v2861
    %v3168 = vunpack.c.l.b16 %v2862
    %v3169 = vunpack.c.h.b16 %v2862
    %v3170 = vunpack.c.l.b16 %v2863
    %v3171 = vunpack.c.h.b16 %v2863
    %v3172 = vunpack.c.l.b16 %v2864
    %v3173 = vunpack.c.h.b16 %v2864
    %v3174 = vunpack.c.l.b16 %v2865
    %v3175 = vunpack.c.h.b16 %v2865
    %v3176 = vunpack.c.l.b16 %v2866
    %v3177 = vunpack.c.h.b16 %v2866
    %v3178 = vunpack.c.l.b16 %v2867
    %v3179 = vunpack.c.h.b16 %v2867
    %v3180 = vunpack.c.l.b16 %v2868
    %v3181 = vunpack.c.h.b16 %v2868
    %v3182 = vunpack.c.l.b16 %v2869
    %v3183 = vunpack.c.h.b16 %v2869
    %v3184 = vunpack.c.l.b16 %v2870
    %v3185 = vunpack.c.h.b16 %v2870
    %v3186 = vunpack.c.l.b16 %v2871
    %v3187 = vunpack.c.h.b16 %v2871
    %v3188 = vunpack.c.l.b16 %v2872
    %v3189 = vunpack.c.h.b16 %v2872
    %v3190 = vunpack.c.l.b16 %v2873
    %v3191 = vunpack.c.h.b16 %v2873
    %v3192 = vunpack.c.l.b16 %v2874
    %v3193 = vunpack.c.h.b16 %v2874
    %v3194 = vunpack.c.l.b16 %v2875
    %v3195 = vunpack.c.h.b16 %v2875
    %v3196 = vunpack.c.l.b16 %v2876
    %v3197 = vunpack.c.h.b16 %v2876
    %v3198 = vunpack.c.l.b16 %v2877
    %v3199 = vunpack.c.h.b16 %v2877
    %v3200 = vunpack.c.l.b16 %v2878
    %v3201 = vunpack.c.h.b16 %v2878
    %v3202 = vunpack.c.l.b16 %v2879
    %v3203 = vunpack.c.h.b16 %v2879
    %v3204 = vunpack.c.l.b16 %v2880
    %v3205 = vunpack.c.h.b16 %v2880
    %v3206 = vunpack.c.l.b16 %v2881
    %v3207 = vunpack.c.h.b16 %v2881
    %v3208 = vunpack.c.l.b16 %v2882
    %v3209 = vunpack.c.h.b16 %v2882
    %v3210 = vunpack.c.l.b16 %v2883
    %v3211 = vunpack.c.h.b16 %v2883
    %v3212 = vunpack.c.l.b16 %v2884
    %v3213 = vunpack.c.h.b16 %v2884
    %v3214 = vunpack.c.l.b16 %v2885
    %v3215 = vunpack.c.h.b16 %v2885
    %v3216 = vunpack.c.l.b16 %v2886
    %v3217 = vunpack.c.h.b16 %v2886
    %v3218 = vunpack.c.l.b16 %v2887
    %v3219 = vunpack.c.h.b16 %v2887
    %v3220 = vunpack.c.l.b16 %v2888
    %v3221 = vunpack.c.h.b16 %v2888
    %v3222 = vunpack.c.l.b16 %v2889
    %v3223 = vunpack.c.h.b16 %v2889
    %v3224 = vunpack.c.l.b16 %v2890
    %v3225 = vunpack.c.h.b16 %v2890
    %v3226 = vunpack.c.l.b16 %v2891
    %v3227 = vunpack.c.h.b16 %v2891
    %v3228 = vunpack.c.l.b16 %v2892
    %v3229 = vunpack.c.h.b16 %v2892
    %v3230 = vunpack.c.l.b16 %v2893
    %v3231 = vunpack.c.h.b16 %v2893
    %v3232 = vunpack.c.l.b16 %v2894
    %v3233 = vunpack.c.h.b16 %v2894
    %v3234 = vunpack.c.l.b16 %v2895
    %v3235 = vunpack.c.h.b16 %v2895
    %v3236 = vunpack.c.l.b16 %v2896
    %v3237 = vunpack.c.h.b16 %v2896
    %v3238 = vunpack.c.l.b16 %v2897
    %v3239 = vunpack.c.h.b16 %v2897
    %v3240 = vunpack.c.l.b16 %v2898
    %v3241 = vunpack.c.h.b16 %v2898
    %v3242 = vunpack.c.l.b16 %v2899
    %v3243 = vunpack.c.h.b16 %v2899
    %v3244 = vunpack.c.l.b16 %v2900
    %v3245 = vunpack.c.h.b16 %v2900
    %v3246 = vunpack.c.l.b16 %v2901
    %v3247 = vunpack.c.h.b16 %v2901
    %v3248 = vunpack.c.l.b16 %v2902
    %v3249 = vunpack.c.h.b16 %v2902
    %v3250 = vunpack.c.l.b16 %v2903
    %v3251 = vunpack.c.h.b16 %v2903
    %v3252 = vunpack.c.l.b16 %v2904
    %v3253 = vunpack.c.h.b16 %v2904
    %v3254 = vunpack.c.l.b16 %v2905
    %v3255 = vunpack.c.h.b16 %v2905
    %v3256 = vunpack.c.l.b16 %v2906
    %v3257 = vunpack.c.h.b16 %v2906
    %v3258 = vunpack.c.l.b16 %v2907
    %v3259 = vunpack.c.h.b16 %v2907
    %v3260 = vunpack.c.l.b16 %v2908
    %v3261 = vunpack.c.h.b16 %v2908
    %v3262 = vunpack.c.l.b16 %v2909
    %v3263 = vunpack.c.h.b16 %v2909
    %v3264 = vunpack.c.l.b16 %v2910
    %v3265 = vunpack.c.h.b16 %v2910
    %v3266 = vunpack.c.l.b16 %v2911
    %v3267 = vunpack.c.h.b16 %v2911
    %v3268 = vunpack.c.l.b16 %v2912
    %v3269 = vunpack.c.h.b16 %v2912
    %v3270 = vunpack.c.l.b16 %v2913
    %v3271 = vunpack.c.h.b16 %v2913
    %v3272 = vunpack.c.l.b16 %v2914
    %v3273 = vunpack.c.h.b16 %v2914
    %v3274 = vunpack.c.l.b16 %v2915
    %v3275 = vunpack.c.h.b16 %v2915
    %v3276 = vunpack.c.l.b16 %v2916
    %v3277 = vunpack.c.h.b16 %v2916
    %v3278 = vunpack.c.l.b16 %v2917
    %v3279 = vunpack.c.h.b16 %v2917
    %v3280 = vunpack.c.l.b16 %v2918
    %v3281 = vunpack.c.h.b16 %v2918
    %v3282 = vunpack.c.l.b16 %v2919
    %v3283 = vunpack.c.h.b16 %v2919
    %v3284 = vunpack.c.l.b16 %v2920
    %v3285 = vunpack.c.h.b16 %v2920
    %v3286 = vunpack.c.l.b16 %v2921
    %v3287 = vunpack.c.h.b16 %v2921
    %v3288 = vunpack.c.l.b16 %v2922
    %v3289 = vunpack.c.h.b16 %v2922
    %v3290 = vunpack.c.l.b16 %v2923
    %v3291 = vunpack.c.h.b16 %v2923
    %v3292 = vunpack.c.l.b16 %v2924
    %v3293 = vunpack.c.h.b16 %v2924
    %v3294 = vunpack.c.l.b16 %v2925
    %v3295 = vunpack.c.h.b16 %v2925
    %v3296 = vunpack.c.l.b16 %v2926
    %v3297 = vunpack.c.h.b16 %v2926
    %v3298 = vunpack.c.l.b16 %v2927
    %v3299 = vunpack.c.h.b16 %v2927
    %v3300 = vunpack.c.l.b16 %v2928
    %v3301 = vunpack.c.h.b16 %v2928
    %v3302 = vunpack.c.l.b16 %v2929
    %v3303 = vunpack.c.h.b16 %v2929
    %v3304 = vunpack.c.l.b16 %v2930
    %v3305 = vunpack.c.h.b16 %v2930
    %v3306 = vunpack.c.l.b16 %v2931
    %v3307 = vunpack.c.h.b16 %v2931
    %v3308 = vunpack.c.l.b16 %v2932
    %v3309 = vunpack.c.h.b16 %v2932
    %v3310 = vunpack.c.l.b16 %v2933
    %v3311 = vunpack.c.h.b16 %v2933
    %v3312 = vunpack.c.l.b16 %v2934
    %v3313 = vunpack.c.h.b16 %v2934
    %v3314 = vunpack.c.l.b16 %v2935
    %v3315 = vunpack.c.h.b16 %v2935
    %v3316 = vunpack.c.l.b16 %v2936
    %v3317 = vunpack.c.h.b16 %v2936
    %v3318 = vunpack.c.l.b16 %v2937
    %v3319 = vunpack.c.h.b16 %v2937
    %v3320 = vunpack.c.l.b16 %v2938
    %v3321 = vunpack.c.h.b16 %v2938
    %v3322 = vunpack.c.l.b16 %v2939
    %v3323 = vunpack.c.h.b16 %v2939
    %v3324 = vpack.c.b16 %v3070, %v3068
    %v3325 = vpack.c.b16 %v3071, %v3069
    %v3326 = vpack.c.b16 %v3074, %v3072
    %v3327 = vpack.c.b16 %v3075, %v3073
    %v3328 = vpack.c.b16 %v3078, %v3076
    %v3329 = vpack.c.b16 %v3079, %v3077
    %v3330 = vpack.c.b16 %v3082, %v3080
    %v3331 = vpack.c.b16 %v3083, %v3081
    %v3332 = vpack.c.b16 %v3086, %v3084
    %v3333 = vpack.c.b16 %v3087, %v3085
    %v3334 = vpack.c.b16 %v3090, %v3088
    %v3335 = vpack.c.b16 %v3091, %v3089
    %v3336 = vpack.c.b16 %v3094, %v3092
    %v3337 = vpack.c.b16 %v3095, %v3093
    %v3338 = vpack.c.b16 %v3098, %v3096
    %v3339 = vpack.c.b16 %v3099, %v3097
    %v3340 = vpack.c.b16 %v3102, %v3100
    %v3341 = vpack.c.b16 %v3103, %v3101
    %v3342 = vpack.c.b16 %v3106, %v3104
    %v3343 = vpack.c.b16 %v3107, %v3105
    %v3344 = vpack.c.b16 %v3110, %v3108
    %v3345 = vpack.c.b16 %v3111, %v3109
    %v3346 = vpack.c.b16 %v3114, %v3112
    %v3347 = vpack.c.b16 %v3115, %v3113
    %v3348 = vpack.c.b16 %v3118, %v3116
    %v3349 = vpack.c.b16 %v3119, %v3117
    %v3350 = vpack.c.b16 %v3122, %v3120
    %v3351 = vpack.c.b16 %v3123, %v3121
    %v3352 = vpack.c.b16 %v3126, %v3124
    %v3353 = vpack.c.b16 %v3127, %v3125
    %v3354 = vpack.c.b16 %v3130, %v3128
    %v3355 = vpack.c.b16 %v3131, %v3129
    %v3356 = vpack.c.b16 %v3134, %v3132
    %v3357 = vpack.c.b16 %v3135, %v3133
    %v3358 = vpack.c.b16 %v3138, %v3136
    %v3359 = vpack.c.b16 %v3139, %v3137
    %v3360 = vpack.c.b16 %v3142, %v3140
    %v3361 = vpack.c.b16 %v3143, %v3141
    %v3362 = vpack.c.b16 %v3146, %v3144
    %v3363 = vpack.c.b16 %v3147, %v3145
    %v3364 = vpack.c.b16 %v3150, %v3148
    %v3365 = vpack.c.b16 %v3151, %v3149
    %v3366 = vpack.c.b16 %v3154, %v3152
    %v3367 = vpack.c.b16 %v3155, %v3153
    %v3368 = vpack.c.b16 %v3158, %v3156
    %v3369 = vpack.c.b16 %v3159, %v3157
    %v3370 = vpack.c.b16 %v3162, %v3160
    %v3371 = vpack.c.b16 %v3163, %v3161
    %v3372 = vpack.c.b16 %v3166, %v3164
    %v3373 = vpack.c.b16 %v3167, %v3165
    %v3374 = vpack.c.b16 %v3170, %v3168
    %v3375 = vpack.c.b16 %v3171, %v3169
    %v3376 = vpack.c.b16 %v3174, %v3172
    %v3377 = vpack.c.b16 %v3175, %v3173
    %v3378 = vpack.c.b16 %v3178, %v3176
    %v3379 = vpack.c.b16 %v3179, %v3177
    %v3380 = vpack.c.b16 %v3182, %v3180
    %v3381 = vpack.c.b16 %v3183, %v3181
    %v3382 = vpack.c.b16 %v3186, %v3184
    %v3383 = vpack.c.b16 %v3187, %v3185
    %v3384 = vpack.c.b16 %v3190, %v3188
    %v3385 = vpack.c.b16 %v3191, %v3189
    %v3386 = vpack.c.b16 %v3194, %v3192
    %v3387 = vpack.c.b16 %v3195, %v3193
    %v3388 = vpack.c.b16 %v3198, %v3196
    %v3389 = vpack.c.b16 %v3199, %v3197
    %v3390 = vpack.c.b16 %v3202, %v3200
    %v3391 = vpack.c.b16 %v3203, %v3201
    %v3392 = vpack.c.b16 %v3206, %v3204
    %v3393 = vpack.c.b16 %v3207, %v3205
    %v3394 = vpack.c.b16 %v3210, %v3208
    %v3395 = vpack.c.b16 %v3211, %v3209
    %v3396 = vpack.c.b16 %v3214, %v3212
    %v3397 = vpack.c.b16 %v3215, %v3213
    %v3398 = vpack.c.b16 %v3218, %v3216
    %v3399 = vpack.c.b16 %v3219, %v3217
    %v3400 = vpack.c.b16 %v3222, %v3220
    %v3401 = vpack.c.b16 %v3223, %v3221
    %v3402 = vpack.c.b16 %v3226, %v3224
    %v3403 = vpack.c.b16 %v3227, %v3225
    %v3404 = vpack.c.b16 %v3230, %v3228
    %v3405 = vpack.c.b16 %v3231, %v3229
    %v3406 = vpack.c.b16 %v3234, %v3232
    %v3407 = vpack.c.b16 %v3235, %v3233
    %v3408 = vpack.c.b16 %v3238, %v3236
    %v3409 = vpack.c.b16 %v3239, %v3237
    %v3410 = vpack.c.b16 %v3242, %v3240
    %v3411 = vpack.c.b16 %v3243, %v3241
    %v3412 = vpack.c.b16 %v3246, %v3244
    %v3413 = vpack.c.b16 %v3247, %v3245
    %v3414 = vpack.c.b16 %v3250, %v3248
    %v3415 = vpack.c.b16 %v3251, %v3249
    %v3416 = vpack.c.b16 %v3254, %v3252
    %v3417 = vpack.c.b16 %v3255, %v3253
    %v3418 = vpack.c.b16 %v3258, %v3256
    %v3419 = vpack.c.b16 %v3259, %v3257
    %v3420 = vpack.c.b16 %v3262, %v3260
    %v3421 = vpack.c.b16 %v3263, %v3261
    %v3422 = vpack.c.b16 %v3266, %v3264
    %v3423 = vpack.c.b16 %v3267, %v3265
    %v3424 = vpack.c.b16 %v3270, %v3268
    %v3425 = vpack.c.b16 %v3271, %v3269
    %v3426 = vpack.c.b16 %v3274, %v3272
    %v3427 = vpack.c.b16 %v3275, %v3273
    %v3428 = vpack.c.b16 %v3278, %v3276
    %v3429 = vpack.c.b16 %v3279, %v3277
    %v3430 = vpack.c.b16 %v3282, %v3280
    %v3431 = vpack.c.b16 %v3283, %v3281
    %v3432 = vpack.c.b16 %v3286, %v3284
    %v3433 = vpack.c.b16 %v3287, %v3285
    %v3434 = vpack.c.b16 %v3290, %v3288
    %v3435 = vpack.c.b16 %v3291, %v3289
    %v3436 = vpack.c.b16 %v3294, %v3292
    %v3437 = vpack.c.b16 %v3295, %v3293
    %v3438 = vpack.c.b16 %v3298, %v3296
    %v3439 = vpack.c.b16 %v3299, %v3297
    %v3440 = vpack.c.b16 %v3302, %v3300
    %v3441 = vpack.c.b16 %v3303, %v3301
    %v3442 = vpack.c.b16 %v3306, %v3304
    %v3443 = vpack.c.b16 %v3307, %v3305
    %v3444 = vpack.c.b16 %v3310, %v3308
    %v3445 = vpack.c.b16 %v3311, %v3309
    %v3446 = vpack.c.b16 %v3314, %v3312
    %v3447 = vpack.c.b16 %v3315, %v3313
    %v3448 = vpack.c.b16 %v3318, %v3316
    %v3449 = vpack.c.b16 %v3319, %v3317
    %v3450 = vpack.c.b16 %v3322, %v3320
    %v3451 = vpack.c.b16 %v3323, %v3321
    %3580 = vmatpush.bf16.msra.mxu0 %v3338
    %3581 = vmatpush.bf16.msra.mxu0 %v3336
    %3582 = vmatpush.bf16.msra.mxu0 %v3334
    %3583 = vmatpush.bf16.msra.mxu0 %v3332
    %3584 = vmatpush.bf16.msra.mxu0 %v3330
    %3585 = vmatpush.bf16.msra.mxu0 %v3328
    %3586 = vmatpush.bf16.msra.mxu0 %v3326
    %3587 = vmatpush.bf16.msra.mxu0 %v3324
    %3588 = vmatmul.bf16.gmra.mxu0 %v2802
    %v3589 = vpop.f32.mrf.mxu0
    %v3590 = vadd.f32 0.0, %v3589
    %v3591 = vpop.f32.mrf.mxu0
    %3592 = vdwg.mxu0
    %3593 = vmatpush.bf16.msra.mxu0 %v3354
    %3594 = vmatpush.bf16.msra.mxu0 %v3352
    %3595 = vmatpush.bf16.msra.mxu0 %v3350
    %3596 = vmatpush.bf16.msra.mxu0 %v3348
    %3597 = vmatpush.bf16.msra.mxu0 %v3346
    %3598 = vmatpush.bf16.msra.mxu0 %v3344
    %3599 = vmatpush.bf16.msra.mxu0 %v3342
    %3600 = vmatpush.bf16.msra.mxu0 %v3340
    %3601 = vmatmul.bf16.gmra.mxu0 %v2803
    %v3602 = vpop.f32.mrf.mxu0
    %v3603 = vadd.f32 %v3590, %v3602
    %v3604 = vpop.f32.mrf.mxu0
    %3605 = vdwg.mxu0
    %3606 = vmatpush.bf16.msra.mxu0 %v3370
    %3607 = vmatpush.bf16.msra.mxu0 %v3368
    %3608 = vmatpush.bf16.msra.mxu0 %v3366
    %3609 = vmatpush.bf16.msra.mxu0 %v3364
    %3610 = vmatpush.bf16.msra.mxu0 %v3362
    %3611 = vmatpush.bf16.msra.mxu0 %v3360
    %3612 = vmatpush.bf16.msra.mxu0 %v3358
    %3613 = vmatpush.bf16.msra.mxu0 %v3356
    %3614 = vmatmul.bf16.gmra.mxu0 %v2804
    %v3615 = vpop.f32.mrf.mxu0
    %v3616 = vadd.f32 %v3603, %v3615
    %v3617 = vpop.f32.mrf.mxu0
    %3618 = vdwg.mxu0
    %3619 = vmatpush.bf16.msra.mxu0 %v3386
    %3620 = vmatpush.bf16.msra.mxu0 %v3384
    %3621 = vmatpush.bf16.msra.mxu0 %v3382
    %3622 = vmatpush.bf16.msra.mxu0 %v3380
    %3623 = vmatpush.bf16.msra.mxu0 %v3378
    %3624 = vmatpush.bf16.msra.mxu0 %v3376
    %3625 = vmatpush.bf16.msra.mxu0 %v3374
    %3626 = vmatpush.bf16.msra.mxu0 %v3372
    %3627 = vmatmul.bf16.gmra.mxu0 %v2805
    %v3628 = vpop.f32.mrf.mxu0
    %v3629 = vadd.f32 %v3616, %v3628
    %v3630 = vpop.f32.mrf.mxu0
    %3631 = vdwg.mxu0
    %3632 = vmatpush.bf16.msra.mxu0 %v3402
    %3633 = vmatpush.bf16.msra.mxu0 %v3400
    %3634 = vmatpush.bf16.msra.mxu0 %v3398
    %3635 = vmatpush.bf16.msra.mxu0 %v3396
    %3636 = vmatpush.bf16.msra.mxu0 %v3394
    %3637 = vmatpush.bf16.msra.mxu0 %v3392
    %3638 = vmatpush.bf16.msra.mxu0 %v3390
    %3639 = vmatpush.bf16.msra.mxu0 %v3388
    %3640 = vmatmul.bf16.gmra.mxu0 %v2806
    %v3641 = vpop.f32.mrf.mxu0
    %v3642 = vadd.f32 %v3629, %v3641
    %v3643 = vpop.f32.mrf.mxu0
    %3644 = vdwg.mxu0
    %3645 = vmatpush.bf16.msra.mxu0 %v3418
    %3646 = vmatpush.bf16.msra.mxu0 %v3416
    %3647 = vmatpush.bf16.msra.mxu0 %v3414
    %3648 = vmatpush.bf16.msra.mxu0 %v3412
    %3649 = vmatpush.bf16.msra.mxu0 %v3410
    %3650 = vmatpush.bf16.msra.mxu0 %v3408
    %3651 = vmatpush.bf16.msra.mxu0 %v3406
    %3652 = vmatpush.bf16.msra.mxu0 %v3404
    %3653 = vmatmul.bf16.gmra.mxu0 %v2807
    %v3654 = vpop.f32.mrf.mxu0
    %v3655 = vadd.f32 %v3642, %v3654
    %v3656 = vpop.f32.mrf.mxu0
    %3657 = vdwg.mxu0
    %3658 = vmatpush.bf16.msra.mxu0 %v3434
    %3659 = vmatpush.bf16.msra.mxu0 %v3432
    %3660 = vmatpush.bf16.msra.mxu0 %v3430
    %3661 = vmatpush.bf16.msra.mxu0 %v3428
    %3662 = vmatpush.bf16.msra.mxu0 %v3426
    %3663 = vmatpush.bf16.msra.mxu0 %v3424
    %3664 = vmatpush.bf16.msra.mxu0 %v3422
    %3665 = vmatpush.bf16.msra.mxu0 %v3420
    %3666 = vmatmul.bf16.gmra.mxu0 %v2808
    %v3667 = vpop.f32.mrf.mxu0
    %v3668 = vadd.f32 %v3655, %v3667
    %v3669 = vpop.f32.mrf.mxu0
    %3670 = vdwg.mxu0
    %3671 = vmatpush.bf16.msra.mxu0 %v3450
    %3672 = vmatpush.bf16.msra.mxu0 %v3448
    %3673 = vmatpush.bf16.msra.mxu0 %v3446
    %3674 = vmatpush.bf16.msra.mxu0 %v3444
    %3675 = vmatpush.bf16.msra.mxu0 %v3442
    %3676 = vmatpush.bf16.msra.mxu0 %v3440
    %3677 = vmatpush.bf16.msra.mxu0 %v3438
    %3678 = vmatpush.bf16.msra.mxu0 %v3436
    %3679 = vmatmul.bf16.gmra.mxu0 %v2809
    %v3680 = vpop.f32.mrf.mxu0
    %v3681 = vadd.f32 %v3668, %v3680
    %v3682 = vpop.f32.mrf.mxu0
    %3683 = vdwg.mxu0
    %3684 = vmatpush.bf16.msra.mxu0 %v3339
    %3685 = vmatpush.bf16.msra.mxu0 %v3337
    %3686 = vmatpush.bf16.msra.mxu0 %v3335
    %3687 = vmatpush.bf16.msra.mxu0 %v3333
    %3688 = vmatpush.bf16.msra.mxu0 %v3331
    %3689 = vmatpush.bf16.msra.mxu0 %v3329
    %3690 = vmatpush.bf16.msra.mxu0 %v3327
    %3691 = vmatpush.bf16.msra.mxu0 %v3325
    %3692 = vmatmul.bf16.gmra.mxu0 %v2802
    %v3693 = vpop.f32.mrf.mxu0
    %v3694 = vadd.f32 0.0, %v3693
    %v3695 = vpop.f32.mrf.mxu0
    %3696 = vdwg.mxu0
    %3697 = vmatpush.bf16.msra.mxu0 %v3355
    %3698 = vmatpush.bf16.msra.mxu0 %v3353
    %3699 = vmatpush.bf16.msra.mxu0 %v3351
    %3700 = vmatpush.bf16.msra.mxu0 %v3349
    %3701 = vmatpush.bf16.msra.mxu0 %v3347
    %3702 = vmatpush.bf16.msra.mxu0 %v3345
    %3703 = vmatpush.bf16.msra.mxu0 %v3343
    %3704 = vmatpush.bf16.msra.mxu0 %v3341
    %3705 = vmatmul.bf16.gmra.mxu0 %v2803
    %v3706 = vpop.f32.mrf.mxu0
    %v3707 = vadd.f32 %v3694, %v3706
    %v3708 = vpop.f32.mrf.mxu0
    %3709 = vdwg.mxu0
    %3710 = vmatpush.bf16.msra.mxu0 %v3371
    %3711 = vmatpush.bf16.msra.mxu0 %v3369
    %3712 = vmatpush.bf16.msra.mxu0 %v3367
    %3713 = vmatpush.bf16.msra.mxu0 %v3365
    %3714 = vmatpush.bf16.msra.mxu0 %v3363
    %3715 = vmatpush.bf16.msra.mxu0 %v3361
    %3716 = vmatpush.bf16.msra.mxu0 %v3359
    %3717 = vmatpush.bf16.msra.mxu0 %v3357
    %3718 = vmatmul.bf16.gmra.mxu0 %v2804
    %v3719 = vpop.f32.mrf.mxu0
    %v3720 = vadd.f32 %v3707, %v3719
    %v3721 = vpop.f32.mrf.mxu0
    %3722 = vdwg.mxu0
    %3723 = vmatpush.bf16.msra.mxu0 %v3387
    %3724 = vmatpush.bf16.msra.mxu0 %v3385
    %3725 = vmatpush.bf16.msra.mxu0 %v3383
    %3726 = vmatpush.bf16.msra.mxu0 %v3381
    %3727 = vmatpush.bf16.msra.mxu0 %v3379
    %3728 = vmatpush.bf16.msra.mxu0 %v3377
    %3729 = vmatpush.bf16.msra.mxu0 %v3375
    %3730 = vmatpush.bf16.msra.mxu0 %v3373
    %3731 = vmatmul.bf16.gmra.mxu0 %v2805
    %v3732 = vpop.f32.mrf.mxu0
    %v3733 = vadd.f32 %v3720, %v3732
    %v3734 = vpop.f32.mrf.mxu0
    %3735 = vdwg.mxu0
    %3736 = vmatpush.bf16.msra.mxu0 %v3403
    %3737 = vmatpush.bf16.msra.mxu0 %v3401
    %3738 = vmatpush.bf16.msra.mxu0 %v3399
    %3739 = vmatpush.bf16.msra.mxu0 %v3397
    %3740 = vmatpush.bf16.msra.mxu0 %v3395
    %3741 = vmatpush.bf16.msra.mxu0 %v3393
    %3742 = vmatpush.bf16.msra.mxu0 %v3391
    %3743 = vmatpush.bf16.msra.mxu0 %v3389
    %3744 = vmatmul.bf16.gmra.mxu0 %v2806
    %v3745 = vpop.f32.mrf.mxu0
    %v3746 = vadd.f32 %v3733, %v3745
    %v3747 = vpop.f32.mrf.mxu0
    %3748 = vdwg.mxu0
    %3749 = vmatpush.bf16.msra.mxu0 %v3419
    %3750 = vmatpush.bf16.msra.mxu0 %v3417
    %3751 = vmatpush.bf16.msra.mxu0 %v3415
    %3752 = vmatpush.bf16.msra.mxu0 %v3413
    %3753 = vmatpush.bf16.msra.mxu0 %v3411
    %3754 = vmatpush.bf16.msra.mxu0 %v3409
    %3755 = vmatpush.bf16.msra.mxu0 %v3407
    %3756 = vmatpush.bf16.msra.mxu0 %v3405
    %3757 = vmatmul.bf16.gmra.mxu0 %v2807
    %v3758 = vpop.f32.mrf.mxu0
    %v3759 = vadd.f32 %v3746, %v3758
    %v3760 = vpop.f32.mrf.mxu0
    %3761 = vdwg.mxu0
    %3762 = vmatpush.bf16.msra.mxu0 %v3435
    %3763 = vmatpush.bf16.msra.mxu0 %v3433
    %3764 = vmatpush.bf16.msra.mxu0 %v3431
    %3765 = vmatpush.bf16.msra.mxu0 %v3429
    %3766 = vmatpush.bf16.msra.mxu0 %v3427
    %3767 = vmatpush.bf16.msra.mxu0 %v3425
    %3768 = vmatpush.bf16.msra.mxu0 %v3423
    %3769 = vmatpush.bf16.msra.mxu0 %v3421
    %3770 = vmatmul.bf16.gmra.mxu0 %v2808
    %v3771 = vpop.f32.mrf.mxu0
    %v3772 = vadd.f32 %v3759, %v3771
    %v3773 = vpop.f32.mrf.mxu0
    %3774 = vdwg.mxu0
    %3775 = vmatpush.bf16.msra.mxu0 %v3451
    %3776 = vmatpush.bf16.msra.mxu0 %v3449
    %3777 = vmatpush.bf16.msra.mxu0 %v3447
    %3778 = vmatpush.bf16.msra.mxu0 %v3445
    %3779 = vmatpush.bf16.msra.mxu0 %v3443
    %3780 = vmatpush.bf16.msra.mxu0 %v3441
    %3781 = vmatpush.bf16.msra.mxu0 %v3439
    %3782 = vmatpush.bf16.msra.mxu0 %v3437
    %3783 = vmatmul.bf16.gmra.mxu0 %v2809
    %v3784 = vpop.f32.mrf.mxu0
    %v3785 = vadd.f32 %v3772, %v3784
    %v3786 = vpop.f32.mrf.mxu0
    %3787 = vdwg.mxu0
    %v3788 = vrot.slane %v3681, 4
    %v3789 = vadd.f32 %v3681, %v3788
    %v3790 = vrot.slane %v3789, 2
    %v3791 = vadd.f32 %v3789, %v3790
    %v3792 = vrot.slane %v3791, 1
    %v3793 = vadd.f32 %v3791, %v3792
    %v3794 = vrot.slane %v3785, 4
    %v3795 = vadd.f32 %v3785, %v3794
    %v3796 = vrot.slane %v3795, 2
    %v3797 = vadd.f32 %v3795, %v3796
    %v3798 = vrot.slane %v3797, 1
    %v3799 = vadd.f32 %v3797, %v3798
    %v3800 = vmul.f32 %v3681, %v3681
    %v3801 = vmul.f32 %v3785, %v3785
    %v3802 = vrot.slane %v3800, 4
    %v3803 = vadd.f32 %v3800, %v3802
    %v3804 = vrot.slane %v3803, 2
    %v3805 = vadd.f32 %v3803, %v3804
    %v3806 = vrot.slane %v3805, 1
    %v3807 = vadd.f32 %v3805, %v3806
    %v3808 = vrot.slane %v3801, 4
    %v3809 = vadd.f32 %v3801, %v3808
    %v3810 = vrot.slane %v3809, 2
    %v3811 = vadd.f32 %v3809, %v3810
    %v3812 = vrot.slane %v3811, 1
    %v3813 = vadd.f32 %v3811, %v3812
    %v3814 = vsel %vm492, %v3793, %v3807
    %v3815 = vsel %vm492, %v3799, %v3813
    %v3816 = vadd.f32 %v3814, %v3815
    %3818 = vrot.lane.b32.xlu0 %v3816, 64
    %v3819 = vpop.permute.xlu0 %3818
    %v3821 = vadd.f32 %v3816, %v3819
    %v3822 = vrcp.pop 32.0
    %v3823 = vmul.f32 32.0, %v3822
    %v3824 = vsub.f32 1.0, %v3823
    %v3825 = vmul.f32 %v3822, %v3824
    %v3826 = vadd.f32 %v3822, %v3825
    %vm3827 = vweird.f32 %v3822
    %v3828 = vsel %vm3827, %v3822, %v3826
    %v3829 = vmul.f32 %v3821, %v3828
    %v3830 = vmul.f32 %v3829, %v3829
    %v3832 = vrot.slane %v3830, 7
    %v3834 = vsub.f32 %v3829, %v3832
    %v3835 = vmax.f32 %v3834, 0.0
    %v3836 = vld [vmem:[%s6] sm:$0x1]
    %v3837 = vadd.f32 %v3835, 1e-05
    %v3838 = vrsqrt.pop %v3837
    %v3839 = vmul.f32 %v3838, %v3837
    %v3840 = vmul.f32 %v3839, %v3838
    %v3841 = vmul.f32 0.5, %v3840
    %v3842 = vsub.f32 1.5, %v3841
    %v3843 = vmul.f32 %v3838, %v3842
    %vm3844 = vweird.f32 %v3837
    %vm3845 = vweird.f32 %v3838
    %vm3846 = vmor %vm3844, %vm3845
    %v3847 = vsel %vm3846, %v3838, %v3843
    %3849 = vst [vmem:[#allocation1] sm:$0xff] %v3847
    %s3850 = scalar_lea.vmem [#allocation1], 1
    %v3851 = vld [vmem:[%s3850] ss:$9 sm:$0xff]
    %v3853 = vmul.f32 %v3836, %v3851
    %v3854 = vld [vmem:[%s7] sm:$0x1]
    %v3855 = vmul.f32 %v3829, %v3853
    %v3856 = vsub.f32 %v3854, %v3855
    %v3858 = vperm.slane %v3853, 0
    %3859 = vrot.lane.b32.xlu0 %v3858, 64
    %v3860 = vpop.permute.xlu0 %3859
    %v3862 = vsel %vm1277, %v3853, %v3860
    %v3864 = vperm.slane %v3856, 0
    %3865 = vrot.lane.b32.xlu0 %v3864, 64
    %v3866 = vpop.permute.xlu0 %3865
    %v3868 = vsel %vm1277, %v3856, %v3866
    %v3869 = vperm.slane %v3862, 0
    %v3870 = vmul.f32 %v3681, %v3869
    %v3871 = vmul.f32 %v3785, %v3869
    %v3872 = vperm.slane %v3868, 0
    %v3873 = vadd.f32 %v3870, %v3872
    %v3874 = vadd.f32 %v3871, %v3872
    %v3875 = vmax.f32 %v3873, 0.0
    %v3876 = vmax.f32 %v3874, 0.0
    %v3879 = vrot.slane %v3876, 4
    %v3880 = vsel %vm1353, %v3875, %v3879
    %v3881 = vsel %vm1353, %v3879, %v3875
    %v3882 = vrot.slane %v3881, 4
    %v3886 = vunpack.c.l.s4 1966171168
    %v3887 = vunpack.c.0.s8 %v3886
    %v3888 = vperm.slane %v3880, %v3887
    %v3890 = vunpack.c.l.s4 1966171168
    %v3891 = vunpack.c.0.s8 %v3890
    %v3892 = vperm.slane %v3882, %v3891
    %vm3893 = vcmp.lt.s32.totalorder %v405, 0
    %v3894 = vsub.s32 0, %v405
    %v3895 = vsel %vm3893, %v3894, %v405
    %v3896 = vshrl.u32 %v3895, 1
    %v3897 = vand.u32 %v3895, 1
    %v3898 = vsub.s32 0, %v3897
    %v3899 = vsel %vm3893, %v3898, %v3897
    %vm3900 = vcmp.ne.s32.totalorder %v3899, 0
    %vm3901 = vcmp.lt.s32.totalorder %v3899, 0
    %vm3902 = vmand %vm3901, %vm3900
    %v3903 = vadd.s32 %v3899, 2
    %v3904 = vsel %vm3902, %v3903, %v3899
    %vm3905 = vcmp.eq.s32.totalorder %v3904, 0
    %vm3906 = vcmp.eq.s32.totalorder %v3904, 1
    %3909 = vst [vmem:[#allocation1] ss:$4 sm:$0xff] %v3888
    %s3910 = scalar_lea.vmem [#allocation1], 1
    %3911 = vst [vmem:[%s3910] ss:$4 sm:$0xff] %v3892
    %v3912 = vld.sshfl [vmem:[#allocation1 + $0x10] sm:$0xff pattern:$0x73625140]
    %v3913 = vld.sshfl [vmem:[#allocation1 + $0x18] sm:$0xff pattern:$0x73625140]
    %v3914 = vrot.slane %v3912, 7
    %v3915 = vrot.slane %v3913, 7
    %v3918 = vsel %vm492, 0.0, %v3914
    %v3919 = vsel %vm492, 0.0, %v3915
    %v3920 = vsel %vm3905, 1, 0
    %vm3921 = vcmp.eq.s32.totalorder %v3920, 1
    %v3922 = vsel %vm3921, 0.0, %v3918
    %v3923 = vsel %vm3921, 0.0, %v3919
    %3924 = vst [vmem:[#allocation1] ss:$4 sm:$0xff] %v3888
    %s3925 = scalar_lea.vmem [#allocation1], 1
    %3926 = vst [vmem:[%s3925] ss:$4 sm:$0xff] %v3892
    %v3927 = vld.sshfl [vmem:[#allocation1] sm:$0xff pattern:$0x73625140]
    %v3928 = vld.sshfl [vmem:[#allocation1 + $0x8] sm:$0xff pattern:$0x73625140]
    %v3929 = vrot.slane %v3927, 1
    %v3930 = vrot.slane %v3928, 1
    %vm3933 = vcmask 1042432
    %v3934 = vsel %vm3933, %v3929, 0.0
    %v3935 = vsel %vm3933, %v3930, 0.0
    %v3936 = vsel %vm3906, 1, 0
    %vm3937 = vcmp.eq.s32.totalorder %v3936, 1
    %v3938 = vsel %vm3937, 0.0, %v3934
    %v3939 = vsel %vm3937, 0.0, %v3935
    %3940 = vst [vmem:[#allocation1] ss:$4 sm:$0xff] %v3888
    %s3941 = scalar_lea.vmem [#allocation1], 1
    %3942 = vst [vmem:[%s3941] ss:$4 sm:$0xff] %v3892
    %v3943 = vld.sshfl [vmem:[#allocation1] sm:$0xff pattern:$0x73625140]
    %v3944 = vld.sshfl [vmem:[#allocation1 + $0x8] sm:$0xff pattern:$0x73625140]
    %3947 = vst [vmem:[#allocation1] ss:$4 sm:$0xff] %v3888
    %s3948 = scalar_lea.vmem [#allocation1], 1
    %3949 = vst [vmem:[%s3948] ss:$4 sm:$0xff] %v3892
    %v3950 = vld.sshfl [vmem:[#allocation1 + $0x10] sm:$0xff pattern:$0x73625140]
    %v3951 = vld.sshfl [vmem:[#allocation1 + $0x18] sm:$0xff pattern:$0x73625140]
    %v3954 = vpack.c.bf16 %v3922, %v3922
    %v3955 = vpack.c.bf16 %v3923, %v3923
    %v3956 = vpack.c.bf16 %v3943, %v3943
    %v3957 = vpack.c.bf16 %v3944, %v3944
    %v3958 = vpack.c.bf16 %v3950, %v3950
    %v3959 = vpack.c.bf16 %v3951, %v3951
    %v3960 = vpack.c.bf16 %v3938, %v3938
    %v3961 = vpack.c.bf16 %v3939, %v3939
    %s3962 = sshll.u32 %s1575, 4
    %3963 = dma.done %s350, %s3962
    %v3964 = vld [vmem:[#allocation4] sm:$0xff]
    %v3965 = vld [vmem:[#allocation4 + $0x8] sm:$0xff]
    %v3966 = vld [vmem:[#allocation4 + $0x10] sm:$0xff]
    %v3967 = vld [vmem:[#allocation4 + $0x18] sm:$0xff]
    %v3968 = vld [vmem:[#allocation4 + $0x20] sm:$0xff]
    %v3969 = vld [vmem:[#allocation4 + $0x28] sm:$0xff]
    %v3970 = vld [vmem:[#allocation4 + $0x30] sm:$0xff]
    %v3971 = vld [vmem:[#allocation4 + $0x38] sm:$0xff]
    %v3972 = vld [vmem:[#allocation4 + $0x40] sm:$0xff]
    %v3973 = vld [vmem:[#allocation4 + $0x48] sm:$0xff]
    %v3974 = vld [vmem:[#allocation4 + $0x50] sm:$0xff]
    %v3975 = vld [vmem:[#allocation4 + $0x58] sm:$0xff]
    %v3976 = vld [vmem:[#allocation4 + $0x60] sm:$0xff]
    %v3977 = vld [vmem:[#allocation4 + $0x68] sm:$0xff]
    %v3978 = vld [vmem:[#allocation4 + $0x70] sm:$0xff]
    %v3979 = vld [vmem:[#allocation4 + $0x78] sm:$0xff]
    %v3980 = vld [vmem:[#allocation4 + $0x80] sm:$0xff]
    %v3981 = vld [vmem:[#allocation4 + $0x88] sm:$0xff]
    %v3982 = vld [vmem:[#allocation4 + $0x90] sm:$0xff]
    %v3983 = vld [vmem:[#allocation4 + $0x98] sm:$0xff]
    %v3984 = vld [vmem:[#allocation4 + $0xa0] sm:$0xff]
    %v3985 = vld [vmem:[#allocation4 + $0xa8] sm:$0xff]
    %v3986 = vld [vmem:[#allocation4 + $0xb0] sm:$0xff]
    %v3987 = vld [vmem:[#allocation4 + $0xb8] sm:$0xff]
    %v3988 = vld [vmem:[#allocation4 + $0xc0] sm:$0xff]
    %v3989 = vld [vmem:[#allocation4 + $0xc8] sm:$0xff]
    %v3990 = vld [vmem:[#allocation4 + $0xd0] sm:$0xff]
    %v3991 = vld [vmem:[#allocation4 + $0xd8] sm:$0xff]
    %v3992 = vld [vmem:[#allocation4 + $0xe0] sm:$0xff]
    %v3993 = vld [vmem:[#allocation4 + $0xe8] sm:$0xff]
    %v3994 = vld [vmem:[#allocation4 + $0xf0] sm:$0xff]
    %v3995 = vld [vmem:[#allocation4 + $0xf8] sm:$0xff]
    %v3996 = vld [vmem:[#allocation4 + $0x100] sm:$0xff]
    %v3997 = vld [vmem:[#allocation4 + $0x108] sm:$0xff]
    %v3998 = vld [vmem:[#allocation4 + $0x110] sm:$0xff]
    %v3999 = vld [vmem:[#allocation4 + $0x118] sm:$0xff]
    %v4000 = vld [vmem:[#allocation4 + $0x120] sm:$0xff]
    %v4001 = vld [vmem:[#allocation4 + $0x128] sm:$0xff]
    %v4002 = vld [vmem:[#allocation4 + $0x130] sm:$0xff]
    %v4003 = vld [vmem:[#allocation4 + $0x138] sm:$0xff]
    %v4004 = vld [vmem:[#allocation4 + $0x140] sm:$0xff]
    %v4005 = vld [vmem:[#allocation4 + $0x148] sm:$0xff]
    %v4006 = vld [vmem:[#allocation4 + $0x150] sm:$0xff]
    %v4007 = vld [vmem:[#allocation4 + $0x158] sm:$0xff]
    %v4008 = vld [vmem:[#allocation4 + $0x160] sm:$0xff]
    %v4009 = vld [vmem:[#allocation4 + $0x168] sm:$0xff]
    %v4010 = vld [vmem:[#allocation4 + $0x170] sm:$0xff]
    %v4011 = vld [vmem:[#allocation4 + $0x178] sm:$0xff]
    %v4012 = vld [vmem:[#allocation4 + $0x180] sm:$0xff]
    %v4013 = vld [vmem:[#allocation4 + $0x188] sm:$0xff]
    %v4014 = vld [vmem:[#allocation4 + $0x190] sm:$0xff]
    %v4015 = vld [vmem:[#allocation4 + $0x198] sm:$0xff]
    %v4016 = vld [vmem:[#allocation4 + $0x1a0] sm:$0xff]
    %v4017 = vld [vmem:[#allocation4 + $0x1a8] sm:$0xff]
    %v4018 = vld [vmem:[#allocation4 + $0x1b0] sm:$0xff]
    %v4019 = vld [vmem:[#allocation4 + $0x1b8] sm:$0xff]
    %v4020 = vld [vmem:[#allocation4 + $0x1c0] sm:$0xff]
    %v4021 = vld [vmem:[#allocation4 + $0x1c8] sm:$0xff]
    %v4022 = vld [vmem:[#allocation4 + $0x1d0] sm:$0xff]
    %v4023 = vld [vmem:[#allocation4 + $0x1d8] sm:$0xff]
    %v4024 = vld [vmem:[#allocation4 + $0x1e0] sm:$0xff]
    %v4025 = vld [vmem:[#allocation4 + $0x1e8] sm:$0xff]
    %v4026 = vld [vmem:[#allocation4 + $0x1f0] sm:$0xff]
    %v4027 = vld [vmem:[#allocation4 + $0x1f8] sm:$0xff]
    %v4028 = vld [vmem:[#allocation4 + $0x200] sm:$0xff]
    %v4029 = vld [vmem:[#allocation4 + $0x208] sm:$0xff]
    %v4030 = vld [vmem:[#allocation4 + $0x210] sm:$0xff]
    %v4031 = vld [vmem:[#allocation4 + $0x218] sm:$0xff]
    %v4032 = vld [vmem:[#allocation4 + $0x220] sm:$0xff]
    %v4033 = vld [vmem:[#allocation4 + $0x228] sm:$0xff]
    %v4034 = vld [vmem:[#allocation4 + $0x230] sm:$0xff]
    %v4035 = vld [vmem:[#allocation4 + $0x238] sm:$0xff]
    %v4036 = vld [vmem:[#allocation4 + $0x240] sm:$0xff]
    %v4037 = vld [vmem:[#allocation4 + $0x248] sm:$0xff]
    %v4038 = vld [vmem:[#allocation4 + $0x250] sm:$0xff]
    %v4039 = vld [vmem:[#allocation4 + $0x258] sm:$0xff]
    %v4040 = vld [vmem:[#allocation4 + $0x260] sm:$0xff]
    %v4041 = vld [vmem:[#allocation4 + $0x268] sm:$0xff]
    %v4042 = vld [vmem:[#allocation4 + $0x270] sm:$0xff]
    %v4043 = vld [vmem:[#allocation4 + $0x278] sm:$0xff]
    %v4044 = vld [vmem:[#allocation4 + $0x280] sm:$0xff]
    %v4045 = vld [vmem:[#allocation4 + $0x288] sm:$0xff]
    %v4046 = vld [vmem:[#allocation4 + $0x290] sm:$0xff]
    %v4047 = vld [vmem:[#allocation4 + $0x298] sm:$0xff]
    %v4048 = vld [vmem:[#allocation4 + $0x2a0] sm:$0xff]
    %v4049 = vld [vmem:[#allocation4 + $0x2a8] sm:$0xff]
    %v4050 = vld [vmem:[#allocation4 + $0x2b0] sm:$0xff]
    %v4051 = vld [vmem:[#allocation4 + $0x2b8] sm:$0xff]
    %v4052 = vld [vmem:[#allocation4 + $0x2c0] sm:$0xff]
    %v4053 = vld [vmem:[#allocation4 + $0x2c8] sm:$0xff]
    %v4054 = vld [vmem:[#allocation4 + $0x2d0] sm:$0xff]
    %v4055 = vld [vmem:[#allocation4 + $0x2d8] sm:$0xff]
    %v4056 = vld [vmem:[#allocation4 + $0x2e0] sm:$0xff]
    %v4057 = vld [vmem:[#allocation4 + $0x2e8] sm:$0xff]
    %v4058 = vld [vmem:[#allocation4 + $0x2f0] sm:$0xff]
    %v4059 = vld [vmem:[#allocation4 + $0x2f8] sm:$0xff]
    %v4060 = vld [vmem:[#allocation4 + $0x300] sm:$0xff]
    %v4061 = vld [vmem:[#allocation4 + $0x308] sm:$0xff]
    %v4062 = vld [vmem:[#allocation4 + $0x310] sm:$0xff]
    %v4063 = vld [vmem:[#allocation4 + $0x318] sm:$0xff]
    %v4064 = vld [vmem:[#allocation4 + $0x320] sm:$0xff]
    %v4065 = vld [vmem:[#allocation4 + $0x328] sm:$0xff]
    %v4066 = vld [vmem:[#allocation4 + $0x330] sm:$0xff]
    %v4067 = vld [vmem:[#allocation4 + $0x338] sm:$0xff]
    %v4068 = vld [vmem:[#allocation4 + $0x340] sm:$0xff]
    %v4069 = vld [vmem:[#allocation4 + $0x348] sm:$0xff]
    %v4070 = vld [vmem:[#allocation4 + $0x350] sm:$0xff]
    %v4071 = vld [vmem:[#allocation4 + $0x358] sm:$0xff]
    %v4072 = vld [vmem:[#allocation4 + $0x360] sm:$0xff]
    %v4073 = vld [vmem:[#allocation4 + $0x368] sm:$0xff]
    %v4074 = vld [vmem:[#allocation4 + $0x370] sm:$0xff]
    %v4075 = vld [vmem:[#allocation4 + $0x378] sm:$0xff]
    %v4076 = vld [vmem:[#allocation4 + $0x380] sm:$0xff]
    %v4077 = vld [vmem:[#allocation4 + $0x388] sm:$0xff]
    %v4078 = vld [vmem:[#allocation4 + $0x390] sm:$0xff]
    %v4079 = vld [vmem:[#allocation4 + $0x398] sm:$0xff]
    %v4080 = vld [vmem:[#allocation4 + $0x3a0] sm:$0xff]
    %v4081 = vld [vmem:[#allocation4 + $0x3a8] sm:$0xff]
    %v4082 = vld [vmem:[#allocation4 + $0x3b0] sm:$0xff]
    %v4083 = vld [vmem:[#allocation4 + $0x3b8] sm:$0xff]
    %v4084 = vld [vmem:[#allocation4 + $0x3c0] sm:$0xff]
    %v4085 = vld [vmem:[#allocation4 + $0x3c8] sm:$0xff]
    %v4086 = vld [vmem:[#allocation4 + $0x3d0] sm:$0xff]
    %v4087 = vld [vmem:[#allocation4 + $0x3d8] sm:$0xff]
    %v4088 = vld [vmem:[#allocation4 + $0x3e0] sm:$0xff]
    %v4089 = vld [vmem:[#allocation4 + $0x3e8] sm:$0xff]
    %v4090 = vld [vmem:[#allocation4 + $0x3f0] sm:$0xff]
    %v4091 = vld [vmem:[#allocation4 + $0x3f8] sm:$0xff]
    %v4220 = vunpack.c.l.b16 %v3964
    %v4221 = vunpack.c.h.b16 %v3964
    %v4222 = vunpack.c.l.b16 %v3965
    %v4223 = vunpack.c.h.b16 %v3965
    %v4224 = vunpack.c.l.b16 %v3966
    %v4225 = vunpack.c.h.b16 %v3966
    %v4226 = vunpack.c.l.b16 %v3967
    %v4227 = vunpack.c.h.b16 %v3967
    %v4228 = vunpack.c.l.b16 %v3968
    %v4229 = vunpack.c.h.b16 %v3968
    %v4230 = vunpack.c.l.b16 %v3969
    %v4231 = vunpack.c.h.b16 %v3969
    %v4232 = vunpack.c.l.b16 %v3970
    %v4233 = vunpack.c.h.b16 %v3970
    %v4234 = vunpack.c.l.b16 %v3971
    %v4235 = vunpack.c.h.b16 %v3971
    %v4236 = vunpack.c.l.b16 %v3972
    %v4237 = vunpack.c.h.b16 %v3972
    %v4238 = vunpack.c.l.b16 %v3973
    %v4239 = vunpack.c.h.b16 %v3973
    %v4240 = vunpack.c.l.b16 %v3974
    %v4241 = vunpack.c.h.b16 %v3974
    %v4242 = vunpack.c.l.b16 %v3975
    %v4243 = vunpack.c.h.b16 %v3975
    %v4244 = vunpack.c.l.b16 %v3976
    %v4245 = vunpack.c.h.b16 %v3976
    %v4246 = vunpack.c.l.b16 %v3977
    %v4247 = vunpack.c.h.b16 %v3977
    %v4248 = vunpack.c.l.b16 %v3978
    %v4249 = vunpack.c.h.b16 %v3978
    %v4250 = vunpack.c.l.b16 %v3979
    %v4251 = vunpack.c.h.b16 %v3979
    %v4252 = vunpack.c.l.b16 %v3980
    %v4253 = vunpack.c.h.b16 %v3980
    %v4254 = vunpack.c.l.b16 %v3981
    %v4255 = vunpack.c.h.b16 %v3981
    %v4256 = vunpack.c.l.b16 %v3982
    %v4257 = vunpack.c.h.b16 %v3982
    %v4258 = vunpack.c.l.b16 %v3983
    %v4259 = vunpack.c.h.b16 %v3983
    %v4260 = vunpack.c.l.b16 %v3984
    %v4261 = vunpack.c.h.b16 %v3984
    %v4262 = vunpack.c.l.b16 %v3985
    %v4263 = vunpack.c.h.b16 %v3985
    %v4264 = vunpack.c.l.b16 %v3986
    %v4265 = vunpack.c.h.b16 %v3986
    %v4266 = vunpack.c.l.b16 %v3987
    %v4267 = vunpack.c.h.b16 %v3987
    %v4268 = vunpack.c.l.b16 %v3988
    %v4269 = vunpack.c.h.b16 %v3988
    %v4270 = vunpack.c.l.b16 %v3989
    %v4271 = vunpack.c.h.b16 %v3989
    %v4272 = vunpack.c.l.b16 %v3990
    %v4273 = vunpack.c.h.b16 %v3990
    %v4274 = vunpack.c.l.b16 %v3991
    %v4275 = vunpack.c.h.b16 %v3991
    %v4276 = vunpack.c.l.b16 %v3992
    %v4277 = vunpack.c.h.b16 %v3992
    %v4278 = vunpack.c.l.b16 %v3993
    %v4279 = vunpack.c.h.b16 %v3993
    %v4280 = vunpack.c.l.b16 %v3994
    %v4281 = vunpack.c.h.b16 %v3994
    %v4282 = vunpack.c.l.b16 %v3995
    %v4283 = vunpack.c.h.b16 %v3995
    %v4284 = vunpack.c.l.b16 %v3996
    %v4285 = vunpack.c.h.b16 %v3996
    %v4286 = vunpack.c.l.b16 %v3997
    %v4287 = vunpack.c.h.b16 %v3997
    %v4288 = vunpack.c.l.b16 %v3998
    %v4289 = vunpack.c.h.b16 %v3998
    %v4290 = vunpack.c.l.b16 %v3999
    %v4291 = vunpack.c.h.b16 %v3999
    %v4292 = vunpack.c.l.b16 %v4000
    %v4293 = vunpack.c.h.b16 %v4000
    %v4294 = vunpack.c.l.b16 %v4001
    %v4295 = vunpack.c.h.b16 %v4001
    %v4296 = vunpack.c.l.b16 %v4002
    %v4297 = vunpack.c.h.b16 %v4002
    %v4298 = vunpack.c.l.b16 %v4003
    %v4299 = vunpack.c.h.b16 %v4003
    %v4300 = vunpack.c.l.b16 %v4004
    %v4301 = vunpack.c.h.b16 %v4004
    %v4302 = vunpack.c.l.b16 %v4005
    %v4303 = vunpack.c.h.b16 %v4005
    %v4304 = vunpack.c.l.b16 %v4006
    %v4305 = vunpack.c.h.b16 %v4006
    %v4306 = vunpack.c.l.b16 %v4007
    %v4307 = vunpack.c.h.b16 %v4007
    %v4308 = vunpack.c.l.b16 %v4008
    %v4309 = vunpack.c.h.b16 %v4008
    %v4310 = vunpack.c.l.b16 %v4009
    %v4311 = vunpack.c.h.b16 %v4009
    %v4312 = vunpack.c.l.b16 %v4010
    %v4313 = vunpack.c.h.b16 %v4010
    %v4314 = vunpack.c.l.b16 %v4011
    %v4315 = vunpack.c.h.b16 %v4011
    %v4316 = vunpack.c.l.b16 %v4012
    %v4317 = vunpack.c.h.b16 %v4012
    %v4318 = vunpack.c.l.b16 %v4013
    %v4319 = vunpack.c.h.b16 %v4013
    %v4320 = vunpack.c.l.b16 %v4014
    %v4321 = vunpack.c.h.b16 %v4014
    %v4322 = vunpack.c.l.b16 %v4015
    %v4323 = vunpack.c.h.b16 %v4015
    %v4324 = vunpack.c.l.b16 %v4016
    %v4325 = vunpack.c.h.b16 %v4016
    %v4326 = vunpack.c.l.b16 %v4017
    %v4327 = vunpack.c.h.b16 %v4017
    %v4328 = vunpack.c.l.b16 %v4018
    %v4329 = vunpack.c.h.b16 %v4018
    %v4330 = vunpack.c.l.b16 %v4019
    %v4331 = vunpack.c.h.b16 %v4019
    %v4332 = vunpack.c.l.b16 %v4020
    %v4333 = vunpack.c.h.b16 %v4020
    %v4334 = vunpack.c.l.b16 %v4021
    %v4335 = vunpack.c.h.b16 %v4021
    %v4336 = vunpack.c.l.b16 %v4022
    %v4337 = vunpack.c.h.b16 %v4022
    %v4338 = vunpack.c.l.b16 %v4023
    %v4339 = vunpack.c.h.b16 %v4023
    %v4340 = vunpack.c.l.b16 %v4024
    %v4341 = vunpack.c.h.b16 %v4024
    %v4342 = vunpack.c.l.b16 %v4025
    %v4343 = vunpack.c.h.b16 %v4025
    %v4344 = vunpack.c.l.b16 %v4026
    %v4345 = vunpack.c.h.b16 %v4026
    %v4346 = vunpack.c.l.b16 %v4027
    %v4347 = vunpack.c.h.b16 %v4027
    %v4348 = vunpack.c.l.b16 %v4028
    %v4349 = vunpack.c.h.b16 %v4028
    %v4350 = vunpack.c.l.b16 %v4029
    %v4351 = vunpack.c.h.b16 %v4029
    %v4352 = vunpack.c.l.b16 %v4030
    %v4353 = vunpack.c.h.b16 %v4030
    %v4354 = vunpack.c.l.b16 %v4031
    %v4355 = vunpack.c.h.b16 %v4031
    %v4356 = vunpack.c.l.b16 %v4032
    %v4357 = vunpack.c.h.b16 %v4032
    %v4358 = vunpack.c.l.b16 %v4033
    %v4359 = vunpack.c.h.b16 %v4033
    %v4360 = vunpack.c.l.b16 %v4034
    %v4361 = vunpack.c.h.b16 %v4034
    %v4362 = vunpack.c.l.b16 %v4035
    %v4363 = vunpack.c.h.b16 %v4035
    %v4364 = vunpack.c.l.b16 %v4036
    %v4365 = vunpack.c.h.b16 %v4036
    %v4366 = vunpack.c.l.b16 %v4037
    %v4367 = vunpack.c.h.b16 %v4037
    %v4368 = vunpack.c.l.b16 %v4038
    %v4369 = vunpack.c.h.b16 %v4038
    %v4370 = vunpack.c.l.b16 %v4039
    %v4371 = vunpack.c.h.b16 %v4039
    %v4372 = vunpack.c.l.b16 %v4040
    %v4373 = vunpack.c.h.b16 %v4040
    %v4374 = vunpack.c.l.b16 %v4041
    %v4375 = vunpack.c.h.b16 %v4041
    %v4376 = vunpack.c.l.b16 %v4042
    %v4377 = vunpack.c.h.b16 %v4042
    %v4378 = vunpack.c.l.b16 %v4043
    %v4379 = vunpack.c.h.b16 %v4043
    %v4380 = vunpack.c.l.b16 %v4044
    %v4381 = vunpack.c.h.b16 %v4044
    %v4382 = vunpack.c.l.b16 %v4045
    %v4383 = vunpack.c.h.b16 %v4045
    %v4384 = vunpack.c.l.b16 %v4046
    %v4385 = vunpack.c.h.b16 %v4046
    %v4386 = vunpack.c.l.b16 %v4047
    %v4387 = vunpack.c.h.b16 %v4047
    %v4388 = vunpack.c.l.b16 %v4048
    %v4389 = vunpack.c.h.b16 %v4048
    %v4390 = vunpack.c.l.b16 %v4049
    %v4391 = vunpack.c.h.b16 %v4049
    %v4392 = vunpack.c.l.b16 %v4050
    %v4393 = vunpack.c.h.b16 %v4050
    %v4394 = vunpack.c.l.b16 %v4051
    %v4395 = vunpack.c.h.b16 %v4051
    %v4396 = vunpack.c.l.b16 %v4052
    %v4397 = vunpack.c.h.b16 %v4052
    %v4398 = vunpack.c.l.b16 %v4053
    %v4399 = vunpack.c.h.b16 %v4053
    %v4400 = vunpack.c.l.b16 %v4054
    %v4401 = vunpack.c.h.b16 %v4054
    %v4402 = vunpack.c.l.b16 %v4055
    %v4403 = vunpack.c.h.b16 %v4055
    %v4404 = vunpack.c.l.b16 %v4056
    %v4405 = vunpack.c.h.b16 %v4056
    %v4406 = vunpack.c.l.b16 %v4057
    %v4407 = vunpack.c.h.b16 %v4057
    %v4408 = vunpack.c.l.b16 %v4058
    %v4409 = vunpack.c.h.b16 %v4058
    %v4410 = vunpack.c.l.b16 %v4059
    %v4411 = vunpack.c.h.b16 %v4059
    %v4412 = vunpack.c.l.b16 %v4060
    %v4413 = vunpack.c.h.b16 %v4060
    %v4414 = vunpack.c.l.b16 %v4061
    %v4415 = vunpack.c.h.b16 %v4061
    %v4416 = vunpack.c.l.b16 %v4062
    %v4417 = vunpack.c.h.b16 %v4062
    %v4418 = vunpack.c.l.b16 %v4063
    %v4419 = vunpack.c.h.b16 %v4063
    %v4420 = vunpack.c.l.b16 %v4064
    %v4421 = vunpack.c.h.b16 %v4064
    %v4422 = vunpack.c.l.b16 %v4065
    %v4423 = vunpack.c.h.b16 %v4065
    %v4424 = vunpack.c.l.b16 %v4066
    %v4425 = vunpack.c.h.b16 %v4066
    %v4426 = vunpack.c.l.b16 %v4067
    %v4427 = vunpack.c.h.b16 %v4067
    %v4428 = vunpack.c.l.b16 %v4068
    %v4429 = vunpack.c.h.b16 %v4068
    %v4430 = vunpack.c.l.b16 %v4069
    %v4431 = vunpack.c.h.b16 %v4069
    %v4432 = vunpack.c.l.b16 %v4070
    %v4433 = vunpack.c.h.b16 %v4070
    %v4434 = vunpack.c.l.b16 %v4071
    %v4435 = vunpack.c.h.b16 %v4071
    %v4436 = vunpack.c.l.b16 %v4072
    %v4437 = vunpack.c.h.b16 %v4072
    %v4438 = vunpack.c.l.b16 %v4073
    %v4439 = vunpack.c.h.b16 %v4073
    %v4440 = vunpack.c.l.b16 %v4074
    %v4441 = vunpack.c.h.b16 %v4074
    %v4442 = vunpack.c.l.b16 %v4075
    %v4443 = vunpack.c.h.b16 %v4075
    %v4444 = vunpack.c.l.b16 %v4076
    %v4445 = vunpack.c.h.b16 %v4076
    %v4446 = vunpack.c.l.b16 %v4077
    %v4447 = vunpack.c.h.b16 %v4077
    %v4448 = vunpack.c.l.b16 %v4078
    %v4449 = vunpack.c.h.b16 %v4078
    %v4450 = vunpack.c.l.b16 %v4079
    %v4451 = vunpack.c.h.b16 %v4079
    %v4452 = vunpack.c.l.b16 %v4080
    %v4453 = vunpack.c.h.b16 %v4080
    %v4454 = vunpack.c.l.b16 %v4081
    %v4455 = vunpack.c.h.b16 %v4081
    %v4456 = vunpack.c.l.b16 %v4082
    %v4457 = vunpack.c.h.b16 %v4082
    %v4458 = vunpack.c.l.b16 %v4083
    %v4459 = vunpack.c.h.b16 %v4083
    %v4460 = vunpack.c.l.b16 %v4084
    %v4461 = vunpack.c.h.b16 %v4084
    %v4462 = vunpack.c.l.b16 %v4085
    %v4463 = vunpack.c.h.b16 %v4085
    %v4464 = vunpack.c.l.b16 %v4086
    %v4465 = vunpack.c.h.b16 %v4086
    %v4466 = vunpack.c.l.b16 %v4087
    %v4467 = vunpack.c.h.b16 %v4087
    %v4468 = vunpack.c.l.b16 %v4088
    %v4469 = vunpack.c.h.b16 %v4088
    %v4470 = vunpack.c.l.b16 %v4089
    %v4471 = vunpack.c.h.b16 %v4089
    %v4472 = vunpack.c.l.b16 %v4090
    %v4473 = vunpack.c.h.b16 %v4090
    %v4474 = vunpack.c.l.b16 %v4091
    %v4475 = vunpack.c.h.b16 %v4091
    %v4476 = vpack.c.b16 %v4222, %v4220
    %v4477 = vpack.c.b16 %v4223, %v4221
    %v4478 = vpack.c.b16 %v4226, %v4224
    %v4479 = vpack.c.b16 %v4227, %v4225
    %v4480 = vpack.c.b16 %v4230, %v4228
    %v4481 = vpack.c.b16 %v4231, %v4229
    %v4482 = vpack.c.b16 %v4234, %v4232
    %v4483 = vpack.c.b16 %v4235, %v4233
    %v4484 = vpack.c.b16 %v4238, %v4236
    %v4485 = vpack.c.b16 %v4239, %v4237
    %v4486 = vpack.c.b16 %v4242, %v4240
    %v4487 = vpack.c.b16 %v4243, %v4241
    %v4488 = vpack.c.b16 %v4246, %v4244
    %v4489 = vpack.c.b16 %v4247, %v4245
    %v4490 = vpack.c.b16 %v4250, %v4248
    %v4491 = vpack.c.b16 %v4251, %v4249
    %v4492 = vpack.c.b16 %v4254, %v4252
    %v4493 = vpack.c.b16 %v4255, %v4253
    %v4494 = vpack.c.b16 %v4258, %v4256
    %v4495 = vpack.c.b16 %v4259, %v4257
    %v4496 = vpack.c.b16 %v4262, %v4260
    %v4497 = vpack.c.b16 %v4263, %v4261
    %v4498 = vpack.c.b16 %v4266, %v4264
    %v4499 = vpack.c.b16 %v4267, %v4265
    %v4500 = vpack.c.b16 %v4270, %v4268
    %v4501 = vpack.c.b16 %v4271, %v4269
    %v4502 = vpack.c.b16 %v4274, %v4272
    %v4503 = vpack.c.b16 %v4275, %v4273
    %v4504 = vpack.c.b16 %v4278, %v4276
    %v4505 = vpack.c.b16 %v4279, %v4277
    %v4506 = vpack.c.b16 %v4282, %v4280
    %v4507 = vpack.c.b16 %v4283, %v4281
    %v4508 = vpack.c.b16 %v4286, %v4284
    %v4509 = vpack.c.b16 %v4287, %v4285
    %v4510 = vpack.c.b16 %v4290, %v4288
    %v4511 = vpack.c.b16 %v4291, %v4289
    %v4512 = vpack.c.b16 %v4294, %v4292
    %v4513 = vpack.c.b16 %v4295, %v4293
    %v4514 = vpack.c.b16 %v4298, %v4296
    %v4515 = vpack.c.b16 %v4299, %v4297
    %v4516 = vpack.c.b16 %v4302, %v4300
    %v4517 = vpack.c.b16 %v4303, %v4301
    %v4518 = vpack.c.b16 %v4306, %v4304
    %v4519 = vpack.c.b16 %v4307, %v4305
    %v4520 = vpack.c.b16 %v4310, %v4308
    %v4521 = vpack.c.b16 %v4311, %v4309
    %v4522 = vpack.c.b16 %v4314, %v4312
    %v4523 = vpack.c.b16 %v4315, %v4313
    %v4524 = vpack.c.b16 %v4318, %v4316
    %v4525 = vpack.c.b16 %v4319, %v4317
    %v4526 = vpack.c.b16 %v4322, %v4320
    %v4527 = vpack.c.b16 %v4323, %v4321
    %v4528 = vpack.c.b16 %v4326, %v4324
    %v4529 = vpack.c.b16 %v4327, %v4325
    %v4530 = vpack.c.b16 %v4330, %v4328
    %v4531 = vpack.c.b16 %v4331, %v4329
    %v4532 = vpack.c.b16 %v4334, %v4332
    %v4533 = vpack.c.b16 %v4335, %v4333
    %v4534 = vpack.c.b16 %v4338, %v4336
    %v4535 = vpack.c.b16 %v4339, %v4337
    %v4536 = vpack.c.b16 %v4342, %v4340
    %v4537 = vpack.c.b16 %v4343, %v4341
    %v4538 = vpack.c.b16 %v4346, %v4344
    %v4539 = vpack.c.b16 %v4347, %v4345
    %v4540 = vpack.c.b16 %v4350, %v4348
    %v4541 = vpack.c.b16 %v4351, %v4349
    %v4542 = vpack.c.b16 %v4354, %v4352
    %v4543 = vpack.c.b16 %v4355, %v4353
    %v4544 = vpack.c.b16 %v4358, %v4356
    %v4545 = vpack.c.b16 %v4359, %v4357
    %v4546 = vpack.c.b16 %v4362, %v4360
    %v4547 = vpack.c.b16 %v4363, %v4361
    %v4548 = vpack.c.b16 %v4366, %v4364
    %v4549 = vpack.c.b16 %v4367, %v4365
    %v4550 = vpack.c.b16 %v4370, %v4368
    %v4551 = vpack.c.b16 %v4371, %v4369
    %v4552 = vpack.c.b16 %v4374, %v4372
    %v4553 = vpack.c.b16 %v4375, %v4373
    %v4554 = vpack.c.b16 %v4378, %v4376
    %v4555 = vpack.c.b16 %v4379, %v4377
    %v4556 = vpack.c.b16 %v4382, %v4380
    %v4557 = vpack.c.b16 %v4383, %v4381
    %v4558 = vpack.c.b16 %v4386, %v4384
    %v4559 = vpack.c.b16 %v4387, %v4385
    %v4560 = vpack.c.b16 %v4390, %v4388
    %v4561 = vpack.c.b16 %v4391, %v4389
    %v4562 = vpack.c.b16 %v4394, %v4392
    %v4563 = vpack.c.b16 %v4395, %v4393
    %v4564 = vpack.c.b16 %v4398, %v4396
    %v4565 = vpack.c.b16 %v4399, %v4397
    %v4566 = vpack.c.b16 %v4402, %v4400
    %v4567 = vpack.c.b16 %v4403, %v4401
    %v4568 = vpack.c.b16 %v4406, %v4404
    %v4569 = vpack.c.b16 %v4407, %v4405
    %v4570 = vpack.c.b16 %v4410, %v4408
    %v4571 = vpack.c.b16 %v4411, %v4409
    %v4572 = vpack.c.b16 %v4414, %v4412
    %v4573 = vpack.c.b16 %v4415, %v4413
    %v4574 = vpack.c.b16 %v4418, %v4416
    %v4575 = vpack.c.b16 %v4419, %v4417
    %v4576 = vpack.c.b16 %v4422, %v4420
    %v4577 = vpack.c.b16 %v4423, %v4421
    %v4578 = vpack.c.b16 %v4426, %v4424
    %v4579 = vpack.c.b16 %v4427, %v4425
    %v4580 = vpack.c.b16 %v4430, %v4428
    %v4581 = vpack.c.b16 %v4431, %v4429
    %v4582 = vpack.c.b16 %v4434, %v4432
    %v4583 = vpack.c.b16 %v4435, %v4433
    %v4584 = vpack.c.b16 %v4438, %v4436
    %v4585 = vpack.c.b16 %v4439, %v4437
    %v4586 = vpack.c.b16 %v4442, %v4440
    %v4587 = vpack.c.b16 %v4443, %v4441
    %v4588 = vpack.c.b16 %v4446, %v4444
    %v4589 = vpack.c.b16 %v4447, %v4445
    %v4590 = vpack.c.b16 %v4450, %v4448
    %v4591 = vpack.c.b16 %v4451, %v4449
    %v4592 = vpack.c.b16 %v4454, %v4452
    %v4593 = vpack.c.b16 %v4455, %v4453
    %v4594 = vpack.c.b16 %v4458, %v4456
    %v4595 = vpack.c.b16 %v4459, %v4457
    %v4596 = vpack.c.b16 %v4462, %v4460
    %v4597 = vpack.c.b16 %v4463, %v4461
    %v4598 = vpack.c.b16 %v4466, %v4464
    %v4599 = vpack.c.b16 %v4467, %v4465
    %v4600 = vpack.c.b16 %v4470, %v4468
    %v4601 = vpack.c.b16 %v4471, %v4469
    %v4602 = vpack.c.b16 %v4474, %v4472
    %v4603 = vpack.c.b16 %v4475, %v4473
    %4732 = vmatpush.bf16.msra.mxu0 %v4490
    %4733 = vmatpush.bf16.msra.mxu0 %v4488
    %4734 = vmatpush.bf16.msra.mxu0 %v4486
    %4735 = vmatpush.bf16.msra.mxu0 %v4484
    %4736 = vmatpush.bf16.msra.mxu0 %v4482
    %4737 = vmatpush.bf16.msra.mxu0 %v4480
    %4738 = vmatpush.bf16.msra.mxu0 %v4478
    %4739 = vmatpush.bf16.msra.mxu0 %v4476
    %4740 = vmatmul.bf16.gmra.mxu0 %v3954
    %v4741 = vpop.f32.mrf.mxu0
    %v4742 = vadd.f32 0.0, %v4741
    %v4743 = vpop.f32.mrf.mxu0
    %4744 = vdwg.mxu0
    %4745 = vmatpush.bf16.msra.mxu0 %v4506
    %4746 = vmatpush.bf16.msra.mxu0 %v4504
    %4747 = vmatpush.bf16.msra.mxu0 %v4502
    %4748 = vmatpush.bf16.msra.mxu0 %v4500
    %4749 = vmatpush.bf16.msra.mxu0 %v4498
    %4750 = vmatpush.bf16.msra.mxu0 %v4496
    %4751 = vmatpush.bf16.msra.mxu0 %v4494
    %4752 = vmatpush.bf16.msra.mxu0 %v4492
    %4753 = vmatmul.bf16.gmra.mxu0 %v3955
    %v4754 = vpop.f32.mrf.mxu0
    %v4755 = vadd.f32 %v4742, %v4754
    %v4756 = vpop.f32.mrf.mxu0
    %4757 = vdwg.mxu0
    %4758 = vmatpush.bf16.msra.mxu0 %v4522
    %4759 = vmatpush.bf16.msra.mxu0 %v4520
    %4760 = vmatpush.bf16.msra.mxu0 %v4518
    %4761 = vmatpush.bf16.msra.mxu0 %v4516
    %4762 = vmatpush.bf16.msra.mxu0 %v4514
    %4763 = vmatpush.bf16.msra.mxu0 %v4512
    %4764 = vmatpush.bf16.msra.mxu0 %v4510
    %4765 = vmatpush.bf16.msra.mxu0 %v4508
    %4766 = vmatmul.bf16.gmra.mxu0 %v3956
    %v4767 = vpop.f32.mrf.mxu0
    %v4768 = vadd.f32 %v4755, %v4767
    %v4769 = vpop.f32.mrf.mxu0
    %4770 = vdwg.mxu0
    %4771 = vmatpush.bf16.msra.mxu0 %v4538
    %4772 = vmatpush.bf16.msra.mxu0 %v4536
    %4773 = vmatpush.bf16.msra.mxu0 %v4534
    %4774 = vmatpush.bf16.msra.mxu0 %v4532
    %4775 = vmatpush.bf16.msra.mxu0 %v4530
    %4776 = vmatpush.bf16.msra.mxu0 %v4528
    %4777 = vmatpush.bf16.msra.mxu0 %v4526
    %4778 = vmatpush.bf16.msra.mxu0 %v4524
    %4779 = vmatmul.bf16.gmra.mxu0 %v3957
    %v4780 = vpop.f32.mrf.mxu0
    %v4781 = vadd.f32 %v4768, %v4780
    %v4782 = vpop.f32.mrf.mxu0
    %4783 = vdwg.mxu0
    %4784 = vmatpush.bf16.msra.mxu0 %v4554
    %4785 = vmatpush.bf16.msra.mxu0 %v4552
    %4786 = vmatpush.bf16.msra.mxu0 %v4550
    %4787 = vmatpush.bf16.msra.mxu0 %v4548
    %4788 = vmatpush.bf16.msra.mxu0 %v4546
    %4789 = vmatpush.bf16.msra.mxu0 %v4544
    %4790 = vmatpush.bf16.msra.mxu0 %v4542
    %4791 = vmatpush.bf16.msra.mxu0 %v4540
    %4792 = vmatmul.bf16.gmra.mxu0 %v3958
    %v4793 = vpop.f32.mrf.mxu0
    %v4794 = vadd.f32 %v4781, %v4793
    %v4795 = vpop.f32.mrf.mxu0
    %4796 = vdwg.mxu0
    %4797 = vmatpush.bf16.msra.mxu0 %v4570
    %4798 = vmatpush.bf16.msra.mxu0 %v4568
    %4799 = vmatpush.bf16.msra.mxu0 %v4566
    %4800 = vmatpush.bf16.msra.mxu0 %v4564
    %4801 = vmatpush.bf16.msra.mxu0 %v4562
    %4802 = vmatpush.bf16.msra.mxu0 %v4560
    %4803 = vmatpush.bf16.msra.mxu0 %v4558
    %4804 = vmatpush.bf16.msra.mxu0 %v4556
    %4805 = vmatmul.bf16.gmra.mxu0 %v3959
    %v4806 = vpop.f32.mrf.mxu0
    %v4807 = vadd.f32 %v4794, %v4806
    %v4808 = vpop.f32.mrf.mxu0
    %4809 = vdwg.mxu0
    %4810 = vmatpush.bf16.msra.mxu0 %v4586
    %4811 = vmatpush.bf16.msra.mxu0 %v4584
    %4812 = vmatpush.bf16.msra.mxu0 %v4582
    %4813 = vmatpush.bf16.msra.mxu0 %v4580
    %4814 = vmatpush.bf16.msra.mxu0 %v4578
    %4815 = vmatpush.bf16.msra.mxu0 %v4576
    %4816 = vmatpush.bf16.msra.mxu0 %v4574
    %4817 = vmatpush.bf16.msra.mxu0 %v4572
    %4818 = vmatmul.bf16.gmra.mxu0 %v3960
    %v4819 = vpop.f32.mrf.mxu0
    %v4820 = vadd.f32 %v4807, %v4819
    %v4821 = vpop.f32.mrf.mxu0
    %4822 = vdwg.mxu0
    %4823 = vmatpush.bf16.msra.mxu0 %v4602
    %4824 = vmatpush.bf16.msra.mxu0 %v4600
    %4825 = vmatpush.bf16.msra.mxu0 %v4598
    %4826 = vmatpush.bf16.msra.mxu0 %v4596
    %4827 = vmatpush.bf16.msra.mxu0 %v4594
    %4828 = vmatpush.bf16.msra.mxu0 %v4592
    %4829 = vmatpush.bf16.msra.mxu0 %v4590
    %4830 = vmatpush.bf16.msra.mxu0 %v4588
    %4831 = vmatmul.bf16.gmra.mxu0 %v3961
    %v4832 = vpop.f32.mrf.mxu0
    %v4833 = vadd.f32 %v4820, %v4832
    %v4834 = vpop.f32.mrf.mxu0
    %4835 = vdwg.mxu0
    %4836 = vmatpush.bf16.msra.mxu0 %v4491
    %4837 = vmatpush.bf16.msra.mxu0 %v4489
    %4838 = vmatpush.bf16.msra.mxu0 %v4487
    %4839 = vmatpush.bf16.msra.mxu0 %v4485
    %4840 = vmatpush.bf16.msra.mxu0 %v4483
    %4841 = vmatpush.bf16.msra.mxu0 %v4481
    %4842 = vmatpush.bf16.msra.mxu0 %v4479
    %4843 = vmatpush.bf16.msra.mxu0 %v4477
    %4844 = vmatmul.bf16.gmra.mxu0 %v3954
    %v4845 = vpop.f32.mrf.mxu0
    %v4846 = vadd.f32 0.0, %v4845
    %v4847 = vpop.f32.mrf.mxu0
    %4848 = vdwg.mxu0
    %4849 = vmatpush.bf16.msra.mxu0 %v4507
    %4850 = vmatpush.bf16.msra.mxu0 %v4505
    %4851 = vmatpush.bf16.msra.mxu0 %v4503
    %4852 = vmatpush.bf16.msra.mxu0 %v4501
    %4853 = vmatpush.bf16.msra.mxu0 %v4499
    %4854 = vmatpush.bf16.msra.mxu0 %v4497
    %4855 = vmatpush.bf16.msra.mxu0 %v4495
    %4856 = vmatpush.bf16.msra.mxu0 %v4493
    %4857 = vmatmul.bf16.gmra.mxu0 %v3955
    %v4858 = vpop.f32.mrf.mxu0
    %v4859 = vadd.f32 %v4846, %v4858
    %v4860 = vpop.f32.mrf.mxu0
    %4861 = vdwg.mxu0
    %4862 = vmatpush.bf16.msra.mxu0 %v4523
    %4863 = vmatpush.bf16.msra.mxu0 %v4521
    %4864 = vmatpush.bf16.msra.mxu0 %v4519
    %4865 = vmatpush.bf16.msra.mxu0 %v4517
    %4866 = vmatpush.bf16.msra.mxu0 %v4515
    %4867 = vmatpush.bf16.msra.mxu0 %v4513
    %4868 = vmatpush.bf16.msra.mxu0 %v4511
    %4869 = vmatpush.bf16.msra.mxu0 %v4509
    %4870 = vmatmul.bf16.gmra.mxu0 %v3956
    %v4871 = vpop.f32.mrf.mxu0
    %v4872 = vadd.f32 %v4859, %v4871
    %v4873 = vpop.f32.mrf.mxu0
    %4874 = vdwg.mxu0
    %4875 = vmatpush.bf16.msra.mxu0 %v4539
    %4876 = vmatpush.bf16.msra.mxu0 %v4537
    %4877 = vmatpush.bf16.msra.mxu0 %v4535
    %4878 = vmatpush.bf16.msra.mxu0 %v4533
    %4879 = vmatpush.bf16.msra.mxu0 %v4531
    %4880 = vmatpush.bf16.msra.mxu0 %v4529
    %4881 = vmatpush.bf16.msra.mxu0 %v4527
    %4882 = vmatpush.bf16.msra.mxu0 %v4525
    %4883 = vmatmul.bf16.gmra.mxu0 %v3957
    %v4884 = vpop.f32.mrf.mxu0
    %v4885 = vadd.f32 %v4872, %v4884
    %v4886 = vpop.f32.mrf.mxu0
    %4887 = vdwg.mxu0
    %4888 = vmatpush.bf16.msra.mxu0 %v4555
    %4889 = vmatpush.bf16.msra.mxu0 %v4553
    %4890 = vmatpush.bf16.msra.mxu0 %v4551
    %4891 = vmatpush.bf16.msra.mxu0 %v4549
    %4892 = vmatpush.bf16.msra.mxu0 %v4547
    %4893 = vmatpush.bf16.msra.mxu0 %v4545
    %4894 = vmatpush.bf16.msra.mxu0 %v4543
    %4895 = vmatpush.bf16.msra.mxu0 %v4541
    %4896 = vmatmul.bf16.gmra.mxu0 %v3958
    %v4897 = vpop.f32.mrf.mxu0
    %v4898 = vadd.f32 %v4885, %v4897
    %v4899 = vpop.f32.mrf.mxu0
    %4900 = vdwg.mxu0
    %4901 = vmatpush.bf16.msra.mxu0 %v4571
    %4902 = vmatpush.bf16.msra.mxu0 %v4569
    %4903 = vmatpush.bf16.msra.mxu0 %v4567
    %4904 = vmatpush.bf16.msra.mxu0 %v4565
    %4905 = vmatpush.bf16.msra.mxu0 %v4563
    %4906 = vmatpush.bf16.msra.mxu0 %v4561
    %4907 = vmatpush.bf16.msra.mxu0 %v4559
    %4908 = vmatpush.bf16.msra.mxu0 %v4557
    %4909 = vmatmul.bf16.gmra.mxu0 %v3959
    %v4910 = vpop.f32.mrf.mxu0
    %v4911 = vadd.f32 %v4898, %v4910
    %v4912 = vpop.f32.mrf.mxu0
    %4913 = vdwg.mxu0
    %4914 = vmatpush.bf16.msra.mxu0 %v4587
    %4915 = vmatpush.bf16.msra.mxu0 %v4585
    %4916 = vmatpush.bf16.msra.mxu0 %v4583
    %4917 = vmatpush.bf16.msra.mxu0 %v4581
    %4918 = vmatpush.bf16.msra.mxu0 %v4579
    %4919 = vmatpush.bf16.msra.mxu0 %v4577
    %4920 = vmatpush.bf16.msra.mxu0 %v4575
    %4921 = vmatpush.bf16.msra.mxu0 %v4573
    %4922 = vmatmul.bf16.gmra.mxu0 %v3960
    %v4923 = vpop.f32.mrf.mxu0
    %v4924 = vadd.f32 %v4911, %v4923
    %v4925 = vpop.f32.mrf.mxu0
    %4926 = vdwg.mxu0
    %4927 = vmatpush.bf16.msra.mxu0 %v4603
    %4928 = vmatpush.bf16.msra.mxu0 %v4601
    %4929 = vmatpush.bf16.msra.mxu0 %v4599
    %4930 = vmatpush.bf16.msra.mxu0 %v4597
    %4931 = vmatpush.bf16.msra.mxu0 %v4595
    %4932 = vmatpush.bf16.msra.mxu0 %v4593
    %4933 = vmatpush.bf16.msra.mxu0 %v4591
    %4934 = vmatpush.bf16.msra.mxu0 %v4589
    %4935 = vmatmul.bf16.gmra.mxu0 %v3961
    %v4936 = vpop.f32.mrf.mxu0
    %v4937 = vadd.f32 %v4924, %v4936
    %v4938 = vpop.f32.mrf.mxu0
    %4939 = vdwg.mxu0
    %v4940 = vsel %vm1353, %v4833, 0.0
    %v4941 = vrot.slane %v4940, 4
    %v4942 = vadd.f32 %v4940, %v4941
    %v4943 = vrot.slane %v4942, 2
    %v4944 = vadd.f32 %v4942, %v4943
    %v4945 = vrot.slane %v4944, 1
    %v4946 = vadd.f32 %v4944, %v4945
    %v4947 = vsel %vm1353, %v4937, 0.0
    %v4948 = vrot.slane %v4947, 4
    %v4949 = vadd.f32 %v4947, %v4948
    %v4950 = vrot.slane %v4949, 2
    %v4951 = vadd.f32 %v4949, %v4950
    %v4952 = vrot.slane %v4951, 1
    %v4953 = vadd.f32 %v4951, %v4952
    %v4954 = vmul.f32 %v4833, %v4833
    %v4955 = vmul.f32 %v4937, %v4937
    %v4956 = vsel %vm1353, %v4954, 0.0
    %v4957 = vrot.slane %v4956, 4
    %v4958 = vadd.f32 %v4956, %v4957
    %v4959 = vrot.slane %v4958, 2
    %v4960 = vadd.f32 %v4958, %v4959
    %v4961 = vrot.slane %v4960, 1
    %v4962 = vadd.f32 %v4960, %v4961
    %v4963 = vsel %vm1353, %v4955, 0.0
    %v4964 = vrot.slane %v4963, 4
    %v4965 = vadd.f32 %v4963, %v4964
    %v4966 = vrot.slane %v4965, 2
    %v4967 = vadd.f32 %v4965, %v4966
    %v4968 = vrot.slane %v4967, 1
    %v4969 = vadd.f32 %v4967, %v4968
    %v4970 = vsel %vm492, %v4946, %v4962
    %v4971 = vsel %vm492, %v4953, %v4969
    %v4972 = vadd.f32 %v4970, %v4971
    %v4973 = vrcp.pop 8.0
    %v4974 = vmul.f32 8.0, %v4973
    %v4975 = vsub.f32 1.0, %v4974
    %v4976 = vmul.f32 %v4973, %v4975
    %v4977 = vadd.f32 %v4973, %v4976
    %vm4978 = vweird.f32 %v4973
    %v4979 = vsel %vm4978, %v4973, %v4977
    %v4980 = vmul.f32 %v4972, %v4979
    %v4981 = vmul.f32 %v4980, %v4980
    %v4983 = vrot.slane %v4981, 7
    %v4985 = vsub.f32 %v4980, %v4983
    %v4986 = vmax.f32 %v4985, 0.0
    %v4987 = vld [vmem:[%s8] sm:$0x1]
    %v4988 = vadd.f32 %v4986, 1e-05
    %v4989 = vrsqrt.pop %v4988
    %v4990 = vmul.f32 %v4989, %v4988
    %v4991 = vmul.f32 %v4990, %v4989
    %v4992 = vmul.f32 0.5, %v4991
    %v4993 = vsub.f32 1.5, %v4992
    %v4994 = vmul.f32 %v4989, %v4993
    %vm4995 = vweird.f32 %v4988
    %vm4996 = vweird.f32 %v4989
    %vm4997 = vmor %vm4995, %vm4996
    %v4998 = vsel %vm4997, %v4989, %v4994
    %5000 = vst [vmem:[#allocation1] sm:$0xff] %v4998
    %s5001 = scalar_lea.vmem [#allocation1], 1
    %v5002 = vld [vmem:[%s5001] ss:$9 sm:$0xff]
    %v5004 = vmul.f32 %v4987, %v5002
    %v5005 = vld [vmem:[%s9] sm:$0x1]
    %v5006 = vmul.f32 %v4980, %v5004
    %v5007 = vsub.f32 %v5005, %v5006
    %v5008 = vperm.slane %v5004, 0
    %v5009 = vmul.f32 %v4833, %v5008
    %v5010 = vmul.f32 %v4937, %v5008
    %v5011 = vperm.slane %v5007, 0
    %v5012 = vadd.f32 %v5009, %v5011
    %v5013 = vadd.f32 %v5010, %v5011
    %v5014 = vmax.f32 %v5012, 0.0
    %v5015 = vmax.f32 %v5013, 0.0
    %v5018 = vrot.slane %v5015, 4
    %v5019 = vsel %vm1353, %v5014, %v5018
    %v5022 = vunpack.c.l.s4 1966171168
    %v5023 = vunpack.c.0.s8 %v5022
    %v5024 = vperm.slane %v5019, %v5023
    %5026 = vst [vmem:[#allocation1] ss:$4 sm:$0xff] %v5024
    %v5027 = vld.sshfl [vmem:[#allocation1] sm:$0xff pattern:$0x73625140]
    %v5028 = vld.sshfl [vmem:[#allocation1 + $0x8] sm:$0xff pattern:$0x73625140]
    %v5029 = vld.sshfl [vmem:[#allocation1 + $0x10] sm:$0xff pattern:$0x73625140]
    %v5030 = vld.sshfl [vmem:[#allocation1 + $0x18] sm:$0xff pattern:$0x73625140]
    %v5035 = vpack.c.bf16 %v5027, %v5027
    %v5036 = vpack.c.bf16 %v5028, %v5028
    %v5037 = vpack.c.bf16 %v5029, %v5029
    %v5038 = vpack.c.bf16 %v5030, %v5030
    %v5039 = vld [vmem:[%s10] sm:$0xf]
    %v5040 = vld [vmem:[%s10 + $0x4] sm:$0xf]
    %v5041 = vld [vmem:[%s10 + $0x8] sm:$0xf]
    %v5042 = vld [vmem:[%s10 + $0xc] sm:$0xf]
    %v5043 = vld [vmem:[%s10 + $0x10] sm:$0xf]
    %v5044 = vld [vmem:[%s10 + $0x14] sm:$0xf]
    %v5045 = vld [vmem:[%s10 + $0x18] sm:$0xf]
    %v5046 = vld [vmem:[%s10 + $0x1c] sm:$0xf]
    %v5047 = vld [vmem:[%s10 + $0x20] sm:$0xf]
    %v5048 = vld [vmem:[%s10 + $0x24] sm:$0xf]
    %v5049 = vld [vmem:[%s10 + $0x28] sm:$0xf]
    %v5050 = vld [vmem:[%s10 + $0x2c] sm:$0xf]
    %v5051 = vld [vmem:[%s10 + $0x30] sm:$0xf]
    %v5052 = vld [vmem:[%s10 + $0x34] sm:$0xf]
    %v5053 = vld [vmem:[%s10 + $0x38] sm:$0xf]
    %v5054 = vld [vmem:[%s10 + $0x3c] sm:$0xf]
    %v5055 = vld [vmem:[%s10 + $0x40] sm:$0xf]
    %v5056 = vld [vmem:[%s10 + $0x44] sm:$0xf]
    %v5057 = vld [vmem:[%s10 + $0x48] sm:$0xf]
    %v5058 = vld [vmem:[%s10 + $0x4c] sm:$0xf]
    %v5059 = vld [vmem:[%s10 + $0x50] sm:$0xf]
    %v5060 = vld [vmem:[%s10 + $0x54] sm:$0xf]
    %v5061 = vld [vmem:[%s10 + $0x58] sm:$0xf]
    %v5062 = vld [vmem:[%s10 + $0x5c] sm:$0xf]
    %v5063 = vld [vmem:[%s10 + $0x60] sm:$0xf]
    %v5064 = vld [vmem:[%s10 + $0x64] sm:$0xf]
    %v5065 = vld [vmem:[%s10 + $0x68] sm:$0xf]
    %v5066 = vld [vmem:[%s10 + $0x6c] sm:$0xf]
    %v5067 = vld [vmem:[%s10 + $0x70] sm:$0xf]
    %v5068 = vld [vmem:[%s10 + $0x74] sm:$0xf]
    %v5069 = vld [vmem:[%s10 + $0x78] sm:$0xf]
    %v5070 = vld [vmem:[%s10 + $0x7c] sm:$0xf]
    %v5071 = vld [vmem:[%s10 + $0x80] sm:$0xf]
    %v5072 = vld [vmem:[%s10 + $0x84] sm:$0xf]
    %v5073 = vld [vmem:[%s10 + $0x88] sm:$0xf]
    %v5074 = vld [vmem:[%s10 + $0x8c] sm:$0xf]
    %v5075 = vld [vmem:[%s10 + $0x90] sm:$0xf]
    %v5076 = vld [vmem:[%s10 + $0x94] sm:$0xf]
    %v5077 = vld [vmem:[%s10 + $0x98] sm:$0xf]
    %v5078 = vld [vmem:[%s10 + $0x9c] sm:$0xf]
    %v5079 = vld [vmem:[%s10 + $0xa0] sm:$0xf]
    %v5080 = vld [vmem:[%s10 + $0xa4] sm:$0xf]
    %v5081 = vld [vmem:[%s10 + $0xa8] sm:$0xf]
    %v5082 = vld [vmem:[%s10 + $0xac] sm:$0xf]
    %v5083 = vld [vmem:[%s10 + $0xb0] sm:$0xf]
    %v5084 = vld [vmem:[%s10 + $0xb4] sm:$0xf]
    %v5085 = vld [vmem:[%s10 + $0xb8] sm:$0xf]
    %v5086 = vld [vmem:[%s10 + $0xbc] sm:$0xf]
    %v5087 = vld [vmem:[%s10 + $0xc0] sm:$0xf]
    %v5088 = vld [vmem:[%s10 + $0xc4] sm:$0xf]
    %v5089 = vld [vmem:[%s10 + $0xc8] sm:$0xf]
    %v5090 = vld [vmem:[%s10 + $0xcc] sm:$0xf]
    %v5091 = vld [vmem:[%s10 + $0xd0] sm:$0xf]
    %v5092 = vld [vmem:[%s10 + $0xd4] sm:$0xf]
    %v5093 = vld [vmem:[%s10 + $0xd8] sm:$0xf]
    %v5094 = vld [vmem:[%s10 + $0xdc] sm:$0xf]
    %v5095 = vld [vmem:[%s10 + $0xe0] sm:$0xf]
    %v5096 = vld [vmem:[%s10 + $0xe4] sm:$0xf]
    %v5097 = vld [vmem:[%s10 + $0xe8] sm:$0xf]
    %v5098 = vld [vmem:[%s10 + $0xec] sm:$0xf]
    %v5099 = vld [vmem:[%s10 + $0xf0] sm:$0xf]
    %v5100 = vld [vmem:[%s10 + $0xf4] sm:$0xf]
    %v5101 = vld [vmem:[%s10 + $0xf8] sm:$0xf]
    %v5102 = vld [vmem:[%s10 + $0xfc] sm:$0xf]
    %v5103 = vld [vmem:[%s11] sm:$0x1]
    %v5105 = vperm.slane %v5103, 0
    %v5171 = vunpack.c.l.b16 %v5039
    %v5172 = vunpack.c.l.b16 %v5040
    %v5173 = vunpack.c.l.b16 %v5041
    %v5174 = vunpack.c.l.b16 %v5042
    %v5175 = vunpack.c.l.b16 %v5043
    %v5176 = vunpack.c.l.b16 %v5044
    %v5177 = vunpack.c.l.b16 %v5045
    %v5178 = vunpack.c.l.b16 %v5046
    %v5179 = vunpack.c.l.b16 %v5047
    %v5180 = vunpack.c.l.b16 %v5048
    %v5181 = vunpack.c.l.b16 %v5049
    %v5182 = vunpack.c.l.b16 %v5050
    %v5183 = vunpack.c.l.b16 %v5051
    %v5184 = vunpack.c.l.b16 %v5052
    %v5185 = vunpack.c.l.b16 %v5053
    %v5186 = vunpack.c.l.b16 %v5054
    %v5187 = vunpack.c.l.b16 %v5055
    %v5188 = vunpack.c.l.b16 %v5056
    %v5189 = vunpack.c.l.b16 %v5057
    %v5190 = vunpack.c.l.b16 %v5058
    %v5191 = vunpack.c.l.b16 %v5059
    %v5192 = vunpack.c.l.b16 %v5060
    %v5193 = vunpack.c.l.b16 %v5061
    %v5194 = vunpack.c.l.b16 %v5062
    %v5195 = vunpack.c.l.b16 %v5063
    %v5196 = vunpack.c.l.b16 %v5064
    %v5197 = vunpack.c.l.b16 %v5065
    %v5198 = vunpack.c.l.b16 %v5066
    %v5199 = vunpack.c.l.b16 %v5067
    %v5200 = vunpack.c.l.b16 %v5068
    %v5201 = vunpack.c.l.b16 %v5069
    %v5202 = vunpack.c.l.b16 %v5070
    %v5203 = vunpack.c.l.b16 %v5071
    %v5204 = vunpack.c.l.b16 %v5072
    %v5205 = vunpack.c.l.b16 %v5073
    %v5206 = vunpack.c.l.b16 %v5074
    %v5207 = vunpack.c.l.b16 %v5075
    %v5208 = vunpack.c.l.b16 %v5076
    %v5209 = vunpack.c.l.b16 %v5077
    %v5210 = vunpack.c.l.b16 %v5078
    %v5211 = vunpack.c.l.b16 %v5079
    %v5212 = vunpack.c.l.b16 %v5080
    %v5213 = vunpack.c.l.b16 %v5081
    %v5214 = vunpack.c.l.b16 %v5082
    %v5215 = vunpack.c.l.b16 %v5083
    %v5216 = vunpack.c.l.b16 %v5084
    %v5217 = vunpack.c.l.b16 %v5085
    %v5218 = vunpack.c.l.b16 %v5086
    %v5219 = vunpack.c.l.b16 %v5087
    %v5220 = vunpack.c.l.b16 %v5088
    %v5221 = vunpack.c.l.b16 %v5089
    %v5222 = vunpack.c.l.b16 %v5090
    %v5223 = vunpack.c.l.b16 %v5091
    %v5224 = vunpack.c.l.b16 %v5092
    %v5225 = vunpack.c.l.b16 %v5093
    %v5226 = vunpack.c.l.b16 %v5094
    %v5227 = vunpack.c.l.b16 %v5095
    %v5228 = vunpack.c.l.b16 %v5096
    %v5229 = vunpack.c.l.b16 %v5097
    %v5230 = vunpack.c.l.b16 %v5098
    %v5231 = vunpack.c.l.b16 %v5099
    %v5232 = vunpack.c.l.b16 %v5100
    %v5233 = vunpack.c.l.b16 %v5101
    %v5234 = vunpack.c.l.b16 %v5102
    %v5235 = vpack.c.b16 %v5172, %v5171
    %v5236 = vpack.c.b16 %v5174, %v5173
    %v5237 = vpack.c.b16 %v5176, %v5175
    %v5238 = vpack.c.b16 %v5178, %v5177
    %v5239 = vpack.c.b16 %v5180, %v5179
    %v5240 = vpack.c.b16 %v5182, %v5181
    %v5241 = vpack.c.b16 %v5184, %v5183
    %v5242 = vpack.c.b16 %v5186, %v5185
    %v5243 = vpack.c.b16 %v5188, %v5187
    %v5244 = vpack.c.b16 %v5190, %v5189
    %v5245 = vpack.c.b16 %v5192, %v5191
    %v5246 = vpack.c.b16 %v5194, %v5193
    %v5247 = vpack.c.b16 %v5196, %v5195
    %v5248 = vpack.c.b16 %v5198, %v5197
    %v5249 = vpack.c.b16 %v5200, %v5199
    %v5250 = vpack.c.b16 %v5202, %v5201
    %v5251 = vpack.c.b16 %v5204, %v5203
    %v5252 = vpack.c.b16 %v5206, %v5205
    %v5253 = vpack.c.b16 %v5208, %v5207
    %v5254 = vpack.c.b16 %v5210, %v5209
    %v5255 = vpack.c.b16 %v5212, %v5211
    %v5256 = vpack.c.b16 %v5214, %v5213
    %v5257 = vpack.c.b16 %v5216, %v5215
    %v5258 = vpack.c.b16 %v5218, %v5217
    %v5259 = vpack.c.b16 %v5220, %v5219
    %v5260 = vpack.c.b16 %v5222, %v5221
    %v5261 = vpack.c.b16 %v5224, %v5223
    %v5262 = vpack.c.b16 %v5226, %v5225
    %v5263 = vpack.c.b16 %v5228, %v5227
    %v5264 = vpack.c.b16 %v5230, %v5229
    %v5265 = vpack.c.b16 %v5232, %v5231
    %v5266 = vpack.c.b16 %v5234, %v5233
    %5299 = vmatpush.bf16.msra.mxu0 %v5242
    %5300 = vmatpush.bf16.msra.mxu0 %v5241
    %5301 = vmatpush.bf16.msra.mxu0 %v5240
    %5302 = vmatpush.bf16.msra.mxu0 %v5239
    %5303 = vmatpush.bf16.msra.mxu0 %v5238
    %5304 = vmatpush.bf16.msra.mxu0 %v5237
    %5305 = vmatpush.bf16.msra.mxu0 %v5236
    %5306 = vmatpush.bf16.msra.mxu0 %v5235
    %5307 = vmatmul.bf16.gmra.mxu0 %v5035
    %v5308 = vpop.f32.mrf.mxu0
    %v5309 = vadd.f32 %v5105, %v5308
    %v5310 = vpop.f32.mrf.mxu0
    %5311 = vdwg.mxu0
    %5312 = vmatpush.bf16.msra.mxu0 %v5250
    %5313 = vmatpush.bf16.msra.mxu0 %v5249
    %5314 = vmatpush.bf16.msra.mxu0 %v5248
    %5315 = vmatpush.bf16.msra.mxu0 %v5247
    %5316 = vmatpush.bf16.msra.mxu0 %v5246
    %5317 = vmatpush.bf16.msra.mxu0 %v5245
    %5318 = vmatpush.bf16.msra.mxu0 %v5244
    %5319 = vmatpush.bf16.msra.mxu0 %v5243
    %5320 = vmatmul.bf16.gmra.mxu0 %v5036
    %v5321 = vpop.f32.mrf.mxu0
    %v5322 = vadd.f32 %v5309, %v5321
    %v5323 = vpop.f32.mrf.mxu0
    %5324 = vdwg.mxu0
    %5325 = vmatpush.bf16.msra.mxu0 %v5258
    %5326 = vmatpush.bf16.msra.mxu0 %v5257
    %5327 = vmatpush.bf16.msra.mxu0 %v5256
    %5328 = vmatpush.bf16.msra.mxu0 %v5255
    %5329 = vmatpush.bf16.msra.mxu0 %v5254
    %5330 = vmatpush.bf16.msra.mxu0 %v5253
    %5331 = vmatpush.bf16.msra.mxu0 %v5252
    %5332 = vmatpush.bf16.msra.mxu0 %v5251
    %5333 = vmatmul.bf16.gmra.mxu0 %v5037
    %v5334 = vpop.f32.mrf.mxu0
    %v5335 = vadd.f32 %v5322, %v5334
    %v5336 = vpop.f32.mrf.mxu0
    %5337 = vdwg.mxu0
    %5338 = vmatpush.bf16.msra.mxu0 %v5266
    %5339 = vmatpush.bf16.msra.mxu0 %v5265
    %5340 = vmatpush.bf16.msra.mxu0 %v5264
    %5341 = vmatpush.bf16.msra.mxu0 %v5263
    %5342 = vmatpush.bf16.msra.mxu0 %v5262
    %5343 = vmatpush.bf16.msra.mxu0 %v5261
    %5344 = vmatpush.bf16.msra.mxu0 %v5260
    %5345 = vmatpush.bf16.msra.mxu0 %v5259
    %5346 = vmatmul.bf16.gmra.mxu0 %v5038
    %v5347 = vpop.f32.mrf.mxu0
    %v5348 = vadd.f32 %v5335, %v5347
    %v5349 = vpop.f32.mrf.mxu0
    %5350 = vdwg.mxu0
    %v5351 = vmax.f32 %v5348, 0.0
    %v5352 = vand.u32 2147483647, %v5348
    %v5353 = vsub.f32 0.0, %v5352
    %v5354 = vmul.f32 %v5353, 1.442695
    %v5355 = vpow.pop %v5354
    %v5356 = vadd.f32 %v5355, 1.0
    %v5357 = vlog2.pop %v5356
    %v5358 = vmul.f32 %v5357, 0.6931472
    %v5359 = vmul.f32 -0.5, %v5355
    %v5360 = vadd.f32 %v5359, 1.0
    %v5361 = vmul.f32 %v5360, %v5355
    %v5362 = vand.u32 2147483647, %v5355
    %vm5363 = vcmp.lt.f32.partialorder %v5362, 0.0004427343
    %v5364 = vsel %vm5363, %v5361, %v5358
    %v5365 = vadd.f32 %v5351, %v5364
    %v5366 = vld [vmem:[%s12] sm:$0x3]
    %5368 = vrot.lane.b32.xlu0 %v5365, 96
    %v5369 = vpop.permute.xlu0 %5368
    %v5371 = vmul.f32 %v5366, %v5369
    %v5372 = vadd.f32 %v5348, %v5371
    %vm5373 = vcmask 254976
    %5374 = vst.msk [vmem:[#allocation9] sm:$0x3] %vm5373, %v5372
    // Predicated region
    $region85: #{forward.1} parent=1 // pred_check
      _
    $region86: #{forward.1} parent=1 // pred_check_branch
      %5376 = sbr.rel (0) target = $region88
    $region87: #{forward.1} parent=1 // pred_region
      %5378 = vsyncadd [#allocation8], 0
      %s5380 = sshll.u32 [#allocation9], 4
      %s5381 = int_to_ptr.vmem [resolvable:$true] %s5380
      %s5382 = sshll.u32 %s16, 4
      %s5383 = int_to_ptr.hbm [resolvable:$true] %s5382
      %5385 = dma.vmem_to_hbm [thread:$0]  %s5381, 32, %s5383, [#allocation8]
    $region88: #{forward.1} parent=1 // pred_fallthru
      _
    // Predicated region
    $region89: #{forward.1} parent=1 // pred_check
      _
    $region90: #{forward.1} parent=1 // pred_check_branch
      %5387 = sbr.rel (0) target = $region92
    $region91: #{forward.1} parent=1 // pred_region
      %5389 = dma.done [#allocation8], 32
    $region92: #{forward.1} parent=1 // pred_fallthru
      _
    %5390 = vsyncpa [#allocation7], 1
    %5391 = vsyncpa [#allocation8], 1
  %5392 = vsyncmov [#allocation5]
  %s5393 = vpop.sfrf %5392
  %p5394 = scmp.eq.s32.totalorder %s5393, 0
  %p5395 = pneg %p5394
  %5397 = shalt.err (%p5395)
  %s5398 = scalar_lea.sflag [#allocation5], 1
  %5399 = vsyncmov %s5398
  %s5400 = vpop.sfrf %5399
  %p5401 = scmp.eq.s32.totalorder %s5400, 0
  %p5402 = pneg %p5401
  %5404 = shalt.err (%p5402)
  %s5405 = scalar_lea.sflag [#allocation5], 2
  %5406 = vsyncmov %s5405
  %s5407 = vpop.sfrf %5406
  %p5408 = scmp.eq.s32.totalorder %s5407, 0
  %p5409 = pneg %p5408
  %5411 = shalt.err (%p5409)

</llo_original>
